<compile_context>
chip_gen: v7x
topology: tpu7x:2x2x1
jax: 0.10.0
libtpu: 0.0.40
codegen_flags: <defaults>
</compile_context>

<pallas_src>
import functools
import math

import jax
import jax.numpy as jnp
from jax.experimental import pallas as pl
from jax.experimental.pallas import tpu as pltpu


# ----------------------------- architecture ---------------------------------
ARCH = dict(
    rp_dim=32,            # x (reference point) dim
    rp_embed_dim=64,
    cond_embed_dim=16,
    hidden_dim=[64, 32],
    latent_dim=8,
    dc_dim=1,             # drag coefficient (last column of raw y)
    dc_enc_dim=8,         # positional-encoding width of dc
    manu_dim=4, type_dim=4, class_dim=4,
    cond_dims=['manu_dim', 'type_dim', 'class_dim', 'dc_enc_dim'],
)
# arch['activation'] in the PyTorch module; nn.ReLU() assumed.
SPARSITY = 0.3            # spars_params['sparsity']
BATCH = 256               # multiple of TILE_B; amortizes launch/DMA fixed cost
TILE_B = 128              # lane-width batch tile per grid step

Y_DIM = sum(ARCH[d] for d in ARCH['cond_dims'])          # 20 (post pos-enc)
Y_PAD = 24                                                # K padded to 8-mult
HID = ARCH['hidden_dim']
LAT = ARCH['latent_dim']
RP = ARCH['rp_dim']
CEMB = ARCH['cond_embed_dim']

PREC = jax.lax.Precision.HIGHEST   # pin the f32 MXU path; kernel & ref agree


def _rup8(n):
    return (n + 7) // 8 * 8


# (name, fin_padded, fout); mean/logvar fused as 'ml'. Weights stored (fout, fin).
_SEGMENTS = (
    ('x_emb', RP,                   ARCH['rp_embed_dim']),   # 32 -> 64
    ('y_emb', Y_PAD,                CEMB),                   # 24 -> 16 (20 real)
    ('enc1',  ARCH['rp_embed_dim'], HID[0]),                 # 64 -> 64
    ('enc2',  HID[0],               HID[1]),                 # 64 -> 32
    ('ml',    HID[-1],              2 * LAT),                # 32 -> 16 (mean||logvar)
    ('dec1',  LAT + CEMB,           HID[-1]),                # 24 -> 32
    ('dec2',  HID[1],               HID[0]),                 # 32 -> 64
    ('dec3',  HID[0],               RP),                     # 64 -> 32
)
SEG = {name: (fin, fout) for name, fin, fout in _SEGMENTS}

# ---- parameter slab layout: weight bands, then one shared 64-row bias band ---
W_ROWS = {}
_r = 0
for _name, _fin, _fout in _SEGMENTS:
    W_ROWS[_name] = _r
    _r = _rup8(_r + _fout)
BIAS_R0 = _r                                   # 320
BIAS_LANE = {name: i for i, (name, _f, _o) in enumerate(_SEGMENTS)}
SLAB_ROWS = _rup8(BIAS_R0 + 64)                # 384
SLAB_LANES = 128

# ---- input slab layout (feature-major: rows = features, lanes = batch) ------
X_R0 = 0
Y_R0 = _rup8(X_R0 + RP)                        # 32
M_R0 = _rup8(Y_R0 + Y_PAD)                     # 56
E_R0 = _rup8(M_R0 + Y_PAD)                     # 80
IN_ROWS = _rup8(E_R0 + LAT)                    # 88

# ---- output slab layout (feature-major) --------------------------------------
O_MEAN = 0
O_LOGV = O_MEAN + LAT                          # 8
O_YEMB = O_LOGV + LAT                          # 16
O_Z = O_YEMB + CEMB                            # 32
O_XHAT = O_Z + LAT                             # 40
OUT_ROWS = _rup8(O_XHAT + RP)                  # 72


# ------------------------------- kernel --------------------------------------
def mcvae_kernel(in_ref, p_ref, out_ref):
    f32 = jnp.float32

    def dense(name, a, relu=False):
        fin, fout = SEG[name]
        r0 = W_ROWS[name]
        w = p_ref[r0:r0 + fout, 0:fin]                       # (fout, fin)
        j = BIAS_LANE[name]
        b = p_ref[BIAS_R0:BIAS_R0 + fout, j:j + 1]           # (fout, 1) lane-splat
        h = jnp.dot(w, a, preferred_element_type=f32, precision=PREC) + b
        return jnp.maximum(h, 0.0) if relu else h

    x = in_ref[X_R0:X_R0 + RP, :]                            # (32, TB)
    # Mask layer (training, better_masks=True, mask_value=None -> zeros);
    # padded rows 20:24 of y and mask are zero, so the product stays zero.
    y = in_ref[Y_R0:Y_R0 + Y_PAD, :] * in_ref[M_R0:M_R0 + Y_PAD, :]   # (24, TB)
    eps = in_ref[E_R0:E_R0 + LAT, :]                         # (8, TB)

    # embed(x, y_msk)
    x_emb = dense('x_emb', x)                                # (64, TB)
    y_emb = dense('y_emb', y)                                # (16, TB)

    # encoder MLP (Linear -> ReLU -> Linear -> ReLU)
    h = dense('enc1', x_emb, relu=True)                      # (64, TB)
    h = dense('enc2', h, relu=True)                          # (32, TB)

    # fused mean || logvar head: one (16,32) matmul, split on sublanes
    ml = dense('ml', h)                                      # (16, TB)
    mean = ml[0:LAT, :]
    logvar = ml[LAT:2 * LAT, :]

    # reparameterization: z = mean + exp(0.5 * logvar) * eps
    z = mean + jnp.exp(0.5 * logvar) * eps                   # (8, TB)

    # decoder on sublane-stacked [z ; y_emb]
    zy = jnp.concatenate([z, y_emb], axis=0)                 # (24, TB)
    d = dense('dec1', zy, relu=True)                         # (32, TB)
    d = dense('dec2', d, relu=True)                          # (64, TB)
    x_hat = dense('dec3', d)                                 # (32, TB)

    # direct 8-aligned sublane stores into the lane-dense output slab
    out_ref[O_MEAN:O_MEAN + LAT, :] = mean
    out_ref[O_LOGV:O_LOGV + LAT, :] = logvar
    out_ref[O_YEMB:O_YEMB + CEMB, :] = y_emb
    out_ref[O_Z:O_Z + LAT, :] = z
    out_ref[O_XHAT:O_XHAT + RP, :] = x_hat


@functools.partial(jax.jit, static_argnames=("tile_b",))
def mcvae_forward(x, y_p_enc, mask_f, eps, param_slab, tile_b=TILE_B):
    B = x.shape[0]
    assert B % tile_b == 0, "batch must be a multiple of the lane tile"

    # one lane-dense feature-major (IN_ROWS, B) input slab -> single input DMA
    in_slab = jnp.zeros((IN_ROWS, B), jnp.float32)
    in_slab = in_slab.at[X_R0:X_R0 + RP, :].set(x.T)
    in_slab = in_slab.at[Y_R0:Y_R0 + Y_DIM, :].set(y_p_enc.T)
    in_slab = in_slab.at[M_R0:M_R0 + Y_DIM, :].set(mask_f.T)
    in_slab = in_slab.at[E_R0:E_R0 + LAT, :].set(eps.T)

    out = pl.pallas_call(
        mcvae_kernel,
        out_shape=jax.ShapeDtypeStruct((OUT_ROWS, B), jnp.float32),
        grid_spec=pltpu.PrefetchScalarGridSpec(
            num_scalar_prefetch=0,
            grid=(B // tile_b,),
            in_specs=[
                pl.BlockSpec((IN_ROWS, tile_b), lambda i: (0, i)),
                # parameter slab: constant index_map -> DMA'd once, resident
                pl.BlockSpec((SLAB_ROWS, SLAB_LANES), lambda i: (0, 0)),
            ],
            out_specs=pl.BlockSpec((OUT_ROWS, tile_b), lambda i: (0, i)),
        ),
        compiler_params=pltpu.CompilerParams(
            dimension_semantics=("parallel",)),
    )(in_slab, param_slab)

    def seg(r0, w):
        return out[r0:r0 + w, :].T

    return (seg(O_MEAN, LAT), seg(O_LOGV, LAT), seg(O_YEMB, CEMB),
            seg(O_Z, LAT), seg(O_XHAT, RP))


# ------------------------------ plain-JAX glue --------------------------------
def _linear_params(key, fan_in, fan_out):
    # nn.Linear init: W, b ~ U(-1/sqrt(fan_in), 1/sqrt(fan_in)); W is (out, in).
    kw, kb = jax.random.split(key)
    bound = 1.0 / math.sqrt(fan_in)
    Wm = jax.random.uniform(kw, (fan_out, fan_in), jnp.float32, -bound, bound)
    bm = jax.random.uniform(kb, (fan_out,), jnp.float32, -bound, bound)
    return Wm, bm


def init_params(key):
    keys = jax.random.split(key, 9)
    return dict(
        x_emb=_linear_params(keys[0], RP, ARCH['rp_embed_dim']),
        y_emb=_linear_params(keys[1], Y_DIM, CEMB),
        enc1=_linear_params(keys[2], ARCH['rp_embed_dim'], HID[0]),
        enc2=_linear_params(keys[3], HID[0], HID[1]),
        mean=_linear_params(keys[4], HID[-1], LAT),
        logvar=_linear_params(keys[5], HID[-1], LAT),
        dec1=_linear_params(keys[6], LAT + CEMB, HID[-1]),
        dec2=_linear_params(keys[7], HID[1], HID[0]),
        dec3=_linear_params(keys[8], HID[0], RP),
    )


def pack_params(params):
    """Pack torch-native (fout, fin) weights + biases into one (384, 128) slab."""
    fused = dict(params)
    fused['ml'] = (
        jnp.concatenate([params['mean'][0], params['logvar'][0]], axis=0),
        jnp.concatenate([params['mean'][1], params['logvar'][1]], axis=0),
    )
    slab = jnp.zeros((SLAB_ROWS, SLAB_LANES), jnp.float32)
    for name, _fin_pad, fout in _SEGMENTS:
        Wm, bm = fused[name]
        r0 = W_ROWS[name]
        slab = slab.at[r0:r0 + fout, 0:Wm.shape[1]].set(Wm)
        j = BIAS_LANE[name]
        slab = slab.at[BIAS_R0:BIAS_R0 + fout, j:j + 1].set(bm[:, None])
    return slab


def pos_enc(y):
    # NeRF-style positional encoding of the last column (drag coeff), dc_dim == 1
    y_wo_dc = y[:, :-1]
    dc = y[:, -1:].astype(jnp.float32)
    parts = []
    for i in range(ARCH['dc_enc_dim'] // 2):
        parts.append(jnp.sin((2.0 ** i) * dc * jnp.pi))
        parts.append(jnp.cos((2.0 ** i) * dc * jnp.pi))
    return jnp.concatenate([y_wo_dc] + parts, axis=1)


def make_mask(key, batch):
    # "better" mask, matching the torch semantics exactly:
    #   tight_mask = rand(B, n_groups) < p ; keep where True, else zero.
    # TODO(synk): torch RNG stream cannot be matched bit-exactly; jax.random used.
    dims = [ARCH[d] for d in ARCH['cond_dims']]
    tight_keep = jax.random.uniform(key, (batch, len(dims))) < SPARSITY
    full = jnp.concatenate(
        [jnp.broadcast_to(tight_keep[:, i:i + 1], (batch, d))
         for i, d in enumerate(dims)], axis=1)
    return full.astype(jnp.float32)


# --------------------------------- main ---------------------------------------
if __name__ == "__main__":
    root = jax.random.PRNGKey(0)
    k_param, k_x, k_y, k_mask, k_eps = jax.random.split(root, 5)

    params = init_params(k_param)
    param_slab = pack_params(params)

    # raw conditions: one-hot-ish groups + scalar drag coefficient as last col
    y_in_dim = (ARCH['manu_dim'] + ARCH['type_dim'] + ARCH['class_dim']
                + ARCH['dc_dim'])                                   # 13
    x = jax.random.normal(k_x, (BATCH, RP), jnp.float32)
    y = jax.random.uniform(k_y, (BATCH, y_in_dim), jnp.float32)

    y_p_enc = pos_enc(y)                           # (B, 20)
    mask_f = make_mask(k_mask, BATCH)              # (B, 20)
    eps = jax.random.normal(k_eps, (BATCH, LAT), jnp.float32)

    mean, logvar, y_emb, z, x_hat = jax.block_until_ready(
        mcvae_forward(x, y_p_enc, mask_f, eps, param_slab))

    # pure-JAX (batch-major) reference for sanity check
    def lin(a, p):
        Wm, bm = p
        return jnp.dot(a, Wm.T, precision=PREC) + bm

    def ref():
        ym = y_p_enc * mask_f
        xe = lin(x, params['x_emb'])
        ye = lin(ym, params['y_emb'])
        h = jnp.maximum(lin(xe, params['enc1']), 0.0)
        h = jnp.maximum(lin(h, params['enc2']), 0.0)
        m = lin(h, params['mean'])
        lv = lin(h, params['logvar'])
        zz = m + jnp.exp(0.5 * lv) * eps
        zy = jnp.concatenate([zz, ye], axis=1)
        d = jnp.maximum(lin(zy, params['dec1']), 0.0)
        d = jnp.maximum(lin(d, params['dec2']), 0.0)
        xh = lin(d, params['dec3'])
        return m, lv, ye, zz, xh

    rm, rlv, rye, rz, rxh = ref()
    for got, exp in [(mean, rm), (logvar, rlv), (y_emb, rye), (z, rz), (x_hat, rxh)]:
        assert jnp.allclose(got, exp, atol=1e-4, rtol=1e-4), "mismatch vs reference"

    print("KERNEL_OK")
</pallas_src>

<mosaic_0001>
module attributes {stable_mosaic.version = 11 : i64} {
  func.func @mcvae_kernel(%arg0: i32, %arg1: memref<88x128xf32, #tpu.memory_space<vmem>>, %arg2: memref<384x128xf32, #tpu.memory_space<vmem>>, %arg3: memref<72x128xf32, #tpu.memory_space<vmem>>) attributes {dimension_semantics = [#tpu.dimension_semantics<parallel>], iteration_bounds = array<i64: 2>, scalar_prefetch = 0 : i64, scratch_operands = 0 : i64, tpu.core_type = #tpu.core_type<tc>, window_params = [{transform_indices = @transform_0, window_bounds = array<i64: 88, 128>}, {pipeline_mode = #tpu.pipeline_mode<synchronous>, transform_indices = @transform_1, window_bounds = array<i64: 384, 128>}, {transform_indices = @transform_2, window_bounds = array<i64: 72, 128>}]} {
    %c0 = arith.constant 0 : index
    %c0_0 = arith.constant 0 : index
    %0 = vector.load %arg1[%c0, %c0_0] : memref<88x128xf32, #tpu.memory_space<vmem>>, vector<32x128xf32>
    %c32 = arith.constant 32 : index
    %c0_1 = arith.constant 0 : index
    %1 = vector.load %arg1[%c32, %c0_1] : memref<88x128xf32, #tpu.memory_space<vmem>>, vector<24x128xf32>
    %c56 = arith.constant 56 : index
    %c0_2 = arith.constant 0 : index
    %2 = vector.load %arg1[%c56, %c0_2] : memref<88x128xf32, #tpu.memory_space<vmem>>, vector<24x128xf32>
    %3 = arith.mulf %1, %2 : vector<24x128xf32>
    %c80 = arith.constant 80 : index
    %c0_3 = arith.constant 0 : index
    %4 = vector.load %arg1[%c80, %c0_3] : memref<88x128xf32, #tpu.memory_space<vmem>>, vector<8x128xf32>
    %c0_4 = arith.constant 0 : index
    %c0_5 = arith.constant 0 : index
    %5 = vector.load %arg2[%c0_4, %c0_5] : memref<384x128xf32, #tpu.memory_space<vmem>>, vector<64x32xf32>
    %c320 = arith.constant 320 : index
    %c0_6 = arith.constant 0 : index
    %6 = vector.load %arg2[%c320, %c0_6] : memref<384x128xf32, #tpu.memory_space<vmem>>, vector<64x1xf32>
    %cst = arith.constant dense<0.000000e+00> : vector<64x128xf32>
    %7 = tpu.matmul %5, %0, %cst {dimension_numbers = #tpu.dot_dimension_numbers<[1], [0], [0], [1], [0, 0, 1, 1], [], []>, precision = #tpu.contract_precision<fp32>} : vector<64x32xf32>, vector<32x128xf32>, vector<64x128xf32> -> vector<64x128xf32>
    %8 = vector.broadcast %6 : vector<64x1xf32> to vector<64x128xf32>
    %9 = arith.addf %7, %8 : vector<64x128xf32>
    %c64 = arith.constant 64 : index
    %c0_7 = arith.constant 0 : index
    %10 = vector.load %arg2[%c64, %c0_7] : memref<384x128xf32, #tpu.memory_space<vmem>>, vector<16x24xf32>
    %c320_8 = arith.constant 320 : index
    %c1 = arith.constant 1 : index
    %11 = vector.load %arg2[%c320_8, %c1] : memref<384x128xf32, #tpu.memory_space<vmem>>, vector<16x1xf32>
    %cst_9 = arith.constant dense<0.000000e+00> : vector<16x128xf32>
    %12 = tpu.matmul %10, %3, %cst_9 {dimension_numbers = #tpu.dot_dimension_numbers<[1], [0], [0], [1], [0, 0, 1, 1], [], []>, precision = #tpu.contract_precision<fp32>} : vector<16x24xf32>, vector<24x128xf32>, vector<16x128xf32> -> vector<16x128xf32>
    %13 = vector.broadcast %11 : vector<16x1xf32> to vector<16x128xf32>
    %14 = arith.addf %12, %13 : vector<16x128xf32>
    %c80_10 = arith.constant 80 : index
    %c0_11 = arith.constant 0 : index
    %15 = vector.load %arg2[%c80_10, %c0_11] : memref<384x128xf32, #tpu.memory_space<vmem>>, vector<64x64xf32>
    %c320_12 = arith.constant 320 : index
    %c2 = arith.constant 2 : index
    %16 = vector.load %arg2[%c320_12, %c2] : memref<384x128xf32, #tpu.memory_space<vmem>>, vector<64x1xf32>
    %cst_13 = arith.constant dense<0.000000e+00> : vector<64x128xf32>
    %17 = tpu.matmul %15, %9, %cst_13 {dimension_numbers = #tpu.dot_dimension_numbers<[1], [0], [0], [1], [0, 0, 1, 1], [], []>, precision = #tpu.contract_precision<fp32>} : vector<64x64xf32>, vector<64x128xf32>, vector<64x128xf32> -> vector<64x128xf32>
    %18 = vector.broadcast %16 : vector<64x1xf32> to vector<64x128xf32>
    %19 = arith.addf %17, %18 : vector<64x128xf32>
    %cst_14 = arith.constant 0.000000e+00 : f32
    %20 = vector.broadcast %cst_14 : f32 to vector<64x128xf32>
    %21 = arith.maximumf %19, %20 : vector<64x128xf32>
    %c144 = arith.constant 144 : index
    %c0_15 = arith.constant 0 : index
    %22 = vector.load %arg2[%c144, %c0_15] : memref<384x128xf32, #tpu.memory_space<vmem>>, vector<32x64xf32>
    %c320_16 = arith.constant 320 : index
    %c3 = arith.constant 3 : index
    %23 = vector.load %arg2[%c320_16, %c3] : memref<384x128xf32, #tpu.memory_space<vmem>>, vector<32x1xf32>
    %cst_17 = arith.constant dense<0.000000e+00> : vector<32x128xf32>
    %24 = tpu.matmul %22, %21, %cst_17 {dimension_numbers = #tpu.dot_dimension_numbers<[1], [0], [0], [1], [0, 0, 1, 1], [], []>, precision = #tpu.contract_precision<fp32>} : vector<32x64xf32>, vector<64x128xf32>, vector<32x128xf32> -> vector<32x128xf32>
    %25 = vector.broadcast %23 : vector<32x1xf32> to vector<32x128xf32>
    %26 = arith.addf %24, %25 : vector<32x128xf32>
    %cst_18 = arith.constant 0.000000e+00 : f32
    %27 = vector.broadcast %cst_18 : f32 to vector<32x128xf32>
    %28 = arith.maximumf %26, %27 : vector<32x128xf32>
    %c176 = arith.constant 176 : index
    %c0_19 = arith.constant 0 : index
    %29 = vector.load %arg2[%c176, %c0_19] : memref<384x128xf32, #tpu.memory_space<vmem>>, vector<16x32xf32>
    %c320_20 = arith.constant 320 : index
    %c4 = arith.constant 4 : index
    %30 = vector.load %arg2[%c320_20, %c4] : memref<384x128xf32, #tpu.memory_space<vmem>>, vector<16x1xf32>
    %cst_21 = arith.constant dense<0.000000e+00> : vector<16x128xf32>
    %31 = tpu.matmul %29, %28, %cst_21 {dimension_numbers = #tpu.dot_dimension_numbers<[1], [0], [0], [1], [0, 0, 1, 1], [], []>, precision = #tpu.contract_precision<fp32>} : vector<16x32xf32>, vector<32x128xf32>, vector<16x128xf32> -> vector<16x128xf32>
    %32 = vector.broadcast %30 : vector<16x1xf32> to vector<16x128xf32>
    %33 = arith.addf %31, %32 : vector<16x128xf32>
    %34 = vector.extract_strided_slice %33 {offsets = [0, 0], sizes = [8, 128], strides = [1, 1]} : vector<16x128xf32> to vector<8x128xf32>
    %35 = vector.extract_strided_slice %33 {offsets = [8, 0], sizes = [8, 128], strides = [1, 1]} : vector<16x128xf32> to vector<8x128xf32>
    %cst_22 = arith.constant 5.000000e-01 : f32
    %36 = vector.broadcast %cst_22 : f32 to vector<8x128xf32>
    %37 = arith.mulf %36, %35 : vector<8x128xf32>
    %38 = math.exp %37 : vector<8x128xf32>
    %39 = arith.mulf %38, %4 : vector<8x128xf32>
    %40 = arith.addf %34, %39 : vector<8x128xf32>
    %41 = tpu.concatenate %40, %14 in 0 : vector<8x128xf32>, vector<16x128xf32> -> vector<24x128xf32>
    %c192 = arith.constant 192 : index
    %c0_23 = arith.constant 0 : index
    %42 = vector.load %arg2[%c192, %c0_23] : memref<384x128xf32, #tpu.memory_space<vmem>>, vector<32x24xf32>
    %c320_24 = arith.constant 320 : index
    %c5 = arith.constant 5 : index
    %43 = vector.load %arg2[%c320_24, %c5] : memref<384x128xf32, #tpu.memory_space<vmem>>, vector<32x1xf32>
    %cst_25 = arith.constant dense<0.000000e+00> : vector<32x128xf32>
    %44 = tpu.matmul %42, %41, %cst_25 {dimension_numbers = #tpu.dot_dimension_numbers<[1], [0], [0], [1], [0, 0, 1, 1], [], []>, precision = #tpu.contract_precision<fp32>} : vector<32x24xf32>, vector<24x128xf32>, vector<32x128xf32> -> vector<32x128xf32>
    %45 = vector.broadcast %43 : vector<32x1xf32> to vector<32x128xf32>
    %46 = arith.addf %44, %45 : vector<32x128xf32>
    %cst_26 = arith.constant 0.000000e+00 : f32
    %47 = vector.broadcast %cst_26 : f32 to vector<32x128xf32>
    %48 = arith.maximumf %46, %47 : vector<32x128xf32>
    %c224 = arith.constant 224 : index
    %c0_27 = arith.constant 0 : index
    %49 = vector.load %arg2[%c224, %c0_27] : memref<384x128xf32, #tpu.memory_space<vmem>>, vector<64x32xf32>
    %c320_28 = arith.constant 320 : index
    %c6 = arith.constant 6 : index
    %50 = vector.load %arg2[%c320_28, %c6] : memref<384x128xf32, #tpu.memory_space<vmem>>, vector<64x1xf32>
    %cst_29 = arith.constant dense<0.000000e+00> : vector<64x128xf32>
    %51 = tpu.matmul %49, %48, %cst_29 {dimension_numbers = #tpu.dot_dimension_numbers<[1], [0], [0], [1], [0, 0, 1, 1], [], []>, precision = #tpu.contract_precision<fp32>} : vector<64x32xf32>, vector<32x128xf32>, vector<64x128xf32> -> vector<64x128xf32>
    %52 = vector.broadcast %50 : vector<64x1xf32> to vector<64x128xf32>
    %53 = arith.addf %51, %52 : vector<64x128xf32>
    %cst_30 = arith.constant 0.000000e+00 : f32
    %54 = vector.broadcast %cst_30 : f32 to vector<64x128xf32>
    %55 = arith.maximumf %53, %54 : vector<64x128xf32>
    %c288 = arith.constant 288 : index
    %c0_31 = arith.constant 0 : index
    %56 = vector.load %arg2[%c288, %c0_31] : memref<384x128xf32, #tpu.memory_space<vmem>>, vector<32x64xf32>
    %c320_32 = arith.constant 320 : index
    %c7 = arith.constant 7 : index
    %57 = vector.load %arg2[%c320_32, %c7] : memref<384x128xf32, #tpu.memory_space<vmem>>, vector<32x1xf32>
    %cst_33 = arith.constant dense<0.000000e+00> : vector<32x128xf32>
    %58 = tpu.matmul %56, %55, %cst_33 {dimension_numbers = #tpu.dot_dimension_numbers<[1], [0], [0], [1], [0, 0, 1, 1], [], []>, precision = #tpu.contract_precision<fp32>} : vector<32x64xf32>, vector<64x128xf32>, vector<32x128xf32> -> vector<32x128xf32>
    %59 = vector.broadcast %57 : vector<32x1xf32> to vector<32x128xf32>
    %60 = arith.addf %58, %59 : vector<32x128xf32>
    %c0_34 = arith.constant 0 : index
    %c0_35 = arith.constant 0 : index
    %61 = vector.load %arg3[%c0_34, %c0_35] : memref<72x128xf32, #tpu.memory_space<vmem>>, vector<8x128xf32>
    tpu.vector_store %arg3[%c0_34, %c0_35], %34 {strides = array<i32>} : memref<72x128xf32, #tpu.memory_space<vmem>>, vector<8x128xf32>,
    %c8 = arith.constant 8 : index
    %c0_36 = arith.constant 0 : index
    %62 = vector.load %arg3[%c8, %c0_36] : memref<72x128xf32, #tpu.memory_space<vmem>>, vector<8x128xf32>
    tpu.vector_store %arg3[%c8, %c0_36], %35 {strides = array<i32>} : memref<72x128xf32, #tpu.memory_space<vmem>>, vector<8x128xf32>,
    %c16 = arith.constant 16 : index
    %c0_37 = arith.constant 0 : index
    %63 = vector.load %arg3[%c16, %c0_37] : memref<72x128xf32, #tpu.memory_space<vmem>>, vector<16x128xf32>
    tpu.vector_store %arg3[%c16, %c0_37], %14 {strides = array<i32>} : memref<72x128xf32, #tpu.memory_space<vmem>>, vector<16x128xf32>,
    %c32_38 = arith.constant 32 : index
    %c0_39 = arith.constant 0 : index
    %64 = vector.load %arg3[%c32_38, %c0_39] : memref<72x128xf32, #tpu.memory_space<vmem>>, vector<8x128xf32>
    tpu.vector_store %arg3[%c32_38, %c0_39], %40 {strides = array<i32>} : memref<72x128xf32, #tpu.memory_space<vmem>>, vector<8x128xf32>,
    %c40 = arith.constant 40 : index
    %c0_40 = arith.constant 0 : index
    %65 = vector.load %arg3[%c40, %c0_40] : memref<72x128xf32, #tpu.memory_space<vmem>>, vector<32x128xf32>
    tpu.vector_store %arg3[%c40, %c0_40], %60 {strides = array<i32>} : memref<72x128xf32, #tpu.memory_space<vmem>>, vector<32x128xf32>,
    return
  }
  func.func @transform_0(%arg0: i32) -> (i32, i32) {
    %c0_i32 = arith.constant 0 : i32
    %c0_i32_0 = arith.constant 0 : i32
    return %c0_i32, %arg0 : i32, i32
  }
  func.func @transform_1(%arg0: i32) -> (i32, i32) {
    %c0_i32 = arith.constant 0 : i32
    %c0_i32_0 = arith.constant 0 : i32
    %c0_i32_1 = arith.constant 0 : i32
    return %c0_i32, %c0_i32_0 : i32, i32
  }
  func.func @transform_2(%arg0: i32) -> (i32, i32) {
    %c0_i32 = arith.constant 0 : i32
    %c0_i32_0 = arith.constant 0 : i32
    return %c0_i32, %arg0 : i32, i32
  }
}

</mosaic_0001>

<llo_original>
// kernel: mcvae_forward.1
$region0: #{mcvae_forward.1}
  #allocation0 [shape = 'u32[]', space=smem, size = 0x4, offset = 0x4, fixed_abs, tag = 'smem constant byte address 0x4 - core index']
  #allocation1 [shape = 'u32[144,128]{1,0:T(1,128)}', space=vmem, size = 0x12000, scoped, tag = 'internal scratch']
  %s0 = inlined_call_operand.vmem [shape: f32[88,256], index: 0, kind: input, shape index: {}]
  %s1 = inlined_call_operand.vmem [shape: f32[384,128], index: 1, kind: input, shape index: {}]
  %s2 = inlined_call_operand.vmem [shape: f32[72,256], index: 2, kind: output, shape index: {}]
  %s3 = sld [smem:[#allocation0]]
  $region113: #{mcvae_forward.1} parent=0
    _
  %s5 = ssub.s32 1, %s3
  %s6 = scalar_select 0, %s5, %s3
  $region1: #{mcvae_forward.1} parent=0
    #allocation2 [shape = 'u8[90112]{0}', space=vmem, size = 0x16000, scoped, tag = 'input window, operand 0']
    #allocation3 [shape = 'u8[73728]{0}', space=vmem, size = 0x12000, scoped, tag = 'output window, operand 0']
    loop: start=0, step=1, limit=4
    $region2: #{mcvae_forward.1} parent=1 // loop_pre_header
      _
    $region3: #{mcvae_forward.1} parent=1 // loop_header
      %s8 = sphi 0, %s12
      %p9 = scmp.ge.s32.totalorder %s8, 4
      %s18 = sphi 0, %s20
      %s21 = sphi 0, %s18
      %s22 = sphi 0, %s21
      %s38 = sphi 0, %s22
      %s42 = sphi 0, %s42
      %s44 = sphi 0, %s42
      %s45 = sphi 0, %s44
      %s59 = sphi 0, %s45
      %s65 = sphi 0, %s67
      %s68 = sphi 0, %s65
      %s69 = sphi 0, %s68
      %s85 = sphi 0, %s69
    $region4: #{mcvae_forward.1} parent=1 // loop_header_branch
      %11 = sbr.rel (%p9) target = $region8
    $region5: #{mcvae_forward.1} parent=1 // loop_body
      %s13 = ssub.s32 %s8, 1
      %s14 = ssub.s32 %s8, 2
      %s15 = sadd.s32 %s8, 1
      %s16 = ssub.s32 %s8, %s15
      %p17 = scmp.eq.s32.totalorder %s16, 0
      %s19 = sadd.s32 %s18, 1
      %s20 = scalar_select %p17, %s18, %s19
      %p23 = pneg %p17
      %p24 = scmp.eq.s32.totalorder %s8, 1
      %p25 = por %p23, %p24
      %p26 = scmp.ne.s32.totalorder %s18, %s21
      %p27 = scmp.eq.s32.totalorder %s8, 0
      %p28 = por %p26, %p27
      %p29 = scmp.ne.s32.totalorder %s18, %s21
      %p30 = scmp.eq.s32.totalorder %s13, 1
      %p31 = por %p29, %p30
      %p32 = scmp.ne.s32.totalorder %s21, %s22
      %p33 = scmp.eq.s32.totalorder %s13, 0
      %p34 = por %p32, %p33
      %p35 = scmp.ne.s32.totalorder %s21, %s22
      %p36 = scmp.eq.s32.totalorder %s14, 1
      %p37 = por %p35, %p36
      %p39 = scmp.ne.s32.totalorder %s22, %s38
      %p40 = scmp.eq.s32.totalorder %s14, 0
      %p41 = por %p39, %p40
      %s43 = sadd.s32 %s42, 1
      %p46 = scmp.eq.s32.totalorder %s8, 1
      %p47 = scmp.ne.s32.totalorder %s42, %s44
      %p48 = scmp.eq.s32.totalorder %s8, 0
      %p49 = por %p47, %p48
      %p50 = scmp.ne.s32.totalorder %s42, %s44
      %p51 = scmp.eq.s32.totalorder %s13, 1
      %p52 = por %p50, %p51
      %p53 = scmp.ne.s32.totalorder %s44, %s45
      %p54 = scmp.eq.s32.totalorder %s13, 0
      %p55 = por %p53, %p54
      %p56 = scmp.ne.s32.totalorder %s44, %s45
      %p57 = scmp.eq.s32.totalorder %s14, 1
      %p58 = por %p56, %p57
      %p60 = scmp.ne.s32.totalorder %s45, %s59
      %p61 = scmp.eq.s32.totalorder %s14, 0
      %p62 = por %p60, %p61
      %s63 = ssub.s32 %s8, %s15
      %p64 = scmp.eq.s32.totalorder %s63, 0
      %s66 = sadd.s32 %s65, 1
      %s67 = scalar_select %p64, %s65, %s66
      %p70 = pneg %p64
      %p71 = scmp.eq.s32.totalorder %s8, 1
      %p72 = por %p70, %p71
      %p73 = scmp.ne.s32.totalorder %s65, %s68
      %p74 = scmp.eq.s32.totalorder %s8, 0
      %p75 = por %p73, %p74
      %p76 = scmp.ne.s32.totalorder %s65, %s68
      %p77 = scmp.eq.s32.totalorder %s13, 1
      %p78 = por %p76, %p77
      %p79 = scmp.ne.s32.totalorder %s68, %s69
      %p80 = scmp.eq.s32.totalorder %s13, 0
      %p81 = por %p79, %p80
      %p82 = scmp.ne.s32.totalorder %s68, %s69
      %p83 = scmp.eq.s32.totalorder %s14, 1
      %p84 = por %p82, %p83
      %p86 = scmp.ne.s32.totalorder %s69, %s85
      %p87 = scmp.eq.s32.totalorder %s14, 0
      %p88 = por %p86, %p87
      %p89 = scmp.le.s32.totalorder 1, %s8
      %p90 = scmp.lt.s32.totalorder %s8, 3
      %p91 = pnand %p89, %p90
      %p92 = pneg %p91
      // Predicated region
      $region9: #{mcvae_forward.1} parent=5 // pred_check
        _
      $region10: #{mcvae_forward.1} parent=5 // pred_check_branch
        %94 = sbr.rel (%p91) target = $region12
      $region11: #{mcvae_forward.1} parent=5 // pred_region
        %s95 = ssub.s32 %s8, 1
        // Predicated region
        $region13: #{mcvae_forward.1} parent=11 // pred_check
          %p96 = pneg %p55
        $region14: #{mcvae_forward.1} parent=11 // pred_check_branch
          %98 = sbr.rel (%p96) target = $region16
        $region15: #{mcvae_forward.1} parent=11 // pred_region
          _
        $region16: #{mcvae_forward.1} parent=11 // pred_fallthru
          _
      $region12: #{mcvae_forward.1} parent=5 // pred_fallthru
        _
      %p99 = scmp.lt.s32.totalorder %s8, 2
      // Predicated region
      $region17: #{mcvae_forward.1} parent=5 // pred_check
        %p100 = pneg %p99
      $region18: #{mcvae_forward.1} parent=5 // pred_check_branch
        %102 = sbr.rel (%p100) target = $region20
      $region19: #{mcvae_forward.1} parent=5 // pred_region
        // Predicated region
        $region21: #{mcvae_forward.1} parent=19 // pred_check
          %p103 = pneg %p28
        $region22: #{mcvae_forward.1} parent=19 // pred_check_branch
          %105 = sbr.rel (%p103) target = $region24
        $region23: #{mcvae_forward.1} parent=19 // pred_region
          %s106 = sand.u32 %s18, 1
          %s107 = sand.u32 %s18, 1
          %s108 = smul.addr %s107, 88
          %s109 = scalar_lea.vmem [#allocation2], %s108
          %s110 = smul.addr %s8, 8
          %s111 = scalar_lea.vmem %s0, %s110
          // Predicated region
          $region25: #{mcvae_forward.1} parent=23 // pred_check
            _
          $region26: #{mcvae_forward.1} parent=23 // pred_check_branch
            %113 = sbr.rel (0) target = $region28
          $region27: #{mcvae_forward.1} parent=23 // pred_region
            // Predicated region
            $region29: #{mcvae_forward.1} parent=27 // pred_check
              _
            $region30: #{mcvae_forward.1} parent=27 // pred_check_branch
              %115 = sbr.rel (0) target = $region32
            $region31: #{mcvae_forward.1} parent=27 // pred_region
              // Predicated region
              $region44: #{mcvae_forward.1} parent=31 // pred_check
                _
              $region45: #{mcvae_forward.1} parent=31 // pred_check_branch
                %150 = sbr.rel (0) target = $region47
              $region46: #{mcvae_forward.1} parent=31 // pred_region
                loop: start=0, step=1, limit=1
                $region48: #{mcvae_forward.1} parent=46 // loop_pre_header
                  _
                $region49: #{mcvae_forward.1} parent=46 // loop_header
                  %s152 = sphi 0, %s156
                  %p153 = scmp.ge.s32.totalorder %s152, 1
                  %s157 = sphi %s111, %s111
                  %s158 = sphi %s109, %s109
                $region50: #{mcvae_forward.1} parent=46 // loop_header_branch
                  %155 = sbr.rel (%p153) target = $region54
                $region51: #{mcvae_forward.1} parent=46 // loop_body
                  %v159 = vld [vmem:[%s157] sm:$0xff]
                  %160 = vst [vmem:[%s158] sm:$0xff] %v159
                  %v161 = vld [vmem:[%s157 + $0x10] sm:$0xff]
                  %162 = vst [vmem:[%s158 + $0x8] sm:$0xff] %v161
                  %v163 = vld [vmem:[%s157 + $0x20] sm:$0xff]
                  %164 = vst [vmem:[%s158 + $0x10] sm:$0xff] %v163
                  %v165 = vld [vmem:[%s157 + $0x30] sm:$0xff]
                  %166 = vst [vmem:[%s158 + $0x18] sm:$0xff] %v165
                  %v167 = vld [vmem:[%s157 + $0x40] sm:$0xff]
                  %168 = vst [vmem:[%s158 + $0x20] sm:$0xff] %v167
                  %v169 = vld [vmem:[%s157 + $0x50] sm:$0xff]
                  %170 = vst [vmem:[%s158 + $0x28] sm:$0xff] %v169
                  %v171 = vld [vmem:[%s157 + $0x60] sm:$0xff]
                  %172 = vst [vmem:[%s158 + $0x30] sm:$0xff] %v171
                  %v173 = vld [vmem:[%s157 + $0x70] sm:$0xff]
                  %174 = vst [vmem:[%s158 + $0x38] sm:$0xff] %v173
                  %v175 = vld [vmem:[%s157 + $0x80] sm:$0xff]
                  %176 = vst [vmem:[%s158 + $0x40] sm:$0xff] %v175
                  %v177 = vld [vmem:[%s157 + $0x90] sm:$0xff]
                  %178 = vst [vmem:[%s158 + $0x48] sm:$0xff] %v177
                  %v179 = vld [vmem:[%s157 + $0xa0] sm:$0xff]
                  %180 = vst [vmem:[%s158 + $0x50] sm:$0xff] %v179
                $region52: #{mcvae_forward.1} parent=46 // loop_footer
                  %s156 = sadd.s32 1, %s152
                $region53: #{mcvae_forward.1} parent=46 // loop_footer_branch
                  %151 = sbr.rel target = $region49
                $region54: #{mcvae_forward.1} parent=46 // loop_exit
                  _
              $region47: #{mcvae_forward.1} parent=31 // pred_fallthru
                _
              // Predicated region
              $region55: #{mcvae_forward.1} parent=31 // pred_check
                _
              $region56: #{mcvae_forward.1} parent=31 // pred_check_branch
                %182 = sbr.rel target = $region58
              $region57: #{mcvae_forward.1} parent=31 // pred_region
                _
              $region58: #{mcvae_forward.1} parent=31 // pred_fallthru
                _
            $region32: #{mcvae_forward.1} parent=27 // pred_fallthru
              _
            // Predicated region
            $region33: #{mcvae_forward.1} parent=27 // pred_check
              _
            $region34: #{mcvae_forward.1} parent=27 // pred_check_branch
              %117 = sbr.rel target = $region36
            $region35: #{mcvae_forward.1} parent=27 // pred_region
              loop: start=0, step=1, limit=1
              $region37: #{mcvae_forward.1} parent=35 // loop_pre_header
                _
              $region38: #{mcvae_forward.1} parent=35 // loop_header
                %s120 = sphi 0, %s124
                %p121 = scmp.ge.s32.totalorder %s120, 1
                %s125 = sphi %s111, %s111
                %s126 = sphi %s109, %s109
              $region39: #{mcvae_forward.1} parent=35 // loop_header_branch
                %123 = sbr.rel (%p121) target = $region43
              $region40: #{mcvae_forward.1} parent=35 // loop_body
                %v127 = vld [vmem:[%s125] sm:$0xff]
                %128 = vst [vmem:[%s126] sm:$0xff] %v127
                %v129 = vld [vmem:[%s125 + $0x10] sm:$0xff]
                %130 = vst [vmem:[%s126 + $0x8] sm:$0xff] %v129
                %v131 = vld [vmem:[%s125 + $0x20] sm:$0xff]
                %132 = vst [vmem:[%s126 + $0x10] sm:$0xff] %v131
                %v133 = vld [vmem:[%s125 + $0x30] sm:$0xff]
                %134 = vst [vmem:[%s126 + $0x18] sm:$0xff] %v133
                %v135 = vld [vmem:[%s125 + $0x40] sm:$0xff]
                %136 = vst [vmem:[%s126 + $0x20] sm:$0xff] %v135
                %v137 = vld [vmem:[%s125 + $0x50] sm:$0xff]
                %138 = vst [vmem:[%s126 + $0x28] sm:$0xff] %v137
                %v139 = vld [vmem:[%s125 + $0x60] sm:$0xff]
                %140 = vst [vmem:[%s126 + $0x30] sm:$0xff] %v139
                %v141 = vld [vmem:[%s125 + $0x70] sm:$0xff]
                %142 = vst [vmem:[%s126 + $0x38] sm:$0xff] %v141
                %v143 = vld [vmem:[%s125 + $0x80] sm:$0xff]
                %144 = vst [vmem:[%s126 + $0x40] sm:$0xff] %v143
                %v145 = vld [vmem:[%s125 + $0x90] sm:$0xff]
                %146 = vst [vmem:[%s126 + $0x48] sm:$0xff] %v145
                %v147 = vld [vmem:[%s125 + $0xa0] sm:$0xff]
                %148 = vst [vmem:[%s126 + $0x50] sm:$0xff] %v147
              $region41: #{mcvae_forward.1} parent=35 // loop_footer
                %s124 = sadd.s32 1, %s120
              $region42: #{mcvae_forward.1} parent=35 // loop_footer_branch
                %119 = sbr.rel target = $region38
              $region43: #{mcvae_forward.1} parent=35 // loop_exit
                _
            $region36: #{mcvae_forward.1} parent=27 // pred_fallthru
              _
          $region28: #{mcvae_forward.1} parent=23 // pred_fallthru
            _
          %183 = vnop
        $region24: #{mcvae_forward.1} parent=19 // pred_fallthru
          _
      $region20: #{mcvae_forward.1} parent=5 // pred_fallthru
        _
      %p184 = scmp.le.s32.totalorder 1, %s8
      %p185 = scmp.lt.s32.totalorder %s8, 3
      %p186 = pnand %p184, %p185
      %p187 = pneg %p186
      // Predicated region
      $region59: #{mcvae_forward.1} parent=5 // pred_check
        _
      $region60: #{mcvae_forward.1} parent=5 // pred_check_branch
        %189 = sbr.rel (%p186) target = $region62
      $region61: #{mcvae_forward.1} parent=5 // pred_region
        %s190 = ssub.s32 %s8, 1
        %s191 = sand.u32 %s21, 1
        %s192 = sand.u32 %s21, 1
        %s193 = smul.addr %s192, 88
        %s194 = scalar_lea.vmem [#allocation2], %s193
        // Predicated region
        $region63: #{mcvae_forward.1} parent=61 // pred_check
          %p195 = pneg %p34
        $region64: #{mcvae_forward.1} parent=61 // pred_check_branch
          %197 = sbr.rel (%p195) target = $region66
        $region65: #{mcvae_forward.1} parent=61 // pred_region
          _
        $region66: #{mcvae_forward.1} parent=61 // pred_fallthru
          _
        %s198 = sand.u32 %s21, 1
        %s199 = sand.u32 %s21, 1
        %s200 = smul.addr %s199, 88
        %s201 = scalar_lea.vmem [#allocation2], %s200
        %p202 = pneg %p34
        %p203 = pneg %p31
        %p204 = pneg %p55
        %p205 = pneg %p52
        %p206 = pneg %p81
        %p207 = pneg %p78
        %s208 = sand.u32 %s68, 1
        %s209 = sand.u32 %s68, 1
        %s210 = smul.addr %s209, 72
        %s211 = scalar_lea.vmem [#allocation3], %s210
        %v212 = vld [vmem:[%s194] sm:$0xff]
        %v213 = vld [vmem:[%s194 + $0x8] sm:$0xff]
        %v214 = vld [vmem:[%s194 + $0x10] sm:$0xff]
        %v215 = vld [vmem:[%s194 + $0x18] sm:$0xff]
        %v216 = vld [vmem:[%s194 + $0x20] sm:$0xff]
        %v217 = vld [vmem:[%s194 + $0x28] sm:$0xff]
        %v218 = vld [vmem:[%s194 + $0x30] sm:$0xff]
        %v219 = vld [vmem:[%s194 + $0x38] sm:$0xff]
        %v220 = vld [vmem:[%s194 + $0x40] sm:$0xff]
        %v221 = vld [vmem:[%s194 + $0x48] sm:$0xff]
        %v222 = vmul.f32 %v216, %v219
        %v223 = vmul.f32 %v217, %v220
        %v224 = vmul.f32 %v218, %v221
        %v225 = vld [vmem:[%s194 + $0x50] sm:$0xff]
        %v226 = vld [vmem:[%s1] sm:$0xff]
        %v227 = vld [vmem:[%s1 + $0x8] sm:$0xff]
        %v228 = vld [vmem:[%s1 + $0x10] sm:$0xff]
        %v229 = vld [vmem:[%s1 + $0x18] sm:$0xff]
        %v230 = vld [vmem:[%s1 + $0x20] sm:$0xff]
        %v231 = vld [vmem:[%s1 + $0x28] sm:$0xff]
        %v232 = vld [vmem:[%s1 + $0x30] sm:$0xff]
        %v233 = vld [vmem:[%s1 + $0x38] sm:$0xff]
        %v234 = vld [vmem:[%s1 + $0x140] sm:$0xff]
        %v235 = vld [vmem:[%s1 + $0x148] sm:$0xff]
        %v236 = vld [vmem:[%s1 + $0x150] sm:$0xff]
        %v237 = vld [vmem:[%s1 + $0x158] sm:$0xff]
        %v238 = vld [vmem:[%s1 + $0x160] sm:$0xff]
        %v239 = vld [vmem:[%s1 + $0x168] sm:$0xff]
        %v240 = vld [vmem:[%s1 + $0x170] sm:$0xff]
        %v241 = vld [vmem:[%s1 + $0x178] sm:$0xff]
        %243 = vset.pattern.permute.xlu0 0
        %244 = vperm.xlu0 %243, %v234
        %v245 = vpop.permute.xlu0 %244
        %248 = vset.pattern.permute.xlu0 0
        %249 = vperm.xlu0 %248, %v235
        %v250 = vpop.permute.xlu0 %249
        %253 = vset.pattern.permute.xlu0 0
        %254 = vperm.xlu0 %253, %v236
        %v255 = vpop.permute.xlu0 %254
        %258 = vset.pattern.permute.xlu0 0
        %259 = vperm.xlu0 %258, %v237
        %v260 = vpop.permute.xlu0 %259
        %263 = vset.pattern.permute.xlu0 0
        %264 = vperm.xlu0 %263, %v238
        %v265 = vpop.permute.xlu0 %264
        %268 = vset.pattern.permute.xlu0 0
        %269 = vperm.xlu0 %268, %v239
        %v270 = vpop.permute.xlu0 %269
        %273 = vset.pattern.permute.xlu0 0
        %274 = vperm.xlu0 %273, %v240
        %v275 = vpop.permute.xlu0 %274
        %278 = vset.pattern.permute.xlu0 0
        %279 = vperm.xlu0 %278, %v241
        %v280 = vpop.permute.xlu0 %279
        %vm282 = vcmask 261120
        %v284 = vsel %vm282, %v226, 0
        %v287 = vsel %vm282, %v227, 0
        %v290 = vsel %vm282, %v228, 0
        %v293 = vsel %vm282, %v229, 0
        %v296 = vsel %vm282, %v230, 0
        %v299 = vsel %vm282, %v231, 0
        %v302 = vsel %vm282, %v232, 0
        %v305 = vsel %vm282, %v233, 0
        %307 = vmatprep.subr.mxu0 0.0
        %v308 = vand.u32 %v212, 4294901760
        %309 = vmatpush1.msra.mxu0 %v308
        %310 = vmatprep.subr.mxu0 0.0
        %v311 = vand.u32 %v213, 4294901760
        %312 = vmatpush1.msra.mxu0 %v311
        %313 = vmatprep.subr.mxu0 0.0
        %v314 = vand.u32 %v214, 4294901760
        %315 = vmatpush1.msra.mxu0 %v314
        %316 = vmatprep.subr.mxu0 0.0
        %v317 = vand.u32 %v215, 4294901760
        %318 = vmatpush1.msra.mxu0 %v317
        %319 = vmatprep.subr.mxu0 0.0
        %320 = vmatpush1.msra.mxu0 0.0
        %321 = vmatprep.subr.mxu0 0.0
        %322 = vmatpush1.msra.mxu0 0.0
        %323 = vmatprep.subr.mxu0 0.0
        %324 = vmatpush1.msra.mxu0 0.0
        %325 = vmatprep.subr.mxu0 0.0
        %326 = vmatpush1.msra.mxu0 0.0
        %327 = vmatprep.subr.mxu0 0.0
        %328 = vmatpush1.msra.mxu0 0.0
        %329 = vmatprep.subr.mxu0 0.0
        %330 = vmatpush1.msra.mxu0 0.0
        %331 = vmatprep.subr.mxu0 0.0
        %332 = vmatpush1.msra.mxu0 0.0
        %333 = vmatprep.subr.mxu0 0.0
        %334 = vmatpush1.msra.mxu0 0.0
        %335 = vmatprep.subr.mxu0 0.0
        %336 = vmatpush1.msra.mxu0 0.0
        %337 = vmatprep.subr.mxu0 0.0
        %338 = vmatpush1.msra.mxu0 0.0
        %339 = vmatprep.subr.mxu0 0.0
        %340 = vmatpush1.msra.mxu0 0.0
        %341 = vmatprep.subr.mxu0 0.0
        %342 = vmatpush1.msra.mxu0 0.0
        %343 = vmatprep.subr.mxu0 0.0
        %344 = vmatpush1.msra.mxu0 0.0
        %345 = vmatprep.subr.mxu0 0.0
        %346 = vmatpush1.msra.mxu0 0.0
        %347 = vmatprep.subr.mxu0 0.0
        %348 = vmatpush1.msra.mxu0 0.0
        %349 = vmatprep.subr.mxu0 0.0
        %350 = vmatpush1.msra.mxu0 0.0
        %351 = vmatprep.subr.mxu0 0.0
        %352 = vmatpush1.msra.mxu0 0.0
        %353 = vmatprep.subr.mxu0 0.0
        %354 = vmatpush1.msra.mxu0 0.0
        %355 = vmatprep.subr.mxu0 0.0
        %356 = vmatpush1.msra.mxu0 0.0
        %357 = vmatprep.subr.mxu0 0.0
        %358 = vmatpush1.msra.mxu0 0.0
        %359 = vmatprep.subr.mxu0 0.0
        %360 = vmatpush1.msra.mxu0 0.0
        %361 = vmatprep.subr.mxu0 0.0
        %362 = vmatpush1.msra.mxu0 0.0
        %363 = vmatprep.subr.mxu0 0.0
        %364 = vmatpush1.msra.mxu0 0.0
        %365 = vmatprep.subr.mxu0 0.0
        %366 = vmatpush1.msra.mxu0 0.0
        %367 = vmatprep.subr.mxu0 0.0
        %368 = vmatpush1.msra.mxu0 0.0
        %369 = vmatprep.subr.mxu0 0.0
        %370 = vmatpush1.msra.mxu0 0.0
        %371 = vmatprep.subr.mxu0 0.0
        %372 = vmatpush1.msra.mxu0 0.0
        %373 = vmatprep.subr.mxu0 0.0
        %374 = vmatpush1.msra.mxu0 0.0
        %375 = vmatprep.mubr.f32.mxu0 0.0
        %v376 = vand.u32 %v284, 4294901760
        %v377 = vsub.f32 %v284, %v376
        %v378 = vand.u32 %v377, 4294901760
        %v379 = vsub.f32 %v377, %v378
        %v380 = vand.u32 %v379, 4294901760
        %381 = vmatmul.mubr.f32.gmra.mrb[0].mxu0 %v380
        %v382 = vpop.f32.mrb[0].mxu0
        %v383 = vadd.f32 %v245, %v382
        %v384 = vpop.f32.mrb[0].mxu0
        %385 = vmatprep.mubr.f32.mxu0 0.0
        %v386 = vand.u32 %v287, 4294901760
        %v387 = vsub.f32 %v287, %v386
        %v388 = vand.u32 %v387, 4294901760
        %v389 = vsub.f32 %v387, %v388
        %v390 = vand.u32 %v389, 4294901760
        %391 = vmatmul.mubr.f32.gmra.mrb[0].mxu0 %v390
        %v392 = vpop.f32.mrb[0].mxu0
        %v393 = vadd.f32 %v250, %v392
        %v394 = vpop.f32.mrb[0].mxu0
        %395 = vmatprep.mubr.f32.mxu0 0.0
        %v396 = vand.u32 %v290, 4294901760
        %v397 = vsub.f32 %v290, %v396
        %v398 = vand.u32 %v397, 4294901760
        %v399 = vsub.f32 %v397, %v398
        %v400 = vand.u32 %v399, 4294901760
        %401 = vmatmul.mubr.f32.gmra.mrb[0].mxu0 %v400
        %v402 = vpop.f32.mrb[0].mxu0
        %v403 = vadd.f32 %v255, %v402
        %v404 = vpop.f32.mrb[0].mxu0
        %405 = vmatprep.mubr.f32.mxu0 0.0
        %v406 = vand.u32 %v293, 4294901760
        %v407 = vsub.f32 %v293, %v406
        %v408 = vand.u32 %v407, 4294901760
        %v409 = vsub.f32 %v407, %v408
        %v410 = vand.u32 %v409, 4294901760
        %411 = vmatmul.mubr.f32.gmra.mrb[0].mxu0 %v410
        %v412 = vpop.f32.mrb[0].mxu0
        %v413 = vadd.f32 %v260, %v412
        %v414 = vpop.f32.mrb[0].mxu0
        %415 = vmatprep.mubr.f32.mxu0 0.0
        %v416 = vand.u32 %v296, 4294901760
        %v417 = vsub.f32 %v296, %v416
        %v418 = vand.u32 %v417, 4294901760
        %v419 = vsub.f32 %v417, %v418
        %v420 = vand.u32 %v419, 4294901760
        %421 = vmatmul.mubr.f32.gmra.mrb[0].mxu0 %v420
        %v422 = vpop.f32.mrb[0].mxu0
        %v423 = vadd.f32 %v265, %v422
        %v424 = vpop.f32.mrb[0].mxu0
        %425 = vmatprep.mubr.f32.mxu0 0.0
        %v426 = vand.u32 %v299, 4294901760
        %v427 = vsub.f32 %v299, %v426
        %v428 = vand.u32 %v427, 4294901760
        %v429 = vsub.f32 %v427, %v428
        %v430 = vand.u32 %v429, 4294901760
        %431 = vmatmul.mubr.f32.gmra.mrb[0].mxu0 %v430
        %v432 = vpop.f32.mrb[0].mxu0
        %v433 = vadd.f32 %v270, %v432
        %v434 = vpop.f32.mrb[0].mxu0
        %435 = vmatprep.mubr.f32.mxu0 0.0
        %v436 = vand.u32 %v302, 4294901760
        %v437 = vsub.f32 %v302, %v436
        %v438 = vand.u32 %v437, 4294901760
        %v439 = vsub.f32 %v437, %v438
        %v440 = vand.u32 %v439, 4294901760
        %441 = vmatmul.mubr.f32.gmra.mrb[0].mxu0 %v440
        %v442 = vpop.f32.mrb[0].mxu0
        %v443 = vadd.f32 %v275, %v442
        %v444 = vpop.f32.mrb[0].mxu0
        %445 = vmatprep.mubr.f32.mxu0 0.0
        %v446 = vand.u32 %v305, 4294901760
        %v447 = vsub.f32 %v305, %v446
        %v448 = vand.u32 %v447, 4294901760
        %v449 = vsub.f32 %v447, %v448
        %v450 = vand.u32 %v449, 4294901760
        %451 = vmatmul.mubr.f32.gmra.mrb[0].mxu0 %v450
        %v452 = vpop.f32.mrb[0].mxu0
        %v453 = vadd.f32 %v280, %v452
        %v454 = vpop.f32.mrb[0].mxu0
        %455 = vdwg.mxu0
        %456 = vmatprep.subr.mxu0 0.0
        %v457 = vand.u32 %v212, 4294901760
        %v458 = vsub.f32 %v212, %v457
        %v459 = vand.u32 %v458, 4294901760
        %v460 = vsub.f32 %v458, %v459
        %v461 = vand.u32 %v460, 4294901760
        %462 = vmatpush1.msra.mxu0 %v461
        %463 = vmatprep.subr.mxu0 0.0
        %v464 = vand.u32 %v213, 4294901760
        %v465 = vsub.f32 %v213, %v464
        %v466 = vand.u32 %v465, 4294901760
        %v467 = vsub.f32 %v465, %v466
        %v468 = vand.u32 %v467, 4294901760
        %469 = vmatpush1.msra.mxu0 %v468
        %470 = vmatprep.subr.mxu0 0.0
        %v471 = vand.u32 %v214, 4294901760
        %v472 = vsub.f32 %v214, %v471
        %v473 = vand.u32 %v472, 4294901760
        %v474 = vsub.f32 %v472, %v473
        %v475 = vand.u32 %v474, 4294901760
        %476 = vmatpush1.msra.mxu0 %v475
        %477 = vmatprep.subr.mxu0 0.0
        %v478 = vand.u32 %v215, 4294901760
        %v479 = vsub.f32 %v215, %v478
        %v480 = vand.u32 %v479, 4294901760
        %v481 = vsub.f32 %v479, %v480
        %v482 = vand.u32 %v481, 4294901760
        %483 = vmatpush1.msra.mxu0 %v482
        %484 = vmatprep.subr.mxu0 0.0
        %485 = vmatpush1.msra.mxu0 0.0
        %486 = vmatprep.subr.mxu0 0.0
        %487 = vmatpush1.msra.mxu0 0.0
        %488 = vmatprep.subr.mxu0 0.0
        %489 = vmatpush1.msra.mxu0 0.0
        %490 = vmatprep.subr.mxu0 0.0
        %491 = vmatpush1.msra.mxu0 0.0
        %492 = vmatprep.subr.mxu0 0.0
        %493 = vmatpush1.msra.mxu0 0.0
        %494 = vmatprep.subr.mxu0 0.0
        %495 = vmatpush1.msra.mxu0 0.0
        %496 = vmatprep.subr.mxu0 0.0
        %497 = vmatpush1.msra.mxu0 0.0
        %498 = vmatprep.subr.mxu0 0.0
        %499 = vmatpush1.msra.mxu0 0.0
        %500 = vmatprep.subr.mxu0 0.0
        %501 = vmatpush1.msra.mxu0 0.0
        %502 = vmatprep.subr.mxu0 0.0
        %503 = vmatpush1.msra.mxu0 0.0
        %504 = vmatprep.subr.mxu0 0.0
        %505 = vmatpush1.msra.mxu0 0.0
        %506 = vmatprep.subr.mxu0 0.0
        %507 = vmatpush1.msra.mxu0 0.0
        %508 = vmatprep.subr.mxu0 0.0
        %509 = vmatpush1.msra.mxu0 0.0
        %510 = vmatprep.subr.mxu0 0.0
        %511 = vmatpush1.msra.mxu0 0.0
        %512 = vmatprep.subr.mxu0 0.0
        %513 = vmatpush1.msra.mxu0 0.0
        %514 = vmatprep.subr.mxu0 0.0
        %515 = vmatpush1.msra.mxu0 0.0
        %516 = vmatprep.subr.mxu0 0.0
        %517 = vmatpush1.msra.mxu0 0.0
        %518 = vmatprep.subr.mxu0 0.0
        %519 = vmatpush1.msra.mxu0 0.0
        %520 = vmatprep.subr.mxu0 0.0
        %521 = vmatpush1.msra.mxu0 0.0
        %522 = vmatprep.subr.mxu0 0.0
        %523 = vmatpush1.msra.mxu0 0.0
        %524 = vmatprep.subr.mxu0 0.0
        %525 = vmatpush1.msra.mxu0 0.0
        %526 = vmatprep.subr.mxu0 0.0
        %527 = vmatpush1.msra.mxu0 0.0
        %528 = vmatprep.subr.mxu0 0.0
        %529 = vmatpush1.msra.mxu0 0.0
        %530 = vmatprep.subr.mxu0 0.0
        %531 = vmatpush1.msra.mxu0 0.0
        %532 = vmatprep.subr.mxu0 0.0
        %533 = vmatpush1.msra.mxu0 0.0
        %534 = vmatprep.subr.mxu0 0.0
        %535 = vmatpush1.msra.mxu0 0.0
        %536 = vmatprep.subr.mxu0 0.0
        %537 = vmatpush1.msra.mxu0 0.0
        %538 = vmatprep.subr.mxu0 0.0
        %539 = vmatpush1.msra.mxu0 0.0
        %540 = vmatprep.mubr.f32.mxu0 0.0
        %v541 = vand.u32 %v284, 4294901760
        %542 = vmatmul.mubr.f32.gmra.mrb[0].mxu0 %v541
        %v543 = vpop.f32.mrb[0].mxu0
        %v544 = vadd.f32 %v383, %v543
        %v545 = vpop.f32.mrb[0].mxu0
        %546 = vmatprep.mubr.f32.mxu0 0.0
        %v547 = vand.u32 %v287, 4294901760
        %548 = vmatmul.mubr.f32.gmra.mrb[0].mxu0 %v547
        %v549 = vpop.f32.mrb[0].mxu0
        %v550 = vadd.f32 %v393, %v549
        %v551 = vpop.f32.mrb[0].mxu0
        %552 = vmatprep.mubr.f32.mxu0 0.0
        %v553 = vand.u32 %v290, 4294901760
        %554 = vmatmul.mubr.f32.gmra.mrb[0].mxu0 %v553
        %v555 = vpop.f32.mrb[0].mxu0
        %v556 = vadd.f32 %v403, %v555
        %v557 = vpop.f32.mrb[0].mxu0
        %558 = vmatprep.mubr.f32.mxu0 0.0
        %v559 = vand.u32 %v293, 4294901760
        %560 = vmatmul.mubr.f32.gmra.mrb[0].mxu0 %v559
        %v561 = vpop.f32.mrb[0].mxu0
        %v562 = vadd.f32 %v413, %v561
        %v563 = vpop.f32.mrb[0].mxu0
        %564 = vmatprep.mubr.f32.mxu0 0.0
        %v565 = vand.u32 %v296, 4294901760
        %566 = vmatmul.mubr.f32.gmra.mrb[0].mxu0 %v565
        %v567 = vpop.f32.mrb[0].mxu0
        %v568 = vadd.f32 %v423, %v567
        %v569 = vpop.f32.mrb[0].mxu0
        %570 = vmatprep.mubr.f32.mxu0 0.0
        %v571 = vand.u32 %v299, 4294901760
        %572 = vmatmul.mubr.f32.gmra.mrb[0].mxu0 %v571
        %v573 = vpop.f32.mrb[0].mxu0
        %v574 = vadd.f32 %v433, %v573
        %v575 = vpop.f32.mrb[0].mxu0
        %576 = vmatprep.mubr.f32.mxu0 0.0
        %v577 = vand.u32 %v302, 4294901760
        %578 = vmatmul.mubr.f32.gmra.mrb[0].mxu0 %v577
        %v579 = vpop.f32.mrb[0].mxu0
        %v580 = vadd.f32 %v443, %v579
        %v581 = vpop.f32.mrb[0].mxu0
        %582 = vmatprep.mubr.f32.mxu0 0.0
        %v583 = vand.u32 %v305, 4294901760
        %584 = vmatmul.mubr.f32.gmra.mrb[0].mxu0 %v583
        %v585 = vpop.f32.mrb[0].mxu0
        %v586 = vadd.f32 %v453, %v585
        %v587 = vpop.f32.mrb[0].mxu0
        %588 = vdwg.mxu0
        %589 = vmatprep.subr.mxu0 0.0
        %v590 = vand.u32 %v212, 4294901760
        %v591 = vsub.f32 %v212, %v590
        %592 = vmatpush1.msra.mxu0 %v591
        %593 = vmatprep.subr.mxu0 0.0
        %v594 = vand.u32 %v213, 4294901760
        %v595 = vsub.f32 %v213, %v594
        %596 = vmatpush1.msra.mxu0 %v595
        %597 = vmatprep.subr.mxu0 0.0
        %v598 = vand.u32 %v214, 4294901760
        %v599 = vsub.f32 %v214, %v598
        %600 = vmatpush1.msra.mxu0 %v599
        %601 = vmatprep.subr.mxu0 0.0
        %v602 = vand.u32 %v215, 4294901760
        %v603 = vsub.f32 %v215, %v602
        %604 = vmatpush1.msra.mxu0 %v603
        %605 = vmatprep.subr.mxu0 0.0
        %606 = vmatpush1.msra.mxu0 0.0
        %607 = vmatprep.subr.mxu0 0.0
        %608 = vmatpush1.msra.mxu0 0.0
        %609 = vmatprep.subr.mxu0 0.0
        %610 = vmatpush1.msra.mxu0 0.0
        %611 = vmatprep.subr.mxu0 0.0
        %612 = vmatpush1.msra.mxu0 0.0
        %613 = vmatprep.subr.mxu0 0.0
        %614 = vmatpush1.msra.mxu0 0.0
        %615 = vmatprep.subr.mxu0 0.0
        %616 = vmatpush1.msra.mxu0 0.0
        %617 = vmatprep.subr.mxu0 0.0
        %618 = vmatpush1.msra.mxu0 0.0
        %619 = vmatprep.subr.mxu0 0.0
        %620 = vmatpush1.msra.mxu0 0.0
        %621 = vmatprep.subr.mxu0 0.0
        %622 = vmatpush1.msra.mxu0 0.0
        %623 = vmatprep.subr.mxu0 0.0
        %624 = vmatpush1.msra.mxu0 0.0
        %625 = vmatprep.subr.mxu0 0.0
        %626 = vmatpush1.msra.mxu0 0.0
        %627 = vmatprep.subr.mxu0 0.0
        %628 = vmatpush1.msra.mxu0 0.0
        %629 = vmatprep.subr.mxu0 0.0
        %630 = vmatpush1.msra.mxu0 0.0
        %631 = vmatprep.subr.mxu0 0.0
        %632 = vmatpush1.msra.mxu0 0.0
        %633 = vmatprep.subr.mxu0 0.0
        %634 = vmatpush1.msra.mxu0 0.0
        %635 = vmatprep.subr.mxu0 0.0
        %636 = vmatpush1.msra.mxu0 0.0
        %637 = vmatprep.subr.mxu0 0.0
        %638 = vmatpush1.msra.mxu0 0.0
        %639 = vmatprep.subr.mxu0 0.0
        %640 = vmatpush1.msra.mxu0 0.0
        %641 = vmatprep.subr.mxu0 0.0
        %642 = vmatpush1.msra.mxu0 0.0
        %643 = vmatprep.subr.mxu0 0.0
        %644 = vmatpush1.msra.mxu0 0.0
        %645 = vmatprep.subr.mxu0 0.0
        %646 = vmatpush1.msra.mxu0 0.0
        %647 = vmatprep.subr.mxu0 0.0
        %648 = vmatpush1.msra.mxu0 0.0
        %649 = vmatprep.subr.mxu0 0.0
        %650 = vmatpush1.msra.mxu0 0.0
        %651 = vmatprep.subr.mxu0 0.0
        %652 = vmatpush1.msra.mxu0 0.0
        %653 = vmatprep.subr.mxu0 0.0
        %654 = vmatpush1.msra.mxu0 0.0
        %655 = vmatprep.subr.mxu0 0.0
        %656 = vmatpush1.msra.mxu0 0.0
        %657 = vmatprep.subr.mxu0 0.0
        %658 = vmatpush1.msra.mxu0 0.0
        %659 = vmatprep.subr.mxu0 0.0
        %660 = vmatpush1.msra.mxu0 0.0
        %661 = vmatprep.mubr.f32.mxu0 0.0
        %v662 = vand.u32 %v284, 4294901760
        %v663 = vsub.f32 %v284, %v662
        %664 = vmatmul.mubr.f32.gmra.mrb[0].mxu0 %v663
        %v665 = vpop.f32.mrb[0].mxu0
        %v666 = vadd.f32 %v544, %v665
        %v667 = vpop.f32.mrb[0].mxu0
        %668 = vmatprep.mubr.f32.mxu0 0.0
        %v669 = vand.u32 %v287, 4294901760
        %v670 = vsub.f32 %v287, %v669
        %671 = vmatmul.mubr.f32.gmra.mrb[0].mxu0 %v670
        %v672 = vpop.f32.mrb[0].mxu0
        %v673 = vadd.f32 %v550, %v672
        %v674 = vpop.f32.mrb[0].mxu0
        %675 = vmatprep.mubr.f32.mxu0 0.0
        %v676 = vand.u32 %v290, 4294901760
        %v677 = vsub.f32 %v290, %v676
        %678 = vmatmul.mubr.f32.gmra.mrb[0].mxu0 %v677
        %v679 = vpop.f32.mrb[0].mxu0
        %v680 = vadd.f32 %v556, %v679
        %v681 = vpop.f32.mrb[0].mxu0
        %682 = vmatprep.mubr.f32.mxu0 0.0
        %v683 = vand.u32 %v293, 4294901760
        %v684 = vsub.f32 %v293, %v683
        %685 = vmatmul.mubr.f32.gmra.mrb[0].mxu0 %v684
        %v686 = vpop.f32.mrb[0].mxu0
        %v687 = vadd.f32 %v562, %v686
        %v688 = vpop.f32.mrb[0].mxu0
        %689 = vmatprep.mubr.f32.mxu0 0.0
        %v690 = vand.u32 %v296, 4294901760
        %v691 = vsub.f32 %v296, %v690
        %692 = vmatmul.mubr.f32.gmra.mrb[0].mxu0 %v691
        %v693 = vpop.f32.mrb[0].mxu0
        %v694 = vadd.f32 %v568, %v693
        %v695 = vpop.f32.mrb[0].mxu0
        %696 = vmatprep.mubr.f32.mxu0 0.0
        %v697 = vand.u32 %v299, 4294901760
        %v698 = vsub.f32 %v299, %v697
        %699 = vmatmul.mubr.f32.gmra.mrb[0].mxu0 %v698
        %v700 = vpop.f32.mrb[0].mxu0
        %v701 = vadd.f32 %v574, %v700
        %v702 = vpop.f32.mrb[0].mxu0
        %703 = vmatprep.mubr.f32.mxu0 0.0
        %v704 = vand.u32 %v302, 4294901760
        %v705 = vsub.f32 %v302, %v704
        %706 = vmatmul.mubr.f32.gmra.mrb[0].mxu0 %v705
        %v707 = vpop.f32.mrb[0].mxu0
        %v708 = vadd.f32 %v580, %v707
        %v709 = vpop.f32.mrb[0].mxu0
        %710 = vmatprep.mubr.f32.mxu0 0.0
        %v711 = vand.u32 %v305, 4294901760
        %v712 = vsub.f32 %v305, %v711
        %713 = vmatmul.mubr.f32.gmra.mrb[0].mxu0 %v712
        %v714 = vpop.f32.mrb[0].mxu0
        %v715 = vadd.f32 %v586, %v714
        %v716 = vpop.f32.mrb[0].mxu0
        %717 = vdwg.mxu0
        %718 = vmatprep.subr.mxu0 0.0
        %v719 = vand.u32 %v212, 4294901760
        %720 = vmatpush1.msra.mxu0 %v719
        %721 = vmatprep.subr.mxu0 0.0
        %v722 = vand.u32 %v213, 4294901760
        %723 = vmatpush1.msra.mxu0 %v722
        %724 = vmatprep.subr.mxu0 0.0
        %v725 = vand.u32 %v214, 4294901760
        %726 = vmatpush1.msra.mxu0 %v725
        %727 = vmatprep.subr.mxu0 0.0
        %v728 = vand.u32 %v215, 4294901760
        %729 = vmatpush1.msra.mxu0 %v728
        %730 = vmatprep.subr.mxu0 0.0
        %731 = vmatpush1.msra.mxu0 0.0
        %732 = vmatprep.subr.mxu0 0.0
        %733 = vmatpush1.msra.mxu0 0.0
        %734 = vmatprep.subr.mxu0 0.0
        %735 = vmatpush1.msra.mxu0 0.0
        %736 = vmatprep.subr.mxu0 0.0
        %737 = vmatpush1.msra.mxu0 0.0
        %738 = vmatprep.subr.mxu0 0.0
        %739 = vmatpush1.msra.mxu0 0.0
        %740 = vmatprep.subr.mxu0 0.0
        %741 = vmatpush1.msra.mxu0 0.0
        %742 = vmatprep.subr.mxu0 0.0
        %743 = vmatpush1.msra.mxu0 0.0
        %744 = vmatprep.subr.mxu0 0.0
        %745 = vmatpush1.msra.mxu0 0.0
        %746 = vmatprep.subr.mxu0 0.0
        %747 = vmatpush1.msra.mxu0 0.0
        %748 = vmatprep.subr.mxu0 0.0
        %749 = vmatpush1.msra.mxu0 0.0
        %750 = vmatprep.subr.mxu0 0.0
        %751 = vmatpush1.msra.mxu0 0.0
        %752 = vmatprep.subr.mxu0 0.0
        %753 = vmatpush1.msra.mxu0 0.0
        %754 = vmatprep.subr.mxu0 0.0
        %755 = vmatpush1.msra.mxu0 0.0
        %756 = vmatprep.subr.mxu0 0.0
        %757 = vmatpush1.msra.mxu0 0.0
        %758 = vmatprep.subr.mxu0 0.0
        %759 = vmatpush1.msra.mxu0 0.0
        %760 = vmatprep.subr.mxu0 0.0
        %761 = vmatpush1.msra.mxu0 0.0
        %762 = vmatprep.subr.mxu0 0.0
        %763 = vmatpush1.msra.mxu0 0.0
        %764 = vmatprep.subr.mxu0 0.0
        %765 = vmatpush1.msra.mxu0 0.0
        %766 = vmatprep.subr.mxu0 0.0
        %767 = vmatpush1.msra.mxu0 0.0
        %768 = vmatprep.subr.mxu0 0.0
        %769 = vmatpush1.msra.mxu0 0.0
        %770 = vmatprep.subr.mxu0 0.0
        %771 = vmatpush1.msra.mxu0 0.0
        %772 = vmatprep.subr.mxu0 0.0
        %773 = vmatpush1.msra.mxu0 0.0
        %774 = vmatprep.subr.mxu0 0.0
        %775 = vmatpush1.msra.mxu0 0.0
        %776 = vmatprep.subr.mxu0 0.0
        %777 = vmatpush1.msra.mxu0 0.0
        %778 = vmatprep.subr.mxu0 0.0
        %779 = vmatpush1.msra.mxu0 0.0
        %780 = vmatprep.subr.mxu0 0.0
        %781 = vmatpush1.msra.mxu0 0.0
        %782 = vmatprep.subr.mxu0 0.0
        %783 = vmatpush1.msra.mxu0 0.0
        %784 = vmatprep.subr.mxu0 0.0
        %785 = vmatpush1.msra.mxu0 0.0
        %786 = vmatprep.mubr.f32.mxu0 0.0
        %v787 = vand.u32 %v284, 4294901760
        %v788 = vsub.f32 %v284, %v787
        %v789 = vand.u32 %v788, 4294901760
        %790 = vmatmul.mubr.f32.gmra.mrb[0].mxu0 %v789
        %v791 = vpop.f32.mrb[0].mxu0
        %v792 = vadd.f32 %v666, %v791
        %v793 = vpop.f32.mrb[0].mxu0
        %794 = vmatprep.mubr.f32.mxu0 0.0
        %v795 = vand.u32 %v287, 4294901760
        %v796 = vsub.f32 %v287, %v795
        %v797 = vand.u32 %v796, 4294901760
        %798 = vmatmul.mubr.f32.gmra.mrb[0].mxu0 %v797
        %v799 = vpop.f32.mrb[0].mxu0
        %v800 = vadd.f32 %v673, %v799
        %v801 = vpop.f32.mrb[0].mxu0
        %802 = vmatprep.mubr.f32.mxu0 0.0
        %v803 = vand.u32 %v290, 4294901760
        %v804 = vsub.f32 %v290, %v803
        %v805 = vand.u32 %v804, 4294901760
        %806 = vmatmul.mubr.f32.gmra.mrb[0].mxu0 %v805
        %v807 = vpop.f32.mrb[0].mxu0
        %v808 = vadd.f32 %v680, %v807
        %v809 = vpop.f32.mrb[0].mxu0
        %810 = vmatprep.mubr.f32.mxu0 0.0
        %v811 = vand.u32 %v293, 4294901760
        %v812 = vsub.f32 %v293, %v811
        %v813 = vand.u32 %v812, 4294901760
        %814 = vmatmul.mubr.f32.gmra.mrb[0].mxu0 %v813
        %v815 = vpop.f32.mrb[0].mxu0
        %v816 = vadd.f32 %v687, %v815
        %v817 = vpop.f32.mrb[0].mxu0
        %818 = vmatprep.mubr.f32.mxu0 0.0
        %v819 = vand.u32 %v296, 4294901760
        %v820 = vsub.f32 %v296, %v819
        %v821 = vand.u32 %v820, 4294901760
        %822 = vmatmul.mubr.f32.gmra.mrb[0].mxu0 %v821
        %v823 = vpop.f32.mrb[0].mxu0
        %v824 = vadd.f32 %v694, %v823
        %v825 = vpop.f32.mrb[0].mxu0
        %826 = vmatprep.mubr.f32.mxu0 0.0
        %v827 = vand.u32 %v299, 4294901760
        %v828 = vsub.f32 %v299, %v827
        %v829 = vand.u32 %v828, 4294901760
        %830 = vmatmul.mubr.f32.gmra.mrb[0].mxu0 %v829
        %v831 = vpop.f32.mrb[0].mxu0
        %v832 = vadd.f32 %v701, %v831
        %v833 = vpop.f32.mrb[0].mxu0
        %834 = vmatprep.mubr.f32.mxu0 0.0
        %v835 = vand.u32 %v302, 4294901760
        %v836 = vsub.f32 %v302, %v835
        %v837 = vand.u32 %v836, 4294901760
        %838 = vmatmul.mubr.f32.gmra.mrb[0].mxu0 %v837
        %v839 = vpop.f32.mrb[0].mxu0
        %v840 = vadd.f32 %v708, %v839
        %v841 = vpop.f32.mrb[0].mxu0
        %842 = vmatprep.mubr.f32.mxu0 0.0
        %v843 = vand.u32 %v305, 4294901760
        %v844 = vsub.f32 %v305, %v843
        %v845 = vand.u32 %v844, 4294901760
        %846 = vmatmul.mubr.f32.gmra.mrb[0].mxu0 %v845
        %v847 = vpop.f32.mrb[0].mxu0
        %v848 = vadd.f32 %v715, %v847
        %v849 = vpop.f32.mrb[0].mxu0
        %850 = vdwg.mxu0
        %851 = vmatprep.subr.mxu0 0.0
        %v852 = vand.u32 %v212, 4294901760
        %v853 = vsub.f32 %v212, %v852
        %v854 = vand.u32 %v853, 4294901760
        %855 = vmatpush1.msra.mxu0 %v854
        %856 = vmatprep.subr.mxu0 0.0
        %v857 = vand.u32 %v213, 4294901760
        %v858 = vsub.f32 %v213, %v857
        %v859 = vand.u32 %v858, 4294901760
        %860 = vmatpush1.msra.mxu0 %v859
        %861 = vmatprep.subr.mxu0 0.0
        %v862 = vand.u32 %v214, 4294901760
        %v863 = vsub.f32 %v214, %v862
        %v864 = vand.u32 %v863, 4294901760
        %865 = vmatpush1.msra.mxu0 %v864
        %866 = vmatprep.subr.mxu0 0.0
        %v867 = vand.u32 %v215, 4294901760
        %v868 = vsub.f32 %v215, %v867
        %v869 = vand.u32 %v868, 4294901760
        %870 = vmatpush1.msra.mxu0 %v869
        %871 = vmatprep.subr.mxu0 0.0
        %872 = vmatpush1.msra.mxu0 0.0
        %873 = vmatprep.subr.mxu0 0.0
        %874 = vmatpush1.msra.mxu0 0.0
        %875 = vmatprep.subr.mxu0 0.0
        %876 = vmatpush1.msra.mxu0 0.0
        %877 = vmatprep.subr.mxu0 0.0
        %878 = vmatpush1.msra.mxu0 0.0
        %879 = vmatprep.subr.mxu0 0.0
        %880 = vmatpush1.msra.mxu0 0.0
        %881 = vmatprep.subr.mxu0 0.0
        %882 = vmatpush1.msra.mxu0 0.0
        %883 = vmatprep.subr.mxu0 0.0
        %884 = vmatpush1.msra.mxu0 0.0
        %885 = vmatprep.subr.mxu0 0.0
        %886 = vmatpush1.msra.mxu0 0.0
        %887 = vmatprep.subr.mxu0 0.0
        %888 = vmatpush1.msra.mxu0 0.0
        %889 = vmatprep.subr.mxu0 0.0
        %890 = vmatpush1.msra.mxu0 0.0
        %891 = vmatprep.subr.mxu0 0.0
        %892 = vmatpush1.msra.mxu0 0.0
        %893 = vmatprep.subr.mxu0 0.0
        %894 = vmatpush1.msra.mxu0 0.0
        %895 = vmatprep.subr.mxu0 0.0
        %896 = vmatpush1.msra.mxu0 0.0
        %897 = vmatprep.subr.mxu0 0.0
        %898 = vmatpush1.msra.mxu0 0.0
        %899 = vmatprep.subr.mxu0 0.0
        %900 = vmatpush1.msra.mxu0 0.0
        %901 = vmatprep.subr.mxu0 0.0
        %902 = vmatpush1.msra.mxu0 0.0
        %903 = vmatprep.subr.mxu0 0.0
        %904 = vmatpush1.msra.mxu0 0.0
        %905 = vmatprep.subr.mxu0 0.0
        %906 = vmatpush1.msra.mxu0 0.0
        %907 = vmatprep.subr.mxu0 0.0
        %908 = vmatpush1.msra.mxu0 0.0
        %909 = vmatprep.subr.mxu0 0.0
        %910 = vmatpush1.msra.mxu0 0.0
        %911 = vmatprep.subr.mxu0 0.0
        %912 = vmatpush1.msra.mxu0 0.0
        %913 = vmatprep.subr.mxu0 0.0
        %914 = vmatpush1.msra.mxu0 0.0
        %915 = vmatprep.subr.mxu0 0.0
        %916 = vmatpush1.msra.mxu0 0.0
        %917 = vmatprep.subr.mxu0 0.0
        %918 = vmatpush1.msra.mxu0 0.0
        %919 = vmatprep.subr.mxu0 0.0
        %920 = vmatpush1.msra.mxu0 0.0
        %921 = vmatprep.subr.mxu0 0.0
        %922 = vmatpush1.msra.mxu0 0.0
        %923 = vmatprep.subr.mxu0 0.0
        %924 = vmatpush1.msra.mxu0 0.0
        %925 = vmatprep.subr.mxu0 0.0
        %926 = vmatpush1.msra.mxu0 0.0
        %927 = vmatprep.mubr.f32.mxu0 0.0
        %v928 = vand.u32 %v284, 4294901760
        %929 = vmatmul.mubr.f32.gmra.mrb[0].mxu0 %v928
        %v930 = vpop.f32.mrb[0].mxu0
        %v931 = vadd.f32 %v792, %v930
        %v932 = vpop.f32.mrb[0].mxu0
        %933 = vmatprep.mubr.f32.mxu0 0.0
        %v934 = vand.u32 %v287, 4294901760
        %935 = vmatmul.mubr.f32.gmra.mrb[0].mxu0 %v934
        %v936 = vpop.f32.mrb[0].mxu0
        %v937 = vadd.f32 %v800, %v936
        %v938 = vpop.f32.mrb[0].mxu0
        %939 = vmatprep.mubr.f32.mxu0 0.0
        %v940 = vand.u32 %v290, 4294901760
        %941 = vmatmul.mubr.f32.gmra.mrb[0].mxu0 %v940
        %v942 = vpop.f32.mrb[0].mxu0
        %v943 = vadd.f32 %v808, %v942
        %v944 = vpop.f32.mrb[0].mxu0
        %945 = vmatprep.mubr.f32.mxu0 0.0
        %v946 = vand.u32 %v293, 4294901760
        %947 = vmatmul.mubr.f32.gmra.mrb[0].mxu0 %v946
        %v948 = vpop.f32.mrb[0].mxu0
        %v949 = vadd.f32 %v816, %v948
        %v950 = vpop.f32.mrb[0].mxu0
        %951 = vmatprep.mubr.f32.mxu0 0.0
        %v952 = vand.u32 %v296, 4294901760
        %953 = vmatmul.mubr.f32.gmra.mrb[0].mxu0 %v952
        %v954 = vpop.f32.mrb[0].mxu0
        %v955 = vadd.f32 %v824, %v954
        %v956 = vpop.f32.mrb[0].mxu0
        %957 = vmatprep.mubr.f32.mxu0 0.0
        %v958 = vand.u32 %v299, 4294901760
        %959 = vmatmul.mubr.f32.gmra.mrb[0].mxu0 %v958
        %v960 = vpop.f32.mrb[0].mxu0
        %v961 = vadd.f32 %v832, %v960
        %v962 = vpop.f32.mrb[0].mxu0
        %963 = vmatprep.mubr.f32.mxu0 0.0
        %v964 = vand.u32 %v302, 4294901760
        %965 = vmatmul.mubr.f32.gmra.mrb[0].mxu0 %v964
        %v966 = vpop.f32.mrb[0].mxu0
        %v967 = vadd.f32 %v840, %v966
        %v968 = vpop.f32.mrb[0].mxu0
        %969 = vmatprep.mubr.f32.mxu0 0.0
        %v970 = vand.u32 %v305, 4294901760
        %971 = vmatmul.mubr.f32.gmra.mrb[0].mxu0 %v970
        %v972 = vpop.f32.mrb[0].mxu0
        %v973 = vadd.f32 %v848, %v972
        %v974 = vpop.f32.mrb[0].mxu0
        %975 = vdwg.mxu0
        %976 = vmatprep.subr.mxu0 0.0
        %v977 = vand.u32 %v212, 4294901760
        %978 = vmatpush1.msra.mxu0 %v977
        %979 = vmatprep.subr.mxu0 0.0
        %v980 = vand.u32 %v213, 4294901760
        %981 = vmatpush1.msra.mxu0 %v980
        %982 = vmatprep.subr.mxu0 0.0
        %v983 = vand.u32 %v214, 4294901760
        %984 = vmatpush1.msra.mxu0 %v983
        %985 = vmatprep.subr.mxu0 0.0
        %v986 = vand.u32 %v215, 4294901760
        %987 = vmatpush1.msra.mxu0 %v986
        %988 = vmatprep.subr.mxu0 0.0
        %989 = vmatpush1.msra.mxu0 0.0
        %990 = vmatprep.subr.mxu0 0.0
        %991 = vmatpush1.msra.mxu0 0.0
        %992 = vmatprep.subr.mxu0 0.0
        %993 = vmatpush1.msra.mxu0 0.0
        %994 = vmatprep.subr.mxu0 0.0
        %995 = vmatpush1.msra.mxu0 0.0
        %996 = vmatprep.subr.mxu0 0.0
        %997 = vmatpush1.msra.mxu0 0.0
        %998 = vmatprep.subr.mxu0 0.0
        %999 = vmatpush1.msra.mxu0 0.0
        %1000 = vmatprep.subr.mxu0 0.0
        %1001 = vmatpush1.msra.mxu0 0.0
        %1002 = vmatprep.subr.mxu0 0.0
        %1003 = vmatpush1.msra.mxu0 0.0
        %1004 = vmatprep.subr.mxu0 0.0
        %1005 = vmatpush1.msra.mxu0 0.0
        %1006 = vmatprep.subr.mxu0 0.0
        %1007 = vmatpush1.msra.mxu0 0.0
        %1008 = vmatprep.subr.mxu0 0.0
        %1009 = vmatpush1.msra.mxu0 0.0
        %1010 = vmatprep.subr.mxu0 0.0
        %1011 = vmatpush1.msra.mxu0 0.0
        %1012 = vmatprep.subr.mxu0 0.0
        %1013 = vmatpush1.msra.mxu0 0.0
        %1014 = vmatprep.subr.mxu0 0.0
        %1015 = vmatpush1.msra.mxu0 0.0
        %1016 = vmatprep.subr.mxu0 0.0
        %1017 = vmatpush1.msra.mxu0 0.0
        %1018 = vmatprep.subr.mxu0 0.0
        %1019 = vmatpush1.msra.mxu0 0.0
        %1020 = vmatprep.subr.mxu0 0.0
        %1021 = vmatpush1.msra.mxu0 0.0
        %1022 = vmatprep.subr.mxu0 0.0
        %1023 = vmatpush1.msra.mxu0 0.0
        %1024 = vmatprep.subr.mxu0 0.0
        %1025 = vmatpush1.msra.mxu0 0.0
        %1026 = vmatprep.subr.mxu0 0.0
        %1027 = vmatpush1.msra.mxu0 0.0
        %1028 = vmatprep.subr.mxu0 0.0
        %1029 = vmatpush1.msra.mxu0 0.0
        %1030 = vmatprep.subr.mxu0 0.0
        %1031 = vmatpush1.msra.mxu0 0.0
        %1032 = vmatprep.subr.mxu0 0.0
        %1033 = vmatpush1.msra.mxu0 0.0
        %1034 = vmatprep.subr.mxu0 0.0
        %1035 = vmatpush1.msra.mxu0 0.0
        %1036 = vmatprep.subr.mxu0 0.0
        %1037 = vmatpush1.msra.mxu0 0.0
        %1038 = vmatprep.subr.mxu0 0.0
        %1039 = vmatpush1.msra.mxu0 0.0
        %1040 = vmatprep.subr.mxu0 0.0
        %1041 = vmatpush1.msra.mxu0 0.0
        %1042 = vmatprep.subr.mxu0 0.0
        %1043 = vmatpush1.msra.mxu0 0.0
        %1044 = vmatprep.mubr.f32.mxu0 0.0
        %v1045 = vand.u32 %v284, 4294901760
        %1046 = vmatmul.mubr.f32.gmra.mrb[0].mxu0 %v1045
        %v1047 = vpop.f32.mrb[0].mxu0
        %v1048 = vadd.f32 %v931, %v1047
        %v1049 = vpop.f32.mrb[0].mxu0
        %1050 = vmatprep.mubr.f32.mxu0 0.0
        %v1051 = vand.u32 %v287, 4294901760
        %1052 = vmatmul.mubr.f32.gmra.mrb[0].mxu0 %v1051
        %v1053 = vpop.f32.mrb[0].mxu0
        %v1054 = vadd.f32 %v937, %v1053
        %v1055 = vpop.f32.mrb[0].mxu0
        %1056 = vmatprep.mubr.f32.mxu0 0.0
        %v1057 = vand.u32 %v290, 4294901760
        %1058 = vmatmul.mubr.f32.gmra.mrb[0].mxu0 %v1057
        %v1059 = vpop.f32.mrb[0].mxu0
        %v1060 = vadd.f32 %v943, %v1059
        %v1061 = vpop.f32.mrb[0].mxu0
        %1062 = vmatprep.mubr.f32.mxu0 0.0
        %v1063 = vand.u32 %v293, 4294901760
        %1064 = vmatmul.mubr.f32.gmra.mrb[0].mxu0 %v1063
        %v1065 = vpop.f32.mrb[0].mxu0
        %v1066 = vadd.f32 %v949, %v1065
        %v1067 = vpop.f32.mrb[0].mxu0
        %1068 = vmatprep.mubr.f32.mxu0 0.0
        %v1069 = vand.u32 %v296, 4294901760
        %1070 = vmatmul.mubr.f32.gmra.mrb[0].mxu0 %v1069
        %v1071 = vpop.f32.mrb[0].mxu0
        %v1072 = vadd.f32 %v955, %v1071
        %v1073 = vpop.f32.mrb[0].mxu0
        %1074 = vmatprep.mubr.f32.mxu0 0.0
        %v1075 = vand.u32 %v299, 4294901760
        %1076 = vmatmul.mubr.f32.gmra.mrb[0].mxu0 %v1075
        %v1077 = vpop.f32.mrb[0].mxu0
        %v1078 = vadd.f32 %v961, %v1077
        %v1079 = vpop.f32.mrb[0].mxu0
        %1080 = vmatprep.mubr.f32.mxu0 0.0
        %v1081 = vand.u32 %v302, 4294901760
        %1082 = vmatmul.mubr.f32.gmra.mrb[0].mxu0 %v1081
        %v1083 = vpop.f32.mrb[0].mxu0
        %v1084 = vadd.f32 %v967, %v1083
        %v1085 = vpop.f32.mrb[0].mxu0
        %1086 = vmatprep.mubr.f32.mxu0 0.0
        %v1087 = vand.u32 %v305, 4294901760
        %1088 = vmatmul.mubr.f32.gmra.mrb[0].mxu0 %v1087
        %v1089 = vpop.f32.mrb[0].mxu0
        %v1090 = vadd.f32 %v973, %v1089
        %v1091 = vpop.f32.mrb[0].mxu0
        %1092 = vdwg.mxu0
        %v1093 = vld [vmem:[%s1 + $0x40] sm:$0xff]
        %v1094 = vld [vmem:[%s1 + $0x48] sm:$0xff]
        %v1095 = vld [vmem:[%s1 + $0x140] sm:$0xff]
        %v1096 = vld [vmem:[%s1 + $0x148] sm:$0xff]
        %1098 = vset.pattern.permute.xlu0 1
        %1099 = vperm.xlu0 %1098, %v1095
        %v1100 = vpop.permute.xlu0 %1099
        %1103 = vset.pattern.permute.xlu0 1
        %1104 = vperm.xlu0 %1103, %v1096
        %v1105 = vpop.permute.xlu0 %1104
        %vm1107 = vcmask 195584
        %v1109 = vsel %vm1107, %v1093, 0
        %v1112 = vsel %vm1107, %v1094, 0
        %1114 = vmatprep.subr.mxu0 0.0
        %v1115 = vand.u32 %v222, 4294901760
        %1116 = vmatpush1.msra.mxu0 %v1115
        %1117 = vmatprep.subr.mxu0 0.0
        %v1118 = vand.u32 %v223, 4294901760
        %1119 = vmatpush1.msra.mxu0 %v1118
        %1120 = vmatprep.subr.mxu0 0.0
        %v1121 = vand.u32 %v224, 4294901760
        %1122 = vmatpush1.msra.mxu0 %v1121
        %1123 = vmatprep.subr.mxu0 0.0
        %1124 = vmatpush1.msra.mxu0 0.0
        %1125 = vmatprep.subr.mxu0 0.0
        %1126 = vmatpush1.msra.mxu0 0.0
        %1127 = vmatprep.subr.mxu0 0.0
        %1128 = vmatpush1.msra.mxu0 0.0
        %1129 = vmatprep.subr.mxu0 0.0
        %1130 = vmatpush1.msra.mxu0 0.0
        %1131 = vmatprep.subr.mxu0 0.0
        %1132 = vmatpush1.msra.mxu0 0.0
        %1133 = vmatprep.subr.mxu0 0.0
        %1134 = vmatpush1.msra.mxu0 0.0
        %1135 = vmatprep.subr.mxu0 0.0
        %1136 = vmatpush1.msra.mxu0 0.0
        %1137 = vmatprep.subr.mxu0 0.0
        %1138 = vmatpush1.msra.mxu0 0.0
        %1139 = vmatprep.subr.mxu0 0.0
        %1140 = vmatpush1.msra.mxu0 0.0
        %1141 = vmatprep.subr.mxu0 0.0
        %1142 = vmatpush1.msra.mxu0 0.0
        %1143 = vmatprep.subr.mxu0 0.0
        %1144 = vmatpush1.msra.mxu0 0.0
        %1145 = vmatprep.subr.mxu0 0.0
        %1146 = vmatpush1.msra.mxu0 0.0
        %1147 = vmatprep.subr.mxu0 0.0
        %1148 = vmatpush1.msra.mxu0 0.0
        %1149 = vmatprep.subr.mxu0 0.0
        %1150 = vmatpush1.msra.mxu0 0.0
        %1151 = vmatprep.subr.mxu0 0.0
        %1152 = vmatpush1.msra.mxu0 0.0
        %1153 = vmatprep.subr.mxu0 0.0
        %1154 = vmatpush1.msra.mxu0 0.0
        %1155 = vmatprep.subr.mxu0 0.0
        %1156 = vmatpush1.msra.mxu0 0.0
        %1157 = vmatprep.subr.mxu0 0.0
        %1158 = vmatpush1.msra.mxu0 0.0
        %1159 = vmatprep.subr.mxu0 0.0
        %1160 = vmatpush1.msra.mxu0 0.0
        %1161 = vmatprep.subr.mxu0 0.0
        %1162 = vmatpush1.msra.mxu0 0.0
        %1163 = vmatprep.subr.mxu0 0.0
        %1164 = vmatpush1.msra.mxu0 0.0
        %1165 = vmatprep.subr.mxu0 0.0
        %1166 = vmatpush1.msra.mxu0 0.0
        %1167 = vmatprep.subr.mxu0 0.0
        %1168 = vmatpush1.msra.mxu0 0.0
        %1169 = vmatprep.subr.mxu0 0.0
        %1170 = vmatpush1.msra.mxu0 0.0
        %1171 = vmatprep.subr.mxu0 0.0
        %1172 = vmatpush1.msra.mxu0 0.0
        %1173 = vmatprep.subr.mxu0 0.0
        %1174 = vmatpush1.msra.mxu0 0.0
        %1175 = vmatprep.subr.mxu0 0.0
        %1176 = vmatpush1.msra.mxu0 0.0
        %1177 = vmatprep.subr.mxu0 0.0
        %1178 = vmatpush1.msra.mxu0 0.0
        %1179 = vmatprep.subr.mxu0 0.0
        %1180 = vmatpush1.msra.mxu0 0.0
        %1181 = vmatprep.mubr.f32.mxu0 0.0
        %v1182 = vand.u32 %v1109, 4294901760
        %v1183 = vsub.f32 %v1109, %v1182
        %v1184 = vand.u32 %v1183, 4294901760
        %v1185 = vsub.f32 %v1183, %v1184
        %v1186 = vand.u32 %v1185, 4294901760
        %1187 = vmatmul.mubr.f32.gmra.mrb[0].mxu0 %v1186
        %v1188 = vpop.f32.mrb[0].mxu0
        %v1189 = vadd.f32 %v1100, %v1188
        %v1190 = vpop.f32.mrb[0].mxu0
        %1191 = vmatprep.mubr.f32.mxu0 0.0
        %v1192 = vand.u32 %v1112, 4294901760
        %v1193 = vsub.f32 %v1112, %v1192
        %v1194 = vand.u32 %v1193, 4294901760
        %v1195 = vsub.f32 %v1193, %v1194
        %v1196 = vand.u32 %v1195, 4294901760
        %1197 = vmatmul.mubr.f32.gmra.mrb[0].mxu0 %v1196
        %v1198 = vpop.f32.mrb[0].mxu0
        %v1199 = vadd.f32 %v1105, %v1198
        %v1200 = vpop.f32.mrb[0].mxu0
        %1201 = vdwg.mxu0
        %1202 = vmatprep.subr.mxu0 0.0
        %v1203 = vand.u32 %v222, 4294901760
        %v1204 = vsub.f32 %v222, %v1203
        %v1205 = vand.u32 %v1204, 4294901760
        %v1206 = vsub.f32 %v1204, %v1205
        %v1207 = vand.u32 %v1206, 4294901760
        %1208 = vmatpush1.msra.mxu0 %v1207
        %1209 = vmatprep.subr.mxu0 0.0
        %v1210 = vand.u32 %v223, 4294901760
        %v1211 = vsub.f32 %v223, %v1210
        %v1212 = vand.u32 %v1211, 4294901760
        %v1213 = vsub.f32 %v1211, %v1212
        %v1214 = vand.u32 %v1213, 4294901760
        %1215 = vmatpush1.msra.mxu0 %v1214
        %1216 = vmatprep.subr.mxu0 0.0
        %v1217 = vand.u32 %v224, 4294901760
        %v1218 = vsub.f32 %v224, %v1217
        %v1219 = vand.u32 %v1218, 4294901760
        %v1220 = vsub.f32 %v1218, %v1219
        %v1221 = vand.u32 %v1220, 4294901760
        %1222 = vmatpush1.msra.mxu0 %v1221
        %1223 = vmatprep.subr.mxu0 0.0
        %1224 = vmatpush1.msra.mxu0 0.0
        %1225 = vmatprep.subr.mxu0 0.0
        %1226 = vmatpush1.msra.mxu0 0.0
        %1227 = vmatprep.subr.mxu0 0.0
        %1228 = vmatpush1.msra.mxu0 0.0
        %1229 = vmatprep.subr.mxu0 0.0
        %1230 = vmatpush1.msra.mxu0 0.0
        %1231 = vmatprep.subr.mxu0 0.0
        %1232 = vmatpush1.msra.mxu0 0.0
        %1233 = vmatprep.subr.mxu0 0.0
        %1234 = vmatpush1.msra.mxu0 0.0
        %1235 = vmatprep.subr.mxu0 0.0
        %1236 = vmatpush1.msra.mxu0 0.0
        %1237 = vmatprep.subr.mxu0 0.0
        %1238 = vmatpush1.msra.mxu0 0.0
        %1239 = vmatprep.subr.mxu0 0.0
        %1240 = vmatpush1.msra.mxu0 0.0
        %1241 = vmatprep.subr.mxu0 0.0
        %1242 = vmatpush1.msra.mxu0 0.0
        %1243 = vmatprep.subr.mxu0 0.0
        %1244 = vmatpush1.msra.mxu0 0.0
        %1245 = vmatprep.subr.mxu0 0.0
        %1246 = vmatpush1.msra.mxu0 0.0
        %1247 = vmatprep.subr.mxu0 0.0
        %1248 = vmatpush1.msra.mxu0 0.0
        %1249 = vmatprep.subr.mxu0 0.0
        %1250 = vmatpush1.msra.mxu0 0.0
        %1251 = vmatprep.subr.mxu0 0.0
        %1252 = vmatpush1.msra.mxu0 0.0
        %1253 = vmatprep.subr.mxu0 0.0
        %1254 = vmatpush1.msra.mxu0 0.0
        %1255 = vmatprep.subr.mxu0 0.0
        %1256 = vmatpush1.msra.mxu0 0.0
        %1257 = vmatprep.subr.mxu0 0.0
        %1258 = vmatpush1.msra.mxu0 0.0
        %1259 = vmatprep.subr.mxu0 0.0
        %1260 = vmatpush1.msra.mxu0 0.0
        %1261 = vmatprep.subr.mxu0 0.0
        %1262 = vmatpush1.msra.mxu0 0.0
        %1263 = vmatprep.subr.mxu0 0.0
        %1264 = vmatpush1.msra.mxu0 0.0
        %1265 = vmatprep.subr.mxu0 0.0
        %1266 = vmatpush1.msra.mxu0 0.0
        %1267 = vmatprep.subr.mxu0 0.0
        %1268 = vmatpush1.msra.mxu0 0.0
        %1269 = vmatprep.subr.mxu0 0.0
        %1270 = vmatpush1.msra.mxu0 0.0
        %1271 = vmatprep.subr.mxu0 0.0
        %1272 = vmatpush1.msra.mxu0 0.0
        %1273 = vmatprep.subr.mxu0 0.0
        %1274 = vmatpush1.msra.mxu0 0.0
        %1275 = vmatprep.subr.mxu0 0.0
        %1276 = vmatpush1.msra.mxu0 0.0
        %1277 = vmatprep.subr.mxu0 0.0
        %1278 = vmatpush1.msra.mxu0 0.0
        %1279 = vmatprep.subr.mxu0 0.0
        %1280 = vmatpush1.msra.mxu0 0.0
        %1281 = vmatprep.mubr.f32.mxu0 0.0
        %v1282 = vand.u32 %v1109, 4294901760
        %1283 = vmatmul.mubr.f32.gmra.mrb[0].mxu0 %v1282
        %v1284 = vpop.f32.mrb[0].mxu0
        %v1285 = vadd.f32 %v1189, %v1284
        %v1286 = vpop.f32.mrb[0].mxu0
        %1287 = vmatprep.mubr.f32.mxu0 0.0
        %v1288 = vand.u32 %v1112, 4294901760
        %1289 = vmatmul.mubr.f32.gmra.mrb[0].mxu0 %v1288
        %v1290 = vpop.f32.mrb[0].mxu0
        %v1291 = vadd.f32 %v1199, %v1290
        %v1292 = vpop.f32.mrb[0].mxu0
        %1293 = vdwg.mxu0
        %1294 = vmatprep.subr.mxu0 0.0
        %v1295 = vand.u32 %v222, 4294901760
        %v1296 = vsub.f32 %v222, %v1295
        %1297 = vmatpush1.msra.mxu0 %v1296
        %1298 = vmatprep.subr.mxu0 0.0
        %v1299 = vand.u32 %v223, 4294901760
        %v1300 = vsub.f32 %v223, %v1299
        %1301 = vmatpush1.msra.mxu0 %v1300
        %1302 = vmatprep.subr.mxu0 0.0
        %v1303 = vand.u32 %v224, 4294901760
        %v1304 = vsub.f32 %v224, %v1303
        %1305 = vmatpush1.msra.mxu0 %v1304
        %1306 = vmatprep.subr.mxu0 0.0
        %1307 = vmatpush1.msra.mxu0 0.0
        %1308 = vmatprep.subr.mxu0 0.0
        %1309 = vmatpush1.msra.mxu0 0.0
        %1310 = vmatprep.subr.mxu0 0.0
        %1311 = vmatpush1.msra.mxu0 0.0
        %1312 = vmatprep.subr.mxu0 0.0
        %1313 = vmatpush1.msra.mxu0 0.0
        %1314 = vmatprep.subr.mxu0 0.0
        %1315 = vmatpush1.msra.mxu0 0.0
        %1316 = vmatprep.subr.mxu0 0.0
        %1317 = vmatpush1.msra.mxu0 0.0
        %1318 = vmatprep.subr.mxu0 0.0
        %1319 = vmatpush1.msra.mxu0 0.0
        %1320 = vmatprep.subr.mxu0 0.0
        %1321 = vmatpush1.msra.mxu0 0.0
        %1322 = vmatprep.subr.mxu0 0.0
        %1323 = vmatpush1.msra.mxu0 0.0
        %1324 = vmatprep.subr.mxu0 0.0
        %1325 = vmatpush1.msra.mxu0 0.0
        %1326 = vmatprep.subr.mxu0 0.0
        %1327 = vmatpush1.msra.mxu0 0.0
        %1328 = vmatprep.subr.mxu0 0.0
        %1329 = vmatpush1.msra.mxu0 0.0
        %1330 = vmatprep.subr.mxu0 0.0
        %1331 = vmatpush1.msra.mxu0 0.0
        %1332 = vmatprep.subr.mxu0 0.0
        %1333 = vmatpush1.msra.mxu0 0.0
        %1334 = vmatprep.subr.mxu0 0.0
        %1335 = vmatpush1.msra.mxu0 0.0
        %1336 = vmatprep.subr.mxu0 0.0
        %1337 = vmatpush1.msra.mxu0 0.0
        %1338 = vmatprep.subr.mxu0 0.0
        %1339 = vmatpush1.msra.mxu0 0.0
        %1340 = vmatprep.subr.mxu0 0.0
        %1341 = vmatpush1.msra.mxu0 0.0
        %1342 = vmatprep.subr.mxu0 0.0
        %1343 = vmatpush1.msra.mxu0 0.0
        %1344 = vmatprep.subr.mxu0 0.0
        %1345 = vmatpush1.msra.mxu0 0.0
        %1346 = vmatprep.subr.mxu0 0.0
        %1347 = vmatpush1.msra.mxu0 0.0
        %1348 = vmatprep.subr.mxu0 0.0
        %1349 = vmatpush1.msra.mxu0 0.0
        %1350 = vmatprep.subr.mxu0 0.0
        %1351 = vmatpush1.msra.mxu0 0.0
        %1352 = vmatprep.subr.mxu0 0.0
        %1353 = vmatpush1.msra.mxu0 0.0
        %1354 = vmatprep.subr.mxu0 0.0
        %1355 = vmatpush1.msra.mxu0 0.0
        %1356 = vmatprep.subr.mxu0 0.0
        %1357 = vmatpush1.msra.mxu0 0.0
        %1358 = vmatprep.subr.mxu0 0.0
        %1359 = vmatpush1.msra.mxu0 0.0
        %1360 = vmatprep.subr.mxu0 0.0
        %1361 = vmatpush1.msra.mxu0 0.0
        %1362 = vmatprep.subr.mxu0 0.0
        %1363 = vmatpush1.msra.mxu0 0.0
        %1364 = vmatprep.mubr.f32.mxu0 0.0
        %v1365 = vand.u32 %v1109, 4294901760
        %v1366 = vsub.f32 %v1109, %v1365
        %1367 = vmatmul.mubr.f32.gmra.mrb[0].mxu0 %v1366
        %v1368 = vpop.f32.mrb[0].mxu0
        %v1369 = vadd.f32 %v1285, %v1368
        %v1370 = vpop.f32.mrb[0].mxu0
        %1371 = vmatprep.mubr.f32.mxu0 0.0
        %v1372 = vand.u32 %v1112, 4294901760
        %v1373 = vsub.f32 %v1112, %v1372
        %1374 = vmatmul.mubr.f32.gmra.mrb[0].mxu0 %v1373
        %v1375 = vpop.f32.mrb[0].mxu0
        %v1376 = vadd.f32 %v1291, %v1375
        %v1377 = vpop.f32.mrb[0].mxu0
        %1378 = vdwg.mxu0
        %1379 = vmatprep.subr.mxu0 0.0
        %v1380 = vand.u32 %v222, 4294901760
        %1381 = vmatpush1.msra.mxu0 %v1380
        %1382 = vmatprep.subr.mxu0 0.0
        %v1383 = vand.u32 %v223, 4294901760
        %1384 = vmatpush1.msra.mxu0 %v1383
        %1385 = vmatprep.subr.mxu0 0.0
        %v1386 = vand.u32 %v224, 4294901760
        %1387 = vmatpush1.msra.mxu0 %v1386
        %1388 = vmatprep.subr.mxu0 0.0
        %1389 = vmatpush1.msra.mxu0 0.0
        %1390 = vmatprep.subr.mxu0 0.0
        %1391 = vmatpush1.msra.mxu0 0.0
        %1392 = vmatprep.subr.mxu0 0.0
        %1393 = vmatpush1.msra.mxu0 0.0
        %1394 = vmatprep.subr.mxu0 0.0
        %1395 = vmatpush1.msra.mxu0 0.0
        %1396 = vmatprep.subr.mxu0 0.0
        %1397 = vmatpush1.msra.mxu0 0.0
        %1398 = vmatprep.subr.mxu0 0.0
        %1399 = vmatpush1.msra.mxu0 0.0
        %1400 = vmatprep.subr.mxu0 0.0
        %1401 = vmatpush1.msra.mxu0 0.0
        %1402 = vmatprep.subr.mxu0 0.0
        %1403 = vmatpush1.msra.mxu0 0.0
        %1404 = vmatprep.subr.mxu0 0.0
        %1405 = vmatpush1.msra.mxu0 0.0
        %1406 = vmatprep.subr.mxu0 0.0
        %1407 = vmatpush1.msra.mxu0 0.0
        %1408 = vmatprep.subr.mxu0 0.0
        %1409 = vmatpush1.msra.mxu0 0.0
        %1410 = vmatprep.subr.mxu0 0.0
        %1411 = vmatpush1.msra.mxu0 0.0
        %1412 = vmatprep.subr.mxu0 0.0
        %1413 = vmatpush1.msra.mxu0 0.0
        %1414 = vmatprep.subr.mxu0 0.0
        %1415 = vmatpush1.msra.mxu0 0.0
        %1416 = vmatprep.subr.mxu0 0.0
        %1417 = vmatpush1.msra.mxu0 0.0
        %1418 = vmatprep.subr.mxu0 0.0
        %1419 = vmatpush1.msra.mxu0 0.0
        %1420 = vmatprep.subr.mxu0 0.0
        %1421 = vmatpush1.msra.mxu0 0.0
        %1422 = vmatprep.subr.mxu0 0.0
        %1423 = vmatpush1.msra.mxu0 0.0
        %1424 = vmatprep.subr.mxu0 0.0
        %1425 = vmatpush1.msra.mxu0 0.0
        %1426 = vmatprep.subr.mxu0 0.0
        %1427 = vmatpush1.msra.mxu0 0.0
        %1428 = vmatprep.subr.mxu0 0.0
        %1429 = vmatpush1.msra.mxu0 0.0
        %1430 = vmatprep.subr.mxu0 0.0
        %1431 = vmatpush1.msra.mxu0 0.0
        %1432 = vmatprep.subr.mxu0 0.0
        %1433 = vmatpush1.msra.mxu0 0.0
        %1434 = vmatprep.subr.mxu0 0.0
        %1435 = vmatpush1.msra.mxu0 0.0
        %1436 = vmatprep.subr.mxu0 0.0
        %1437 = vmatpush1.msra.mxu0 0.0
        %1438 = vmatprep.subr.mxu0 0.0
        %1439 = vmatpush1.msra.mxu0 0.0
        %1440 = vmatprep.subr.mxu0 0.0
        %1441 = vmatpush1.msra.mxu0 0.0
        %1442 = vmatprep.subr.mxu0 0.0
        %1443 = vmatpush1.msra.mxu0 0.0
        %1444 = vmatprep.subr.mxu0 0.0
        %1445 = vmatpush1.msra.mxu0 0.0
        %1446 = vmatprep.mubr.f32.mxu0 0.0
        %v1447 = vand.u32 %v1109, 4294901760
        %v1448 = vsub.f32 %v1109, %v1447
        %v1449 = vand.u32 %v1448, 4294901760
        %1450 = vmatmul.mubr.f32.gmra.mrb[0].mxu0 %v1449
        %v1451 = vpop.f32.mrb[0].mxu0
        %v1452 = vadd.f32 %v1369, %v1451
        %v1453 = vpop.f32.mrb[0].mxu0
        %1454 = vmatprep.mubr.f32.mxu0 0.0
        %v1455 = vand.u32 %v1112, 4294901760
        %v1456 = vsub.f32 %v1112, %v1455
        %v1457 = vand.u32 %v1456, 4294901760
        %1458 = vmatmul.mubr.f32.gmra.mrb[0].mxu0 %v1457
        %v1459 = vpop.f32.mrb[0].mxu0
        %v1460 = vadd.f32 %v1376, %v1459
        %v1461 = vpop.f32.mrb[0].mxu0
        %1462 = vdwg.mxu0
        %1463 = vmatprep.subr.mxu0 0.0
        %v1464 = vand.u32 %v222, 4294901760
        %v1465 = vsub.f32 %v222, %v1464
        %v1466 = vand.u32 %v1465, 4294901760
        %1467 = vmatpush1.msra.mxu0 %v1466
        %1468 = vmatprep.subr.mxu0 0.0
        %v1469 = vand.u32 %v223, 4294901760
        %v1470 = vsub.f32 %v223, %v1469
        %v1471 = vand.u32 %v1470, 4294901760
        %1472 = vmatpush1.msra.mxu0 %v1471
        %1473 = vmatprep.subr.mxu0 0.0
        %v1474 = vand.u32 %v224, 4294901760
        %v1475 = vsub.f32 %v224, %v1474
        %v1476 = vand.u32 %v1475, 4294901760
        %1477 = vmatpush1.msra.mxu0 %v1476
        %1478 = vmatprep.subr.mxu0 0.0
        %1479 = vmatpush1.msra.mxu0 0.0
        %1480 = vmatprep.subr.mxu0 0.0
        %1481 = vmatpush1.msra.mxu0 0.0
        %1482 = vmatprep.subr.mxu0 0.0
        %1483 = vmatpush1.msra.mxu0 0.0
        %1484 = vmatprep.subr.mxu0 0.0
        %1485 = vmatpush1.msra.mxu0 0.0
        %1486 = vmatprep.subr.mxu0 0.0
        %1487 = vmatpush1.msra.mxu0 0.0
        %1488 = vmatprep.subr.mxu0 0.0
        %1489 = vmatpush1.msra.mxu0 0.0
        %1490 = vmatprep.subr.mxu0 0.0
        %1491 = vmatpush1.msra.mxu0 0.0
        %1492 = vmatprep.subr.mxu0 0.0
        %1493 = vmatpush1.msra.mxu0 0.0
        %1494 = vmatprep.subr.mxu0 0.0
        %1495 = vmatpush1.msra.mxu0 0.0
        %1496 = vmatprep.subr.mxu0 0.0
        %1497 = vmatpush1.msra.mxu0 0.0
        %1498 = vmatprep.subr.mxu0 0.0
        %1499 = vmatpush1.msra.mxu0 0.0
        %1500 = vmatprep.subr.mxu0 0.0
        %1501 = vmatpush1.msra.mxu0 0.0
        %1502 = vmatprep.subr.mxu0 0.0
        %1503 = vmatpush1.msra.mxu0 0.0
        %1504 = vmatprep.subr.mxu0 0.0
        %1505 = vmatpush1.msra.mxu0 0.0
        %1506 = vmatprep.subr.mxu0 0.0
        %1507 = vmatpush1.msra.mxu0 0.0
        %1508 = vmatprep.subr.mxu0 0.0
        %1509 = vmatpush1.msra.mxu0 0.0
        %1510 = vmatprep.subr.mxu0 0.0
        %1511 = vmatpush1.msra.mxu0 0.0
        %1512 = vmatprep.subr.mxu0 0.0
        %1513 = vmatpush1.msra.mxu0 0.0
        %1514 = vmatprep.subr.mxu0 0.0
        %1515 = vmatpush1.msra.mxu0 0.0
        %1516 = vmatprep.subr.mxu0 0.0
        %1517 = vmatpush1.msra.mxu0 0.0
        %1518 = vmatprep.subr.mxu0 0.0
        %1519 = vmatpush1.msra.mxu0 0.0
        %1520 = vmatprep.subr.mxu0 0.0
        %1521 = vmatpush1.msra.mxu0 0.0
        %1522 = vmatprep.subr.mxu0 0.0
        %1523 = vmatpush1.msra.mxu0 0.0
        %1524 = vmatprep.subr.mxu0 0.0
        %1525 = vmatpush1.msra.mxu0 0.0
        %1526 = vmatprep.subr.mxu0 0.0
        %1527 = vmatpush1.msra.mxu0 0.0
        %1528 = vmatprep.subr.mxu0 0.0
        %1529 = vmatpush1.msra.mxu0 0.0
        %1530 = vmatprep.subr.mxu0 0.0
        %1531 = vmatpush1.msra.mxu0 0.0
        %1532 = vmatprep.subr.mxu0 0.0
        %1533 = vmatpush1.msra.mxu0 0.0
        %1534 = vmatprep.subr.mxu0 0.0
        %1535 = vmatpush1.msra.mxu0 0.0
        %1536 = vmatprep.mubr.f32.mxu0 0.0
        %v1537 = vand.u32 %v1109, 4294901760
        %1538 = vmatmul.mubr.f32.gmra.mrb[0].mxu0 %v1537
        %v1539 = vpop.f32.mrb[0].mxu0
        %v1540 = vadd.f32 %v1452, %v1539
        %v1541 = vpop.f32.mrb[0].mxu0
        %1542 = vmatprep.mubr.f32.mxu0 0.0
        %v1543 = vand.u32 %v1112, 4294901760
        %1544 = vmatmul.mubr.f32.gmra.mrb[0].mxu0 %v1543
        %v1545 = vpop.f32.mrb[0].mxu0
        %v1546 = vadd.f32 %v1460, %v1545
        %v1547 = vpop.f32.mrb[0].mxu0
        %1548 = vdwg.mxu0
        %1549 = vmatprep.subr.mxu0 0.0
        %v1550 = vand.u32 %v222, 4294901760
        %1551 = vmatpush1.msra.mxu0 %v1550
        %1552 = vmatprep.subr.mxu0 0.0
        %v1553 = vand.u32 %v223, 4294901760
        %1554 = vmatpush1.msra.mxu0 %v1553
        %1555 = vmatprep.subr.mxu0 0.0
        %v1556 = vand.u32 %v224, 4294901760
        %1557 = vmatpush1.msra.mxu0 %v1556
        %1558 = vmatprep.subr.mxu0 0.0
        %1559 = vmatpush1.msra.mxu0 0.0
        %1560 = vmatprep.subr.mxu0 0.0
        %1561 = vmatpush1.msra.mxu0 0.0
        %1562 = vmatprep.subr.mxu0 0.0
        %1563 = vmatpush1.msra.mxu0 0.0
        %1564 = vmatprep.subr.mxu0 0.0
        %1565 = vmatpush1.msra.mxu0 0.0
        %1566 = vmatprep.subr.mxu0 0.0
        %1567 = vmatpush1.msra.mxu0 0.0
        %1568 = vmatprep.subr.mxu0 0.0
        %1569 = vmatpush1.msra.mxu0 0.0
        %1570 = vmatprep.subr.mxu0 0.0
        %1571 = vmatpush1.msra.mxu0 0.0
        %1572 = vmatprep.subr.mxu0 0.0
        %1573 = vmatpush1.msra.mxu0 0.0
        %1574 = vmatprep.subr.mxu0 0.0
        %1575 = vmatpush1.msra.mxu0 0.0
        %1576 = vmatprep.subr.mxu0 0.0
        %1577 = vmatpush1.msra.mxu0 0.0
        %1578 = vmatprep.subr.mxu0 0.0
        %1579 = vmatpush1.msra.mxu0 0.0
        %1580 = vmatprep.subr.mxu0 0.0
        %1581 = vmatpush1.msra.mxu0 0.0
        %1582 = vmatprep.subr.mxu0 0.0
        %1583 = vmatpush1.msra.mxu0 0.0
        %1584 = vmatprep.subr.mxu0 0.0
        %1585 = vmatpush1.msra.mxu0 0.0
        %1586 = vmatprep.subr.mxu0 0.0
        %1587 = vmatpush1.msra.mxu0 0.0
        %1588 = vmatprep.subr.mxu0 0.0
        %1589 = vmatpush1.msra.mxu0 0.0
        %1590 = vmatprep.subr.mxu0 0.0
        %1591 = vmatpush1.msra.mxu0 0.0
        %1592 = vmatprep.subr.mxu0 0.0
        %1593 = vmatpush1.msra.mxu0 0.0
        %1594 = vmatprep.subr.mxu0 0.0
        %1595 = vmatpush1.msra.mxu0 0.0
        %1596 = vmatprep.subr.mxu0 0.0
        %1597 = vmatpush1.msra.mxu0 0.0
        %1598 = vmatprep.subr.mxu0 0.0
        %1599 = vmatpush1.msra.mxu0 0.0
        %1600 = vmatprep.subr.mxu0 0.0
        %1601 = vmatpush1.msra.mxu0 0.0
        %1602 = vmatprep.subr.mxu0 0.0
        %1603 = vmatpush1.msra.mxu0 0.0
        %1604 = vmatprep.subr.mxu0 0.0
        %1605 = vmatpush1.msra.mxu0 0.0
        %1606 = vmatprep.subr.mxu0 0.0
        %1607 = vmatpush1.msra.mxu0 0.0
        %1608 = vmatprep.subr.mxu0 0.0
        %1609 = vmatpush1.msra.mxu0 0.0
        %1610 = vmatprep.subr.mxu0 0.0
        %1611 = vmatpush1.msra.mxu0 0.0
        %1612 = vmatprep.subr.mxu0 0.0
        %1613 = vmatpush1.msra.mxu0 0.0
        %1614 = vmatprep.subr.mxu0 0.0
        %1615 = vmatpush1.msra.mxu0 0.0
        %1616 = vmatprep.mubr.f32.mxu0 0.0
        %v1617 = vand.u32 %v1109, 4294901760
        %1618 = vmatmul.mubr.f32.gmra.mrb[0].mxu0 %v1617
        %v1619 = vpop.f32.mrb[0].mxu0
        %v1620 = vadd.f32 %v1540, %v1619
        %v1621 = vpop.f32.mrb[0].mxu0
        %1622 = vmatprep.mubr.f32.mxu0 0.0
        %v1623 = vand.u32 %v1112, 4294901760
        %1624 = vmatmul.mubr.f32.gmra.mrb[0].mxu0 %v1623
        %v1625 = vpop.f32.mrb[0].mxu0
        %v1626 = vadd.f32 %v1546, %v1625
        %v1627 = vpop.f32.mrb[0].mxu0
        %1628 = vdwg.mxu0
        %v1629 = vld [vmem:[%s1 + $0x50] sm:$0xff]
        %v1630 = vld [vmem:[%s1 + $0x58] sm:$0xff]
        %v1631 = vld [vmem:[%s1 + $0x60] sm:$0xff]
        %v1632 = vld [vmem:[%s1 + $0x68] sm:$0xff]
        %v1633 = vld [vmem:[%s1 + $0x70] sm:$0xff]
        %v1634 = vld [vmem:[%s1 + $0x78] sm:$0xff]
        %v1635 = vld [vmem:[%s1 + $0x80] sm:$0xff]
        %v1636 = vld [vmem:[%s1 + $0x88] sm:$0xff]
        %1637 = vset.pattern.permute.xlu0 2
        %1638 = vperm.xlu0 %1637, %v234
        %v1639 = vpop.permute.xlu0 %1638
        %1641 = vset.pattern.permute.xlu0 2
        %1642 = vperm.xlu0 %1641, %v235
        %v1643 = vpop.permute.xlu0 %1642
        %1645 = vset.pattern.permute.xlu0 2
        %1646 = vperm.xlu0 %1645, %v236
        %v1647 = vpop.permute.xlu0 %1646
        %1649 = vset.pattern.permute.xlu0 2
        %1650 = vperm.xlu0 %1649, %v237
        %v1651 = vpop.permute.xlu0 %1650
        %1653 = vset.pattern.permute.xlu0 2
        %1654 = vperm.xlu0 %1653, %v238
        %v1655 = vpop.permute.xlu0 %1654
        %1657 = vset.pattern.permute.xlu0 2
        %1658 = vperm.xlu0 %1657, %v239
        %v1659 = vpop.permute.xlu0 %1658
        %1661 = vset.pattern.permute.xlu0 2
        %1662 = vperm.xlu0 %1661, %v240
        %v1663 = vpop.permute.xlu0 %1662
        %1665 = vset.pattern.permute.xlu0 2
        %1666 = vperm.xlu0 %1665, %v241
        %v1667 = vpop.permute.xlu0 %1666
        %vm1669 = vcmask 523264
        %v1671 = vsel %vm1669, %v1629, 0
        %v1674 = vsel %vm1669, %v1630, 0
        %v1677 = vsel %vm1669, %v1631, 0
        %v1680 = vsel %vm1669, %v1632, 0
        %v1683 = vsel %vm1669, %v1633, 0
        %v1686 = vsel %vm1669, %v1634, 0
        %v1689 = vsel %vm1669, %v1635, 0
        %v1692 = vsel %vm1669, %v1636, 0
        %1694 = vmatprep.subr.mxu0 0.0
        %v1695 = vand.u32 %v1048, 4294901760
        %1696 = vmatpush1.msra.mxu0 %v1695
        %1697 = vmatprep.subr.mxu0 0.0
        %v1698 = vand.u32 %v1054, 4294901760
        %1699 = vmatpush1.msra.mxu0 %v1698
        %1700 = vmatprep.subr.mxu0 0.0
        %v1701 = vand.u32 %v1060, 4294901760
        %1702 = vmatpush1.msra.mxu0 %v1701
        %1703 = vmatprep.subr.mxu0 0.0
        %v1704 = vand.u32 %v1066, 4294901760
        %1705 = vmatpush1.msra.mxu0 %v1704
        %1706 = vmatprep.subr.mxu0 0.0
        %v1707 = vand.u32 %v1072, 4294901760
        %1708 = vmatpush1.msra.mxu0 %v1707
        %1709 = vmatprep.subr.mxu0 0.0
        %v1710 = vand.u32 %v1078, 4294901760
        %1711 = vmatpush1.msra.mxu0 %v1710
        %1712 = vmatprep.subr.mxu0 0.0
        %v1713 = vand.u32 %v1084, 4294901760
        %1714 = vmatpush1.msra.mxu0 %v1713
        %1715 = vmatprep.subr.mxu0 0.0
        %v1716 = vand.u32 %v1090, 4294901760
        %1717 = vmatpush1.msra.mxu0 %v1716
        %1718 = vmatprep.subr.mxu0 0.0
        %1719 = vmatpush1.msra.mxu0 0.0
        %1720 = vmatprep.subr.mxu0 0.0
        %1721 = vmatpush1.msra.mxu0 0.0
        %1722 = vmatprep.subr.mxu0 0.0
        %1723 = vmatpush1.msra.mxu0 0.0
        %1724 = vmatprep.subr.mxu0 0.0
        %1725 = vmatpush1.msra.mxu0 0.0
        %1726 = vmatprep.subr.mxu0 0.0
        %1727 = vmatpush1.msra.mxu0 0.0
        %1728 = vmatprep.subr.mxu0 0.0
        %1729 = vmatpush1.msra.mxu0 0.0
        %1730 = vmatprep.subr.mxu0 0.0
        %1731 = vmatpush1.msra.mxu0 0.0
        %1732 = vmatprep.subr.mxu0 0.0
        %1733 = vmatpush1.msra.mxu0 0.0
        %1734 = vmatprep.subr.mxu0 0.0
        %1735 = vmatpush1.msra.mxu0 0.0
        %1736 = vmatprep.subr.mxu0 0.0
        %1737 = vmatpush1.msra.mxu0 0.0
        %1738 = vmatprep.subr.mxu0 0.0
        %1739 = vmatpush1.msra.mxu0 0.0
        %1740 = vmatprep.subr.mxu0 0.0
        %1741 = vmatpush1.msra.mxu0 0.0
        %1742 = vmatprep.subr.mxu0 0.0
        %1743 = vmatpush1.msra.mxu0 0.0
        %1744 = vmatprep.subr.mxu0 0.0
        %1745 = vmatpush1.msra.mxu0 0.0
        %1746 = vmatprep.subr.mxu0 0.0
        %1747 = vmatpush1.msra.mxu0 0.0
        %1748 = vmatprep.subr.mxu0 0.0
        %1749 = vmatpush1.msra.mxu0 0.0
        %1750 = vmatprep.subr.mxu0 0.0
        %1751 = vmatpush1.msra.mxu0 0.0
        %1752 = vmatprep.subr.mxu0 0.0
        %1753 = vmatpush1.msra.mxu0 0.0
        %1754 = vmatprep.subr.mxu0 0.0
        %1755 = vmatpush1.msra.mxu0 0.0
        %1756 = vmatprep.subr.mxu0 0.0
        %1757 = vmatpush1.msra.mxu0 0.0
        %1758 = vmatprep.subr.mxu0 0.0
        %1759 = vmatpush1.msra.mxu0 0.0
        %1760 = vmatprep.subr.mxu0 0.0
        %1761 = vmatpush1.msra.mxu0 0.0
        %1762 = vmatprep.subr.mxu0 0.0
        %1763 = vmatpush1.msra.mxu0 0.0
        %1764 = vmatprep.subr.mxu0 0.0
        %1765 = vmatpush1.msra.mxu0 0.0
        %1766 = vmatprep.mubr.f32.mxu0 0.0
        %v1767 = vand.u32 %v1671, 4294901760
        %v1768 = vsub.f32 %v1671, %v1767
        %v1769 = vand.u32 %v1768, 4294901760
        %v1770 = vsub.f32 %v1768, %v1769
        %v1771 = vand.u32 %v1770, 4294901760
        %1772 = vmatmul.mubr.f32.gmra.mrb[0].mxu0 %v1771
        %v1773 = vpop.f32.mrb[0].mxu0
        %v1774 = vadd.f32 %v1639, %v1773
        %v1775 = vpop.f32.mrb[0].mxu0
        %1776 = vmatprep.mubr.f32.mxu0 0.0
        %v1777 = vand.u32 %v1674, 4294901760
        %v1778 = vsub.f32 %v1674, %v1777
        %v1779 = vand.u32 %v1778, 4294901760
        %v1780 = vsub.f32 %v1778, %v1779
        %v1781 = vand.u32 %v1780, 4294901760
        %1782 = vmatmul.mubr.f32.gmra.mrb[0].mxu0 %v1781
        %v1783 = vpop.f32.mrb[0].mxu0
        %v1784 = vadd.f32 %v1643, %v1783
        %v1785 = vpop.f32.mrb[0].mxu0
        %1786 = vmatprep.mubr.f32.mxu0 0.0
        %v1787 = vand.u32 %v1677, 4294901760
        %v1788 = vsub.f32 %v1677, %v1787
        %v1789 = vand.u32 %v1788, 4294901760
        %v1790 = vsub.f32 %v1788, %v1789
        %v1791 = vand.u32 %v1790, 4294901760
        %1792 = vmatmul.mubr.f32.gmra.mrb[0].mxu0 %v1791
        %v1793 = vpop.f32.mrb[0].mxu0
        %v1794 = vadd.f32 %v1647, %v1793
        %v1795 = vpop.f32.mrb[0].mxu0
        %1796 = vmatprep.mubr.f32.mxu0 0.0
        %v1797 = vand.u32 %v1680, 4294901760
        %v1798 = vsub.f32 %v1680, %v1797
        %v1799 = vand.u32 %v1798, 4294901760
        %v1800 = vsub.f32 %v1798, %v1799
        %v1801 = vand.u32 %v1800, 4294901760
        %1802 = vmatmul.mubr.f32.gmra.mrb[0].mxu0 %v1801
        %v1803 = vpop.f32.mrb[0].mxu0
        %v1804 = vadd.f32 %v1651, %v1803
        %v1805 = vpop.f32.mrb[0].mxu0
        %1806 = vmatprep.mubr.f32.mxu0 0.0
        %v1807 = vand.u32 %v1683, 4294901760
        %v1808 = vsub.f32 %v1683, %v1807
        %v1809 = vand.u32 %v1808, 4294901760
        %v1810 = vsub.f32 %v1808, %v1809
        %v1811 = vand.u32 %v1810, 4294901760
        %1812 = vmatmul.mubr.f32.gmra.mrb[0].mxu0 %v1811
        %v1813 = vpop.f32.mrb[0].mxu0
        %v1814 = vadd.f32 %v1655, %v1813
        %v1815 = vpop.f32.mrb[0].mxu0
        %1816 = vmatprep.mubr.f32.mxu0 0.0
        %v1817 = vand.u32 %v1686, 4294901760
        %v1818 = vsub.f32 %v1686, %v1817
        %v1819 = vand.u32 %v1818, 4294901760
        %v1820 = vsub.f32 %v1818, %v1819
        %v1821 = vand.u32 %v1820, 4294901760
        %1822 = vmatmul.mubr.f32.gmra.mrb[0].mxu0 %v1821
        %v1823 = vpop.f32.mrb[0].mxu0
        %v1824 = vadd.f32 %v1659, %v1823
        %v1825 = vpop.f32.mrb[0].mxu0
        %1826 = vmatprep.mubr.f32.mxu0 0.0
        %v1827 = vand.u32 %v1689, 4294901760
        %v1828 = vsub.f32 %v1689, %v1827
        %v1829 = vand.u32 %v1828, 4294901760
        %v1830 = vsub.f32 %v1828, %v1829
        %v1831 = vand.u32 %v1830, 4294901760
        %1832 = vmatmul.mubr.f32.gmra.mrb[0].mxu0 %v1831
        %v1833 = vpop.f32.mrb[0].mxu0
        %v1834 = vadd.f32 %v1663, %v1833
        %v1835 = vpop.f32.mrb[0].mxu0
        %1836 = vmatprep.mubr.f32.mxu0 0.0
        %v1837 = vand.u32 %v1692, 4294901760
        %v1838 = vsub.f32 %v1692, %v1837
        %v1839 = vand.u32 %v1838, 4294901760
        %v1840 = vsub.f32 %v1838, %v1839
        %v1841 = vand.u32 %v1840, 4294901760
        %1842 = vmatmul.mubr.f32.gmra.mrb[0].mxu0 %v1841
        %v1843 = vpop.f32.mrb[0].mxu0
        %v1844 = vadd.f32 %v1667, %v1843
        %v1845 = vpop.f32.mrb[0].mxu0
        %1846 = vdwg.mxu0
        %1847 = vmatprep.subr.mxu0 0.0
        %v1848 = vand.u32 %v1048, 4294901760
        %v1849 = vsub.f32 %v1048, %v1848
        %v1850 = vand.u32 %v1849, 4294901760
        %v1851 = vsub.f32 %v1849, %v1850
        %v1852 = vand.u32 %v1851, 4294901760
        %1853 = vmatpush1.msra.mxu0 %v1852
        %1854 = vmatprep.subr.mxu0 0.0
        %v1855 = vand.u32 %v1054, 4294901760
        %v1856 = vsub.f32 %v1054, %v1855
        %v1857 = vand.u32 %v1856, 4294901760
        %v1858 = vsub.f32 %v1856, %v1857
        %v1859 = vand.u32 %v1858, 4294901760
        %1860 = vmatpush1.msra.mxu0 %v1859
        %1861 = vmatprep.subr.mxu0 0.0
        %v1862 = vand.u32 %v1060, 4294901760
        %v1863 = vsub.f32 %v1060, %v1862
        %v1864 = vand.u32 %v1863, 4294901760
        %v1865 = vsub.f32 %v1863, %v1864
        %v1866 = vand.u32 %v1865, 4294901760
        %1867 = vmatpush1.msra.mxu0 %v1866
        %1868 = vmatprep.subr.mxu0 0.0
        %v1869 = vand.u32 %v1066, 4294901760
        %v1870 = vsub.f32 %v1066, %v1869
        %v1871 = vand.u32 %v1870, 4294901760
        %v1872 = vsub.f32 %v1870, %v1871
        %v1873 = vand.u32 %v1872, 4294901760
        %1874 = vmatpush1.msra.mxu0 %v1873
        %1875 = vmatprep.subr.mxu0 0.0
        %v1876 = vand.u32 %v1072, 4294901760
        %v1877 = vsub.f32 %v1072, %v1876
        %v1878 = vand.u32 %v1877, 4294901760
        %v1879 = vsub.f32 %v1877, %v1878
        %v1880 = vand.u32 %v1879, 4294901760
        %1881 = vmatpush1.msra.mxu0 %v1880
        %1882 = vmatprep.subr.mxu0 0.0
        %v1883 = vand.u32 %v1078, 4294901760
        %v1884 = vsub.f32 %v1078, %v1883
        %v1885 = vand.u32 %v1884, 4294901760
        %v1886 = vsub.f32 %v1884, %v1885
        %v1887 = vand.u32 %v1886, 4294901760
        %1888 = vmatpush1.msra.mxu0 %v1887
        %1889 = vmatprep.subr.mxu0 0.0
        %v1890 = vand.u32 %v1084, 4294901760
        %v1891 = vsub.f32 %v1084, %v1890
        %v1892 = vand.u32 %v1891, 4294901760
        %v1893 = vsub.f32 %v1891, %v1892
        %v1894 = vand.u32 %v1893, 4294901760
        %1895 = vmatpush1.msra.mxu0 %v1894
        %1896 = vmatprep.subr.mxu0 0.0
        %v1897 = vand.u32 %v1090, 4294901760
        %v1898 = vsub.f32 %v1090, %v1897
        %v1899 = vand.u32 %v1898, 4294901760
        %v1900 = vsub.f32 %v1898, %v1899
        %v1901 = vand.u32 %v1900, 4294901760
        %1902 = vmatpush1.msra.mxu0 %v1901
        %1903 = vmatprep.subr.mxu0 0.0
        %1904 = vmatpush1.msra.mxu0 0.0
        %1905 = vmatprep.subr.mxu0 0.0
        %1906 = vmatpush1.msra.mxu0 0.0
        %1907 = vmatprep.subr.mxu0 0.0
        %1908 = vmatpush1.msra.mxu0 0.0
        %1909 = vmatprep.subr.mxu0 0.0
        %1910 = vmatpush1.msra.mxu0 0.0
        %1911 = vmatprep.subr.mxu0 0.0
        %1912 = vmatpush1.msra.mxu0 0.0
        %1913 = vmatprep.subr.mxu0 0.0
        %1914 = vmatpush1.msra.mxu0 0.0
        %1915 = vmatprep.subr.mxu0 0.0
        %1916 = vmatpush1.msra.mxu0 0.0
        %1917 = vmatprep.subr.mxu0 0.0
        %1918 = vmatpush1.msra.mxu0 0.0
        %1919 = vmatprep.subr.mxu0 0.0
        %1920 = vmatpush1.msra.mxu0 0.0
        %1921 = vmatprep.subr.mxu0 0.0
        %1922 = vmatpush1.msra.mxu0 0.0
        %1923 = vmatprep.subr.mxu0 0.0
        %1924 = vmatpush1.msra.mxu0 0.0
        %1925 = vmatprep.subr.mxu0 0.0
        %1926 = vmatpush1.msra.mxu0 0.0
        %1927 = vmatprep.subr.mxu0 0.0
        %1928 = vmatpush1.msra.mxu0 0.0
        %1929 = vmatprep.subr.mxu0 0.0
        %1930 = vmatpush1.msra.mxu0 0.0
        %1931 = vmatprep.subr.mxu0 0.0
        %1932 = vmatpush1.msra.mxu0 0.0
        %1933 = vmatprep.subr.mxu0 0.0
        %1934 = vmatpush1.msra.mxu0 0.0
        %1935 = vmatprep.subr.mxu0 0.0
        %1936 = vmatpush1.msra.mxu0 0.0
        %1937 = vmatprep.subr.mxu0 0.0
        %1938 = vmatpush1.msra.mxu0 0.0
        %1939 = vmatprep.subr.mxu0 0.0
        %1940 = vmatpush1.msra.mxu0 0.0
        %1941 = vmatprep.subr.mxu0 0.0
        %1942 = vmatpush1.msra.mxu0 0.0
        %1943 = vmatprep.subr.mxu0 0.0
        %1944 = vmatpush1.msra.mxu0 0.0
        %1945 = vmatprep.subr.mxu0 0.0
        %1946 = vmatpush1.msra.mxu0 0.0
        %1947 = vmatprep.subr.mxu0 0.0
        %1948 = vmatpush1.msra.mxu0 0.0
        %1949 = vmatprep.subr.mxu0 0.0
        %1950 = vmatpush1.msra.mxu0 0.0
        %1951 = vmatprep.mubr.f32.mxu0 0.0
        %v1952 = vand.u32 %v1671, 4294901760
        %1953 = vmatmul.mubr.f32.gmra.mrb[0].mxu0 %v1952
        %v1954 = vpop.f32.mrb[0].mxu0
        %v1955 = vadd.f32 %v1774, %v1954
        %v1956 = vpop.f32.mrb[0].mxu0
        %1957 = vmatprep.mubr.f32.mxu0 0.0
        %v1958 = vand.u32 %v1674, 4294901760
        %1959 = vmatmul.mubr.f32.gmra.mrb[0].mxu0 %v1958
        %v1960 = vpop.f32.mrb[0].mxu0
        %v1961 = vadd.f32 %v1784, %v1960
        %v1962 = vpop.f32.mrb[0].mxu0
        %1963 = vmatprep.mubr.f32.mxu0 0.0
        %v1964 = vand.u32 %v1677, 4294901760
        %1965 = vmatmul.mubr.f32.gmra.mrb[0].mxu0 %v1964
        %v1966 = vpop.f32.mrb[0].mxu0
        %v1967 = vadd.f32 %v1794, %v1966
        %v1968 = vpop.f32.mrb[0].mxu0
        %1969 = vmatprep.mubr.f32.mxu0 0.0
        %v1970 = vand.u32 %v1680, 4294901760
        %1971 = vmatmul.mubr.f32.gmra.mrb[0].mxu0 %v1970
        %v1972 = vpop.f32.mrb[0].mxu0
        %v1973 = vadd.f32 %v1804, %v1972
        %v1974 = vpop.f32.mrb[0].mxu0
        %1975 = vmatprep.mubr.f32.mxu0 0.0
        %v1976 = vand.u32 %v1683, 4294901760
        %1977 = vmatmul.mubr.f32.gmra.mrb[0].mxu0 %v1976
        %v1978 = vpop.f32.mrb[0].mxu0
        %v1979 = vadd.f32 %v1814, %v1978
        %v1980 = vpop.f32.mrb[0].mxu0
        %1981 = vmatprep.mubr.f32.mxu0 0.0
        %v1982 = vand.u32 %v1686, 4294901760
        %1983 = vmatmul.mubr.f32.gmra.mrb[0].mxu0 %v1982
        %v1984 = vpop.f32.mrb[0].mxu0
        %v1985 = vadd.f32 %v1824, %v1984
        %v1986 = vpop.f32.mrb[0].mxu0
        %1987 = vmatprep.mubr.f32.mxu0 0.0
        %v1988 = vand.u32 %v1689, 4294901760
        %1989 = vmatmul.mubr.f32.gmra.mrb[0].mxu0 %v1988
        %v1990 = vpop.f32.mrb[0].mxu0
        %v1991 = vadd.f32 %v1834, %v1990
        %v1992 = vpop.f32.mrb[0].mxu0
        %1993 = vmatprep.mubr.f32.mxu0 0.0
        %v1994 = vand.u32 %v1692, 4294901760
        %1995 = vmatmul.mubr.f32.gmra.mrb[0].mxu0 %v1994
        %v1996 = vpop.f32.mrb[0].mxu0
        %v1997 = vadd.f32 %v1844, %v1996
        %v1998 = vpop.f32.mrb[0].mxu0
        %1999 = vdwg.mxu0
        %2000 = vmatprep.subr.mxu0 0.0
        %v2001 = vand.u32 %v1048, 4294901760
        %v2002 = vsub.f32 %v1048, %v2001
        %2003 = vmatpush1.msra.mxu0 %v2002
        %2004 = vmatprep.subr.mxu0 0.0
        %v2005 = vand.u32 %v1054, 4294901760
        %v2006 = vsub.f32 %v1054, %v2005
        %2007 = vmatpush1.msra.mxu0 %v2006
        %2008 = vmatprep.subr.mxu0 0.0
        %v2009 = vand.u32 %v1060, 4294901760
        %v2010 = vsub.f32 %v1060, %v2009
        %2011 = vmatpush1.msra.mxu0 %v2010
        %2012 = vmatprep.subr.mxu0 0.0
        %v2013 = vand.u32 %v1066, 4294901760
        %v2014 = vsub.f32 %v1066, %v2013
        %2015 = vmatpush1.msra.mxu0 %v2014
        %2016 = vmatprep.subr.mxu0 0.0
        %v2017 = vand.u32 %v1072, 4294901760
        %v2018 = vsub.f32 %v1072, %v2017
        %2019 = vmatpush1.msra.mxu0 %v2018
        %2020 = vmatprep.subr.mxu0 0.0
        %v2021 = vand.u32 %v1078, 4294901760
        %v2022 = vsub.f32 %v1078, %v2021
        %2023 = vmatpush1.msra.mxu0 %v2022
        %2024 = vmatprep.subr.mxu0 0.0
        %v2025 = vand.u32 %v1084, 4294901760
        %v2026 = vsub.f32 %v1084, %v2025
        %2027 = vmatpush1.msra.mxu0 %v2026
        %2028 = vmatprep.subr.mxu0 0.0
        %v2029 = vand.u32 %v1090, 4294901760
        %v2030 = vsub.f32 %v1090, %v2029
        %2031 = vmatpush1.msra.mxu0 %v2030
        %2032 = vmatprep.subr.mxu0 0.0
        %2033 = vmatpush1.msra.mxu0 0.0
        %2034 = vmatprep.subr.mxu0 0.0
        %2035 = vmatpush1.msra.mxu0 0.0
        %2036 = vmatprep.subr.mxu0 0.0
        %2037 = vmatpush1.msra.mxu0 0.0
        %2038 = vmatprep.subr.mxu0 0.0
        %2039 = vmatpush1.msra.mxu0 0.0
        %2040 = vmatprep.subr.mxu0 0.0
        %2041 = vmatpush1.msra.mxu0 0.0
        %2042 = vmatprep.subr.mxu0 0.0
        %2043 = vmatpush1.msra.mxu0 0.0
        %2044 = vmatprep.subr.mxu0 0.0
        %2045 = vmatpush1.msra.mxu0 0.0
        %2046 = vmatprep.subr.mxu0 0.0
        %2047 = vmatpush1.msra.mxu0 0.0
        %2048 = vmatprep.subr.mxu0 0.0
        %2049 = vmatpush1.msra.mxu0 0.0
        %2050 = vmatprep.subr.mxu0 0.0
        %2051 = vmatpush1.msra.mxu0 0.0
        %2052 = vmatprep.subr.mxu0 0.0
        %2053 = vmatpush1.msra.mxu0 0.0
        %2054 = vmatprep.subr.mxu0 0.0
        %2055 = vmatpush1.msra.mxu0 0.0
        %2056 = vmatprep.subr.mxu0 0.0
        %2057 = vmatpush1.msra.mxu0 0.0
        %2058 = vmatprep.subr.mxu0 0.0
        %2059 = vmatpush1.msra.mxu0 0.0
        %2060 = vmatprep.subr.mxu0 0.0
        %2061 = vmatpush1.msra.mxu0 0.0
        %2062 = vmatprep.subr.mxu0 0.0
        %2063 = vmatpush1.msra.mxu0 0.0
        %2064 = vmatprep.subr.mxu0 0.0
        %2065 = vmatpush1.msra.mxu0 0.0
        %2066 = vmatprep.subr.mxu0 0.0
        %2067 = vmatpush1.msra.mxu0 0.0
        %2068 = vmatprep.subr.mxu0 0.0
        %2069 = vmatpush1.msra.mxu0 0.0
        %2070 = vmatprep.subr.mxu0 0.0
        %2071 = vmatpush1.msra.mxu0 0.0
        %2072 = vmatprep.subr.mxu0 0.0
        %2073 = vmatpush1.msra.mxu0 0.0
        %2074 = vmatprep.subr.mxu0 0.0
        %2075 = vmatpush1.msra.mxu0 0.0
        %2076 = vmatprep.subr.mxu0 0.0
        %2077 = vmatpush1.msra.mxu0 0.0
        %2078 = vmatprep.subr.mxu0 0.0
        %2079 = vmatpush1.msra.mxu0 0.0
        %2080 = vmatprep.mubr.f32.mxu0 0.0
        %v2081 = vand.u32 %v1671, 4294901760
        %v2082 = vsub.f32 %v1671, %v2081
        %2083 = vmatmul.mubr.f32.gmra.mrb[0].mxu0 %v2082
        %v2084 = vpop.f32.mrb[0].mxu0
        %v2085 = vadd.f32 %v1955, %v2084
        %v2086 = vpop.f32.mrb[0].mxu0
        %2087 = vmatprep.mubr.f32.mxu0 0.0
        %v2088 = vand.u32 %v1674, 4294901760
        %v2089 = vsub.f32 %v1674, %v2088
        %2090 = vmatmul.mubr.f32.gmra.mrb[0].mxu0 %v2089
        %v2091 = vpop.f32.mrb[0].mxu0
        %v2092 = vadd.f32 %v1961, %v2091
        %v2093 = vpop.f32.mrb[0].mxu0
        %2094 = vmatprep.mubr.f32.mxu0 0.0
        %v2095 = vand.u32 %v1677, 4294901760
        %v2096 = vsub.f32 %v1677, %v2095
        %2097 = vmatmul.mubr.f32.gmra.mrb[0].mxu0 %v2096
        %v2098 = vpop.f32.mrb[0].mxu0
        %v2099 = vadd.f32 %v1967, %v2098
        %v2100 = vpop.f32.mrb[0].mxu0
        %2101 = vmatprep.mubr.f32.mxu0 0.0
        %v2102 = vand.u32 %v1680, 4294901760
        %v2103 = vsub.f32 %v1680, %v2102
        %2104 = vmatmul.mubr.f32.gmra.mrb[0].mxu0 %v2103
        %v2105 = vpop.f32.mrb[0].mxu0
        %v2106 = vadd.f32 %v1973, %v2105
        %v2107 = vpop.f32.mrb[0].mxu0
        %2108 = vmatprep.mubr.f32.mxu0 0.0
        %v2109 = vand.u32 %v1683, 4294901760
        %v2110 = vsub.f32 %v1683, %v2109
        %2111 = vmatmul.mubr.f32.gmra.mrb[0].mxu0 %v2110
        %v2112 = vpop.f32.mrb[0].mxu0
        %v2113 = vadd.f32 %v1979, %v2112
        %v2114 = vpop.f32.mrb[0].mxu0
        %2115 = vmatprep.mubr.f32.mxu0 0.0
        %v2116 = vand.u32 %v1686, 4294901760
        %v2117 = vsub.f32 %v1686, %v2116
        %2118 = vmatmul.mubr.f32.gmra.mrb[0].mxu0 %v2117
        %v2119 = vpop.f32.mrb[0].mxu0
        %v2120 = vadd.f32 %v1985, %v2119
        %v2121 = vpop.f32.mrb[0].mxu0
        %2122 = vmatprep.mubr.f32.mxu0 0.0
        %v2123 = vand.u32 %v1689, 4294901760
        %v2124 = vsub.f32 %v1689, %v2123
        %2125 = vmatmul.mubr.f32.gmra.mrb[0].mxu0 %v2124
        %v2126 = vpop.f32.mrb[0].mxu0
        %v2127 = vadd.f32 %v1991, %v2126
        %v2128 = vpop.f32.mrb[0].mxu0
        %2129 = vmatprep.mubr.f32.mxu0 0.0
        %v2130 = vand.u32 %v1692, 4294901760
        %v2131 = vsub.f32 %v1692, %v2130
        %2132 = vmatmul.mubr.f32.gmra.mrb[0].mxu0 %v2131
        %v2133 = vpop.f32.mrb[0].mxu0
        %v2134 = vadd.f32 %v1997, %v2133
        %v2135 = vpop.f32.mrb[0].mxu0
        %2136 = vdwg.mxu0
        %2137 = vmatprep.subr.mxu0 0.0
        %v2138 = vand.u32 %v1048, 4294901760
        %2139 = vmatpush1.msra.mxu0 %v2138
        %2140 = vmatprep.subr.mxu0 0.0
        %v2141 = vand.u32 %v1054, 4294901760
        %2142 = vmatpush1.msra.mxu0 %v2141
        %2143 = vmatprep.subr.mxu0 0.0
        %v2144 = vand.u32 %v1060, 4294901760
        %2145 = vmatpush1.msra.mxu0 %v2144
        %2146 = vmatprep.subr.mxu0 0.0
        %v2147 = vand.u32 %v1066, 4294901760
        %2148 = vmatpush1.msra.mxu0 %v2147
        %2149 = vmatprep.subr.mxu0 0.0
        %v2150 = vand.u32 %v1072, 4294901760
        %2151 = vmatpush1.msra.mxu0 %v2150
        %2152 = vmatprep.subr.mxu0 0.0
        %v2153 = vand.u32 %v1078, 4294901760
        %2154 = vmatpush1.msra.mxu0 %v2153
        %2155 = vmatprep.subr.mxu0 0.0
        %v2156 = vand.u32 %v1084, 4294901760
        %2157 = vmatpush1.msra.mxu0 %v2156
        %2158 = vmatprep.subr.mxu0 0.0
        %v2159 = vand.u32 %v1090, 4294901760
        %2160 = vmatpush1.msra.mxu0 %v2159
        %2161 = vmatprep.subr.mxu0 0.0
        %2162 = vmatpush1.msra.mxu0 0.0
        %2163 = vmatprep.subr.mxu0 0.0
        %2164 = vmatpush1.msra.mxu0 0.0
        %2165 = vmatprep.subr.mxu0 0.0
        %2166 = vmatpush1.msra.mxu0 0.0
        %2167 = vmatprep.subr.mxu0 0.0
        %2168 = vmatpush1.msra.mxu0 0.0
        %2169 = vmatprep.subr.mxu0 0.0
        %2170 = vmatpush1.msra.mxu0 0.0
        %2171 = vmatprep.subr.mxu0 0.0
        %2172 = vmatpush1.msra.mxu0 0.0
        %2173 = vmatprep.subr.mxu0 0.0
        %2174 = vmatpush1.msra.mxu0 0.0
        %2175 = vmatprep.subr.mxu0 0.0
        %2176 = vmatpush1.msra.mxu0 0.0
        %2177 = vmatprep.subr.mxu0 0.0
        %2178 = vmatpush1.msra.mxu0 0.0
        %2179 = vmatprep.subr.mxu0 0.0
        %2180 = vmatpush1.msra.mxu0 0.0
        %2181 = vmatprep.subr.mxu0 0.0
        %2182 = vmatpush1.msra.mxu0 0.0
        %2183 = vmatprep.subr.mxu0 0.0
        %2184 = vmatpush1.msra.mxu0 0.0
        %2185 = vmatprep.subr.mxu0 0.0
        %2186 = vmatpush1.msra.mxu0 0.0
        %2187 = vmatprep.subr.mxu0 0.0
        %2188 = vmatpush1.msra.mxu0 0.0
        %2189 = vmatprep.subr.mxu0 0.0
        %2190 = vmatpush1.msra.mxu0 0.0
        %2191 = vmatprep.subr.mxu0 0.0
        %2192 = vmatpush1.msra.mxu0 0.0
        %2193 = vmatprep.subr.mxu0 0.0
        %2194 = vmatpush1.msra.mxu0 0.0
        %2195 = vmatprep.subr.mxu0 0.0
        %2196 = vmatpush1.msra.mxu0 0.0
        %2197 = vmatprep.subr.mxu0 0.0
        %2198 = vmatpush1.msra.mxu0 0.0
        %2199 = vmatprep.subr.mxu0 0.0
        %2200 = vmatpush1.msra.mxu0 0.0
        %2201 = vmatprep.subr.mxu0 0.0
        %2202 = vmatpush1.msra.mxu0 0.0
        %2203 = vmatprep.subr.mxu0 0.0
        %2204 = vmatpush1.msra.mxu0 0.0
        %2205 = vmatprep.subr.mxu0 0.0
        %2206 = vmatpush1.msra.mxu0 0.0
        %2207 = vmatprep.subr.mxu0 0.0
        %2208 = vmatpush1.msra.mxu0 0.0
        %2209 = vmatprep.mubr.f32.mxu0 0.0
        %v2210 = vand.u32 %v1671, 4294901760
        %v2211 = vsub.f32 %v1671, %v2210
        %v2212 = vand.u32 %v2211, 4294901760
        %2213 = vmatmul.mubr.f32.gmra.mrb[0].mxu0 %v2212
        %v2214 = vpop.f32.mrb[0].mxu0
        %v2215 = vadd.f32 %v2085, %v2214
        %v2216 = vpop.f32.mrb[0].mxu0
        %2217 = vmatprep.mubr.f32.mxu0 0.0
        %v2218 = vand.u32 %v1674, 4294901760
        %v2219 = vsub.f32 %v1674, %v2218
        %v2220 = vand.u32 %v2219, 4294901760
        %2221 = vmatmul.mubr.f32.gmra.mrb[0].mxu0 %v2220
        %v2222 = vpop.f32.mrb[0].mxu0
        %v2223 = vadd.f32 %v2092, %v2222
        %v2224 = vpop.f32.mrb[0].mxu0
        %2225 = vmatprep.mubr.f32.mxu0 0.0
        %v2226 = vand.u32 %v1677, 4294901760
        %v2227 = vsub.f32 %v1677, %v2226
        %v2228 = vand.u32 %v2227, 4294901760
        %2229 = vmatmul.mubr.f32.gmra.mrb[0].mxu0 %v2228
        %v2230 = vpop.f32.mrb[0].mxu0
        %v2231 = vadd.f32 %v2099, %v2230
        %v2232 = vpop.f32.mrb[0].mxu0
        %2233 = vmatprep.mubr.f32.mxu0 0.0
        %v2234 = vand.u32 %v1680, 4294901760
        %v2235 = vsub.f32 %v1680, %v2234
        %v2236 = vand.u32 %v2235, 4294901760
        %2237 = vmatmul.mubr.f32.gmra.mrb[0].mxu0 %v2236
        %v2238 = vpop.f32.mrb[0].mxu0
        %v2239 = vadd.f32 %v2106, %v2238
        %v2240 = vpop.f32.mrb[0].mxu0
        %2241 = vmatprep.mubr.f32.mxu0 0.0
        %v2242 = vand.u32 %v1683, 4294901760
        %v2243 = vsub.f32 %v1683, %v2242
        %v2244 = vand.u32 %v2243, 4294901760
        %2245 = vmatmul.mubr.f32.gmra.mrb[0].mxu0 %v2244
        %v2246 = vpop.f32.mrb[0].mxu0
        %v2247 = vadd.f32 %v2113, %v2246
        %v2248 = vpop.f32.mrb[0].mxu0
        %2249 = vmatprep.mubr.f32.mxu0 0.0
        %v2250 = vand.u32 %v1686, 4294901760
        %v2251 = vsub.f32 %v1686, %v2250
        %v2252 = vand.u32 %v2251, 4294901760
        %2253 = vmatmul.mubr.f32.gmra.mrb[0].mxu0 %v2252
        %v2254 = vpop.f32.mrb[0].mxu0
        %v2255 = vadd.f32 %v2120, %v2254
        %v2256 = vpop.f32.mrb[0].mxu0
        %2257 = vmatprep.mubr.f32.mxu0 0.0
        %v2258 = vand.u32 %v1689, 4294901760
        %v2259 = vsub.f32 %v1689, %v2258
        %v2260 = vand.u32 %v2259, 4294901760
        %2261 = vmatmul.mubr.f32.gmra.mrb[0].mxu0 %v2260
        %v2262 = vpop.f32.mrb[0].mxu0
        %v2263 = vadd.f32 %v2127, %v2262
        %v2264 = vpop.f32.mrb[0].mxu0
        %2265 = vmatprep.mubr.f32.mxu0 0.0
        %v2266 = vand.u32 %v1692, 4294901760
        %v2267 = vsub.f32 %v1692, %v2266
        %v2268 = vand.u32 %v2267, 4294901760
        %2269 = vmatmul.mubr.f32.gmra.mrb[0].mxu0 %v2268
        %v2270 = vpop.f32.mrb[0].mxu0
        %v2271 = vadd.f32 %v2134, %v2270
        %v2272 = vpop.f32.mrb[0].mxu0
        %2273 = vdwg.mxu0
        %2274 = vmatprep.subr.mxu0 0.0
        %v2275 = vand.u32 %v1048, 4294901760
        %v2276 = vsub.f32 %v1048, %v2275
        %v2277 = vand.u32 %v2276, 4294901760
        %2278 = vmatpush1.msra.mxu0 %v2277
        %2279 = vmatprep.subr.mxu0 0.0
        %v2280 = vand.u32 %v1054, 4294901760
        %v2281 = vsub.f32 %v1054, %v2280
        %v2282 = vand.u32 %v2281, 4294901760
        %2283 = vmatpush1.msra.mxu0 %v2282
        %2284 = vmatprep.subr.mxu0 0.0
        %v2285 = vand.u32 %v1060, 4294901760
        %v2286 = vsub.f32 %v1060, %v2285
        %v2287 = vand.u32 %v2286, 4294901760
        %2288 = vmatpush1.msra.mxu0 %v2287
        %2289 = vmatprep.subr.mxu0 0.0
        %v2290 = vand.u32 %v1066, 4294901760
        %v2291 = vsub.f32 %v1066, %v2290
        %v2292 = vand.u32 %v2291, 4294901760
        %2293 = vmatpush1.msra.mxu0 %v2292
        %2294 = vmatprep.subr.mxu0 0.0
        %v2295 = vand.u32 %v1072, 4294901760
        %v2296 = vsub.f32 %v1072, %v2295
        %v2297 = vand.u32 %v2296, 4294901760
        %2298 = vmatpush1.msra.mxu0 %v2297
        %2299 = vmatprep.subr.mxu0 0.0
        %v2300 = vand.u32 %v1078, 4294901760
        %v2301 = vsub.f32 %v1078, %v2300
        %v2302 = vand.u32 %v2301, 4294901760
        %2303 = vmatpush1.msra.mxu0 %v2302
        %2304 = vmatprep.subr.mxu0 0.0
        %v2305 = vand.u32 %v1084, 4294901760
        %v2306 = vsub.f32 %v1084, %v2305
        %v2307 = vand.u32 %v2306, 4294901760
        %2308 = vmatpush1.msra.mxu0 %v2307
        %2309 = vmatprep.subr.mxu0 0.0
        %v2310 = vand.u32 %v1090, 4294901760
        %v2311 = vsub.f32 %v1090, %v2310
        %v2312 = vand.u32 %v2311, 4294901760
        %2313 = vmatpush1.msra.mxu0 %v2312
        %2314 = vmatprep.subr.mxu0 0.0
        %2315 = vmatpush1.msra.mxu0 0.0
        %2316 = vmatprep.subr.mxu0 0.0
        %2317 = vmatpush1.msra.mxu0 0.0
        %2318 = vmatprep.subr.mxu0 0.0
        %2319 = vmatpush1.msra.mxu0 0.0
        %2320 = vmatprep.subr.mxu0 0.0
        %2321 = vmatpush1.msra.mxu0 0.0
        %2322 = vmatprep.subr.mxu0 0.0
        %2323 = vmatpush1.msra.mxu0 0.0
        %2324 = vmatprep.subr.mxu0 0.0
        %2325 = vmatpush1.msra.mxu0 0.0
        %2326 = vmatprep.subr.mxu0 0.0
        %2327 = vmatpush1.msra.mxu0 0.0
        %2328 = vmatprep.subr.mxu0 0.0
        %2329 = vmatpush1.msra.mxu0 0.0
        %2330 = vmatprep.subr.mxu0 0.0
        %2331 = vmatpush1.msra.mxu0 0.0
        %2332 = vmatprep.subr.mxu0 0.0
        %2333 = vmatpush1.msra.mxu0 0.0
        %2334 = vmatprep.subr.mxu0 0.0
        %2335 = vmatpush1.msra.mxu0 0.0
        %2336 = vmatprep.subr.mxu0 0.0
        %2337 = vmatpush1.msra.mxu0 0.0
        %2338 = vmatprep.subr.mxu0 0.0
        %2339 = vmatpush1.msra.mxu0 0.0
        %2340 = vmatprep.subr.mxu0 0.0
        %2341 = vmatpush1.msra.mxu0 0.0
        %2342 = vmatprep.subr.mxu0 0.0
        %2343 = vmatpush1.msra.mxu0 0.0
        %2344 = vmatprep.subr.mxu0 0.0
        %2345 = vmatpush1.msra.mxu0 0.0
        %2346 = vmatprep.subr.mxu0 0.0
        %2347 = vmatpush1.msra.mxu0 0.0
        %2348 = vmatprep.subr.mxu0 0.0
        %2349 = vmatpush1.msra.mxu0 0.0
        %2350 = vmatprep.subr.mxu0 0.0
        %2351 = vmatpush1.msra.mxu0 0.0
        %2352 = vmatprep.subr.mxu0 0.0
        %2353 = vmatpush1.msra.mxu0 0.0
        %2354 = vmatprep.subr.mxu0 0.0
        %2355 = vmatpush1.msra.mxu0 0.0
        %2356 = vmatprep.subr.mxu0 0.0
        %2357 = vmatpush1.msra.mxu0 0.0
        %2358 = vmatprep.subr.mxu0 0.0
        %2359 = vmatpush1.msra.mxu0 0.0
        %2360 = vmatprep.subr.mxu0 0.0
        %2361 = vmatpush1.msra.mxu0 0.0
        %2362 = vmatprep.mubr.f32.mxu0 0.0
        %v2363 = vand.u32 %v1671, 4294901760
        %2364 = vmatmul.mubr.f32.gmra.mrb[0].mxu0 %v2363
        %v2365 = vpop.f32.mrb[0].mxu0
        %v2366 = vadd.f32 %v2215, %v2365
        %v2367 = vpop.f32.mrb[0].mxu0
        %2368 = vmatprep.mubr.f32.mxu0 0.0
        %v2369 = vand.u32 %v1674, 4294901760
        %2370 = vmatmul.mubr.f32.gmra.mrb[0].mxu0 %v2369
        %v2371 = vpop.f32.mrb[0].mxu0
        %v2372 = vadd.f32 %v2223, %v2371
        %v2373 = vpop.f32.mrb[0].mxu0
        %2374 = vmatprep.mubr.f32.mxu0 0.0
        %v2375 = vand.u32 %v1677, 4294901760
        %2376 = vmatmul.mubr.f32.gmra.mrb[0].mxu0 %v2375
        %v2377 = vpop.f32.mrb[0].mxu0
        %v2378 = vadd.f32 %v2231, %v2377
        %v2379 = vpop.f32.mrb[0].mxu0
        %2380 = vmatprep.mubr.f32.mxu0 0.0
        %v2381 = vand.u32 %v1680, 4294901760
        %2382 = vmatmul.mubr.f32.gmra.mrb[0].mxu0 %v2381
        %v2383 = vpop.f32.mrb[0].mxu0
        %v2384 = vadd.f32 %v2239, %v2383
        %v2385 = vpop.f32.mrb[0].mxu0
        %2386 = vmatprep.mubr.f32.mxu0 0.0
        %v2387 = vand.u32 %v1683, 4294901760
        %2388 = vmatmul.mubr.f32.gmra.mrb[0].mxu0 %v2387
        %v2389 = vpop.f32.mrb[0].mxu0
        %v2390 = vadd.f32 %v2247, %v2389
        %v2391 = vpop.f32.mrb[0].mxu0
        %2392 = vmatprep.mubr.f32.mxu0 0.0
        %v2393 = vand.u32 %v1686, 4294901760
        %2394 = vmatmul.mubr.f32.gmra.mrb[0].mxu0 %v2393
        %v2395 = vpop.f32.mrb[0].mxu0
        %v2396 = vadd.f32 %v2255, %v2395
        %v2397 = vpop.f32.mrb[0].mxu0
        %2398 = vmatprep.mubr.f32.mxu0 0.0
        %v2399 = vand.u32 %v1689, 4294901760
        %2400 = vmatmul.mubr.f32.gmra.mrb[0].mxu0 %v2399
        %v2401 = vpop.f32.mrb[0].mxu0
        %v2402 = vadd.f32 %v2263, %v2401
        %v2403 = vpop.f32.mrb[0].mxu0
        %2404 = vmatprep.mubr.f32.mxu0 0.0
        %v2405 = vand.u32 %v1692, 4294901760
        %2406 = vmatmul.mubr.f32.gmra.mrb[0].mxu0 %v2405
        %v2407 = vpop.f32.mrb[0].mxu0
        %v2408 = vadd.f32 %v2271, %v2407
        %v2409 = vpop.f32.mrb[0].mxu0
        %2410 = vdwg.mxu0
        %2411 = vmatprep.subr.mxu0 0.0
        %v2412 = vand.u32 %v1048, 4294901760
        %2413 = vmatpush1.msra.mxu0 %v2412
        %2414 = vmatprep.subr.mxu0 0.0
        %v2415 = vand.u32 %v1054, 4294901760
        %2416 = vmatpush1.msra.mxu0 %v2415
        %2417 = vmatprep.subr.mxu0 0.0
        %v2418 = vand.u32 %v1060, 4294901760
        %2419 = vmatpush1.msra.mxu0 %v2418
        %2420 = vmatprep.subr.mxu0 0.0
        %v2421 = vand.u32 %v1066, 4294901760
        %2422 = vmatpush1.msra.mxu0 %v2421
        %2423 = vmatprep.subr.mxu0 0.0
        %v2424 = vand.u32 %v1072, 4294901760
        %2425 = vmatpush1.msra.mxu0 %v2424
        %2426 = vmatprep.subr.mxu0 0.0
        %v2427 = vand.u32 %v1078, 4294901760
        %2428 = vmatpush1.msra.mxu0 %v2427
        %2429 = vmatprep.subr.mxu0 0.0
        %v2430 = vand.u32 %v1084, 4294901760
        %2431 = vmatpush1.msra.mxu0 %v2430
        %2432 = vmatprep.subr.mxu0 0.0
        %v2433 = vand.u32 %v1090, 4294901760
        %2434 = vmatpush1.msra.mxu0 %v2433
        %2435 = vmatprep.subr.mxu0 0.0
        %2436 = vmatpush1.msra.mxu0 0.0
        %2437 = vmatprep.subr.mxu0 0.0
        %2438 = vmatpush1.msra.mxu0 0.0
        %2439 = vmatprep.subr.mxu0 0.0
        %2440 = vmatpush1.msra.mxu0 0.0
        %2441 = vmatprep.subr.mxu0 0.0
        %2442 = vmatpush1.msra.mxu0 0.0
        %2443 = vmatprep.subr.mxu0 0.0
        %2444 = vmatpush1.msra.mxu0 0.0
        %2445 = vmatprep.subr.mxu0 0.0
        %2446 = vmatpush1.msra.mxu0 0.0
        %2447 = vmatprep.subr.mxu0 0.0
        %2448 = vmatpush1.msra.mxu0 0.0
        %2449 = vmatprep.subr.mxu0 0.0
        %2450 = vmatpush1.msra.mxu0 0.0
        %2451 = vmatprep.subr.mxu0 0.0
        %2452 = vmatpush1.msra.mxu0 0.0
        %2453 = vmatprep.subr.mxu0 0.0
        %2454 = vmatpush1.msra.mxu0 0.0
        %2455 = vmatprep.subr.mxu0 0.0
        %2456 = vmatpush1.msra.mxu0 0.0
        %2457 = vmatprep.subr.mxu0 0.0
        %2458 = vmatpush1.msra.mxu0 0.0
        %2459 = vmatprep.subr.mxu0 0.0
        %2460 = vmatpush1.msra.mxu0 0.0
        %2461 = vmatprep.subr.mxu0 0.0
        %2462 = vmatpush1.msra.mxu0 0.0
        %2463 = vmatprep.subr.mxu0 0.0
        %2464 = vmatpush1.msra.mxu0 0.0
        %2465 = vmatprep.subr.mxu0 0.0
        %2466 = vmatpush1.msra.mxu0 0.0
        %2467 = vmatprep.subr.mxu0 0.0
        %2468 = vmatpush1.msra.mxu0 0.0
        %2469 = vmatprep.subr.mxu0 0.0
        %2470 = vmatpush1.msra.mxu0 0.0
        %2471 = vmatprep.subr.mxu0 0.0
        %2472 = vmatpush1.msra.mxu0 0.0
        %2473 = vmatprep.subr.mxu0 0.0
        %2474 = vmatpush1.msra.mxu0 0.0
        %2475 = vmatprep.subr.mxu0 0.0
        %2476 = vmatpush1.msra.mxu0 0.0
        %2477 = vmatprep.subr.mxu0 0.0
        %2478 = vmatpush1.msra.mxu0 0.0
        %2479 = vmatprep.subr.mxu0 0.0
        %2480 = vmatpush1.msra.mxu0 0.0
        %2481 = vmatprep.subr.mxu0 0.0
        %2482 = vmatpush1.msra.mxu0 0.0
        %2483 = vmatprep.mubr.f32.mxu0 0.0
        %v2484 = vand.u32 %v1671, 4294901760
        %2485 = vmatmul.mubr.f32.gmra.mrb[0].mxu0 %v2484
        %v2486 = vpop.f32.mrb[0].mxu0
        %v2487 = vadd.f32 %v2366, %v2486
        %v2488 = vpop.f32.mrb[0].mxu0
        %2489 = vmatprep.mubr.f32.mxu0 0.0
        %v2490 = vand.u32 %v1674, 4294901760
        %2491 = vmatmul.mubr.f32.gmra.mrb[0].mxu0 %v2490
        %v2492 = vpop.f32.mrb[0].mxu0
        %v2493 = vadd.f32 %v2372, %v2492
        %v2494 = vpop.f32.mrb[0].mxu0
        %2495 = vmatprep.mubr.f32.mxu0 0.0
        %v2496 = vand.u32 %v1677, 4294901760
        %2497 = vmatmul.mubr.f32.gmra.mrb[0].mxu0 %v2496
        %v2498 = vpop.f32.mrb[0].mxu0
        %v2499 = vadd.f32 %v2378, %v2498
        %v2500 = vpop.f32.mrb[0].mxu0
        %2501 = vmatprep.mubr.f32.mxu0 0.0
        %v2502 = vand.u32 %v1680, 4294901760
        %2503 = vmatmul.mubr.f32.gmra.mrb[0].mxu0 %v2502
        %v2504 = vpop.f32.mrb[0].mxu0
        %v2505 = vadd.f32 %v2384, %v2504
        %v2506 = vpop.f32.mrb[0].mxu0
        %2507 = vmatprep.mubr.f32.mxu0 0.0
        %v2508 = vand.u32 %v1683, 4294901760
        %2509 = vmatmul.mubr.f32.gmra.mrb[0].mxu0 %v2508
        %v2510 = vpop.f32.mrb[0].mxu0
        %v2511 = vadd.f32 %v2390, %v2510
        %v2512 = vpop.f32.mrb[0].mxu0
        %2513 = vmatprep.mubr.f32.mxu0 0.0
        %v2514 = vand.u32 %v1686, 4294901760
        %2515 = vmatmul.mubr.f32.gmra.mrb[0].mxu0 %v2514
        %v2516 = vpop.f32.mrb[0].mxu0
        %v2517 = vadd.f32 %v2396, %v2516
        %v2518 = vpop.f32.mrb[0].mxu0
        %2519 = vmatprep.mubr.f32.mxu0 0.0
        %v2520 = vand.u32 %v1689, 4294901760
        %2521 = vmatmul.mubr.f32.gmra.mrb[0].mxu0 %v2520
        %v2522 = vpop.f32.mrb[0].mxu0
        %v2523 = vadd.f32 %v2402, %v2522
        %v2524 = vpop.f32.mrb[0].mxu0
        %2525 = vmatprep.mubr.f32.mxu0 0.0
        %v2526 = vand.u32 %v1692, 4294901760
        %2527 = vmatmul.mubr.f32.gmra.mrb[0].mxu0 %v2526
        %v2528 = vpop.f32.mrb[0].mxu0
        %v2529 = vadd.f32 %v2408, %v2528
        %v2530 = vpop.f32.mrb[0].mxu0
        %2531 = vdwg.mxu0
        %v2532 = vmax.f32 %v2487, 0.0
        %v2533 = vmax.f32 %v2493, 0.0
        %v2534 = vmax.f32 %v2499, 0.0
        %v2535 = vmax.f32 %v2505, 0.0
        %v2536 = vmax.f32 %v2511, 0.0
        %v2537 = vmax.f32 %v2517, 0.0
        %v2538 = vmax.f32 %v2523, 0.0
        %v2539 = vmax.f32 %v2529, 0.0
        %v2540 = vld [vmem:[%s1 + $0x90] sm:$0xff]
        %v2541 = vld [vmem:[%s1 + $0x98] sm:$0xff]
        %v2542 = vld [vmem:[%s1 + $0xa0] sm:$0xff]
        %v2543 = vld [vmem:[%s1 + $0xa8] sm:$0xff]
        %v2544 = vld [vmem:[%s1 + $0x140] sm:$0xff]
        %v2545 = vld [vmem:[%s1 + $0x148] sm:$0xff]
        %v2546 = vld [vmem:[%s1 + $0x150] sm:$0xff]
        %v2547 = vld [vmem:[%s1 + $0x158] sm:$0xff]
        %2549 = vset.pattern.permute.xlu0 3
        %2550 = vperm.xlu0 %2549, %v2544
        %v2551 = vpop.permute.xlu0 %2550
        %2554 = vset.pattern.permute.xlu0 3
        %2555 = vperm.xlu0 %2554, %v2545
        %v2556 = vpop.permute.xlu0 %2555
        %2559 = vset.pattern.permute.xlu0 3
        %2560 = vperm.xlu0 %2559, %v2546
        %v2561 = vpop.permute.xlu0 %2560
        %2564 = vset.pattern.permute.xlu0 3
        %2565 = vperm.xlu0 %2564, %v2547
        %v2566 = vpop.permute.xlu0 %2565
        %v2569 = vsel %vm1669, %v2540, 0
        %v2572 = vsel %vm1669, %v2541, 0
        %v2575 = vsel %vm1669, %v2542, 0
        %v2578 = vsel %vm1669, %v2543, 0
        %2580 = vmatprep.subr.mxu0 0.0
        %v2581 = vand.u32 %v2532, 4294901760
        %2582 = vmatpush1.msra.mxu0 %v2581
        %2583 = vmatprep.subr.mxu0 0.0
        %v2584 = vand.u32 %v2533, 4294901760
        %2585 = vmatpush1.msra.mxu0 %v2584
        %2586 = vmatprep.subr.mxu0 0.0
        %v2587 = vand.u32 %v2534, 4294901760
        %2588 = vmatpush1.msra.mxu0 %v2587
        %2589 = vmatprep.subr.mxu0 0.0
        %v2590 = vand.u32 %v2535, 4294901760
        %2591 = vmatpush1.msra.mxu0 %v2590
        %2592 = vmatprep.subr.mxu0 0.0
        %v2593 = vand.u32 %v2536, 4294901760
        %2594 = vmatpush1.msra.mxu0 %v2593
        %2595 = vmatprep.subr.mxu0 0.0
        %v2596 = vand.u32 %v2537, 4294901760
        %2597 = vmatpush1.msra.mxu0 %v2596
        %2598 = vmatprep.subr.mxu0 0.0
        %v2599 = vand.u32 %v2538, 4294901760
        %2600 = vmatpush1.msra.mxu0 %v2599
        %2601 = vmatprep.subr.mxu0 0.0
        %v2602 = vand.u32 %v2539, 4294901760
        %2603 = vmatpush1.msra.mxu0 %v2602
        %2604 = vmatprep.subr.mxu0 0.0
        %2605 = vmatpush1.msra.mxu0 0.0
        %2606 = vmatprep.subr.mxu0 0.0
        %2607 = vmatpush1.msra.mxu0 0.0
        %2608 = vmatprep.subr.mxu0 0.0
        %2609 = vmatpush1.msra.mxu0 0.0
        %2610 = vmatprep.subr.mxu0 0.0
        %2611 = vmatpush1.msra.mxu0 0.0
        %2612 = vmatprep.subr.mxu0 0.0
        %2613 = vmatpush1.msra.mxu0 0.0
        %2614 = vmatprep.subr.mxu0 0.0
        %2615 = vmatpush1.msra.mxu0 0.0
        %2616 = vmatprep.subr.mxu0 0.0
        %2617 = vmatpush1.msra.mxu0 0.0
        %2618 = vmatprep.subr.mxu0 0.0
        %2619 = vmatpush1.msra.mxu0 0.0
        %2620 = vmatprep.subr.mxu0 0.0
        %2621 = vmatpush1.msra.mxu0 0.0
        %2622 = vmatprep.subr.mxu0 0.0
        %2623 = vmatpush1.msra.mxu0 0.0
        %2624 = vmatprep.subr.mxu0 0.0
        %2625 = vmatpush1.msra.mxu0 0.0
        %2626 = vmatprep.subr.mxu0 0.0
        %2627 = vmatpush1.msra.mxu0 0.0
        %2628 = vmatprep.subr.mxu0 0.0
        %2629 = vmatpush1.msra.mxu0 0.0
        %2630 = vmatprep.subr.mxu0 0.0
        %2631 = vmatpush1.msra.mxu0 0.0
        %2632 = vmatprep.subr.mxu0 0.0
        %2633 = vmatpush1.msra.mxu0 0.0
        %2634 = vmatprep.subr.mxu0 0.0
        %2635 = vmatpush1.msra.mxu0 0.0
        %2636 = vmatprep.subr.mxu0 0.0
        %2637 = vmatpush1.msra.mxu0 0.0
        %2638 = vmatprep.subr.mxu0 0.0
        %2639 = vmatpush1.msra.mxu0 0.0
        %2640 = vmatprep.subr.mxu0 0.0
        %2641 = vmatpush1.msra.mxu0 0.0
        %2642 = vmatprep.subr.mxu0 0.0
        %2643 = vmatpush1.msra.mxu0 0.0
        %2644 = vmatprep.subr.mxu0 0.0
        %2645 = vmatpush1.msra.mxu0 0.0
        %2646 = vmatprep.subr.mxu0 0.0
        %2647 = vmatpush1.msra.mxu0 0.0
        %2648 = vmatprep.subr.mxu0 0.0
        %2649 = vmatpush1.msra.mxu0 0.0
        %2650 = vmatprep.subr.mxu0 0.0
        %2651 = vmatpush1.msra.mxu0 0.0
        %2652 = vmatprep.mubr.f32.mxu0 0.0
        %v2653 = vand.u32 %v2569, 4294901760
        %v2654 = vsub.f32 %v2569, %v2653
        %v2655 = vand.u32 %v2654, 4294901760
        %v2656 = vsub.f32 %v2654, %v2655
        %v2657 = vand.u32 %v2656, 4294901760
        %2658 = vmatmul.mubr.f32.gmra.mrb[0].mxu0 %v2657
        %v2659 = vpop.f32.mrb[0].mxu0
        %v2660 = vadd.f32 %v2551, %v2659
        %v2661 = vpop.f32.mrb[0].mxu0
        %2662 = vmatprep.mubr.f32.mxu0 0.0
        %v2663 = vand.u32 %v2572, 4294901760
        %v2664 = vsub.f32 %v2572, %v2663
        %v2665 = vand.u32 %v2664, 4294901760
        %v2666 = vsub.f32 %v2664, %v2665
        %v2667 = vand.u32 %v2666, 4294901760
        %2668 = vmatmul.mubr.f32.gmra.mrb[0].mxu0 %v2667
        %v2669 = vpop.f32.mrb[0].mxu0
        %v2670 = vadd.f32 %v2556, %v2669
        %v2671 = vpop.f32.mrb[0].mxu0
        %2672 = vmatprep.mubr.f32.mxu0 0.0
        %v2673 = vand.u32 %v2575, 4294901760
        %v2674 = vsub.f32 %v2575, %v2673
        %v2675 = vand.u32 %v2674, 4294901760
        %v2676 = vsub.f32 %v2674, %v2675
        %v2677 = vand.u32 %v2676, 4294901760
        %2678 = vmatmul.mubr.f32.gmra.mrb[0].mxu0 %v2677
        %v2679 = vpop.f32.mrb[0].mxu0
        %v2680 = vadd.f32 %v2561, %v2679
        %v2681 = vpop.f32.mrb[0].mxu0
        %2682 = vmatprep.mubr.f32.mxu0 0.0
        %v2683 = vand.u32 %v2578, 4294901760
        %v2684 = vsub.f32 %v2578, %v2683
        %v2685 = vand.u32 %v2684, 4294901760
        %v2686 = vsub.f32 %v2684, %v2685
        %v2687 = vand.u32 %v2686, 4294901760
        %2688 = vmatmul.mubr.f32.gmra.mrb[0].mxu0 %v2687
        %v2689 = vpop.f32.mrb[0].mxu0
        %v2690 = vadd.f32 %v2566, %v2689
        %v2691 = vpop.f32.mrb[0].mxu0
        %2692 = vdwg.mxu0
        %2693 = vmatprep.subr.mxu0 0.0
        %v2694 = vand.u32 %v2532, 4294901760
        %v2695 = vsub.f32 %v2532, %v2694
        %v2696 = vand.u32 %v2695, 4294901760
        %v2697 = vsub.f32 %v2695, %v2696
        %v2698 = vand.u32 %v2697, 4294901760
        %2699 = vmatpush1.msra.mxu0 %v2698
        %2700 = vmatprep.subr.mxu0 0.0
        %v2701 = vand.u32 %v2533, 4294901760
        %v2702 = vsub.f32 %v2533, %v2701
        %v2703 = vand.u32 %v2702, 4294901760
        %v2704 = vsub.f32 %v2702, %v2703
        %v2705 = vand.u32 %v2704, 4294901760
        %2706 = vmatpush1.msra.mxu0 %v2705
        %2707 = vmatprep.subr.mxu0 0.0
        %v2708 = vand.u32 %v2534, 4294901760
        %v2709 = vsub.f32 %v2534, %v2708
        %v2710 = vand.u32 %v2709, 4294901760
        %v2711 = vsub.f32 %v2709, %v2710
        %v2712 = vand.u32 %v2711, 4294901760
        %2713 = vmatpush1.msra.mxu0 %v2712
        %2714 = vmatprep.subr.mxu0 0.0
        %v2715 = vand.u32 %v2535, 4294901760
        %v2716 = vsub.f32 %v2535, %v2715
        %v2717 = vand.u32 %v2716, 4294901760
        %v2718 = vsub.f32 %v2716, %v2717
        %v2719 = vand.u32 %v2718, 4294901760
        %2720 = vmatpush1.msra.mxu0 %v2719
        %2721 = vmatprep.subr.mxu0 0.0
        %v2722 = vand.u32 %v2536, 4294901760
        %v2723 = vsub.f32 %v2536, %v2722
        %v2724 = vand.u32 %v2723, 4294901760
        %v2725 = vsub.f32 %v2723, %v2724
        %v2726 = vand.u32 %v2725, 4294901760
        %2727 = vmatpush1.msra.mxu0 %v2726
        %2728 = vmatprep.subr.mxu0 0.0
        %v2729 = vand.u32 %v2537, 4294901760
        %v2730 = vsub.f32 %v2537, %v2729
        %v2731 = vand.u32 %v2730, 4294901760
        %v2732 = vsub.f32 %v2730, %v2731
        %v2733 = vand.u32 %v2732, 4294901760
        %2734 = vmatpush1.msra.mxu0 %v2733
        %2735 = vmatprep.subr.mxu0 0.0
        %v2736 = vand.u32 %v2538, 4294901760
        %v2737 = vsub.f32 %v2538, %v2736
        %v2738 = vand.u32 %v2737, 4294901760
        %v2739 = vsub.f32 %v2737, %v2738
        %v2740 = vand.u32 %v2739, 4294901760
        %2741 = vmatpush1.msra.mxu0 %v2740
        %2742 = vmatprep.subr.mxu0 0.0
        %v2743 = vand.u32 %v2539, 4294901760
        %v2744 = vsub.f32 %v2539, %v2743
        %v2745 = vand.u32 %v2744, 4294901760
        %v2746 = vsub.f32 %v2744, %v2745
        %v2747 = vand.u32 %v2746, 4294901760
        %2748 = vmatpush1.msra.mxu0 %v2747
        %2749 = vmatprep.subr.mxu0 0.0
        %2750 = vmatpush1.msra.mxu0 0.0
        %2751 = vmatprep.subr.mxu0 0.0
        %2752 = vmatpush1.msra.mxu0 0.0
        %2753 = vmatprep.subr.mxu0 0.0
        %2754 = vmatpush1.msra.mxu0 0.0
        %2755 = vmatprep.subr.mxu0 0.0
        %2756 = vmatpush1.msra.mxu0 0.0
        %2757 = vmatprep.subr.mxu0 0.0
        %2758 = vmatpush1.msra.mxu0 0.0
        %2759 = vmatprep.subr.mxu0 0.0
        %2760 = vmatpush1.msra.mxu0 0.0
        %2761 = vmatprep.subr.mxu0 0.0
        %2762 = vmatpush1.msra.mxu0 0.0
        %2763 = vmatprep.subr.mxu0 0.0
        %2764 = vmatpush1.msra.mxu0 0.0
        %2765 = vmatprep.subr.mxu0 0.0
        %2766 = vmatpush1.msra.mxu0 0.0
        %2767 = vmatprep.subr.mxu0 0.0
        %2768 = vmatpush1.msra.mxu0 0.0
        %2769 = vmatprep.subr.mxu0 0.0
        %2770 = vmatpush1.msra.mxu0 0.0
        %2771 = vmatprep.subr.mxu0 0.0
        %2772 = vmatpush1.msra.mxu0 0.0
        %2773 = vmatprep.subr.mxu0 0.0
        %2774 = vmatpush1.msra.mxu0 0.0
        %2775 = vmatprep.subr.mxu0 0.0
        %2776 = vmatpush1.msra.mxu0 0.0
        %2777 = vmatprep.subr.mxu0 0.0
        %2778 = vmatpush1.msra.mxu0 0.0
        %2779 = vmatprep.subr.mxu0 0.0
        %2780 = vmatpush1.msra.mxu0 0.0
        %2781 = vmatprep.subr.mxu0 0.0
        %2782 = vmatpush1.msra.mxu0 0.0
        %2783 = vmatprep.subr.mxu0 0.0
        %2784 = vmatpush1.msra.mxu0 0.0
        %2785 = vmatprep.subr.mxu0 0.0
        %2786 = vmatpush1.msra.mxu0 0.0
        %2787 = vmatprep.subr.mxu0 0.0
        %2788 = vmatpush1.msra.mxu0 0.0
        %2789 = vmatprep.subr.mxu0 0.0
        %2790 = vmatpush1.msra.mxu0 0.0
        %2791 = vmatprep.subr.mxu0 0.0
        %2792 = vmatpush1.msra.mxu0 0.0
        %2793 = vmatprep.subr.mxu0 0.0
        %2794 = vmatpush1.msra.mxu0 0.0
        %2795 = vmatprep.subr.mxu0 0.0
        %2796 = vmatpush1.msra.mxu0 0.0
        %2797 = vmatprep.mubr.f32.mxu0 0.0
        %v2798 = vand.u32 %v2569, 4294901760
        %2799 = vmatmul.mubr.f32.gmra.mrb[0].mxu0 %v2798
        %v2800 = vpop.f32.mrb[0].mxu0
        %v2801 = vadd.f32 %v2660, %v2800
        %v2802 = vpop.f32.mrb[0].mxu0
        %2803 = vmatprep.mubr.f32.mxu0 0.0
        %v2804 = vand.u32 %v2572, 4294901760
        %2805 = vmatmul.mubr.f32.gmra.mrb[0].mxu0 %v2804
        %v2806 = vpop.f32.mrb[0].mxu0
        %v2807 = vadd.f32 %v2670, %v2806
        %v2808 = vpop.f32.mrb[0].mxu0
        %2809 = vmatprep.mubr.f32.mxu0 0.0
        %v2810 = vand.u32 %v2575, 4294901760
        %2811 = vmatmul.mubr.f32.gmra.mrb[0].mxu0 %v2810
        %v2812 = vpop.f32.mrb[0].mxu0
        %v2813 = vadd.f32 %v2680, %v2812
        %v2814 = vpop.f32.mrb[0].mxu0
        %2815 = vmatprep.mubr.f32.mxu0 0.0
        %v2816 = vand.u32 %v2578, 4294901760
        %2817 = vmatmul.mubr.f32.gmra.mrb[0].mxu0 %v2816
        %v2818 = vpop.f32.mrb[0].mxu0
        %v2819 = vadd.f32 %v2690, %v2818
        %v2820 = vpop.f32.mrb[0].mxu0
        %2821 = vdwg.mxu0
        %2822 = vmatprep.subr.mxu0 0.0
        %v2823 = vand.u32 %v2532, 4294901760
        %v2824 = vsub.f32 %v2532, %v2823
        %2825 = vmatpush1.msra.mxu0 %v2824
        %2826 = vmatprep.subr.mxu0 0.0
        %v2827 = vand.u32 %v2533, 4294901760
        %v2828 = vsub.f32 %v2533, %v2827
        %2829 = vmatpush1.msra.mxu0 %v2828
        %2830 = vmatprep.subr.mxu0 0.0
        %v2831 = vand.u32 %v2534, 4294901760
        %v2832 = vsub.f32 %v2534, %v2831
        %2833 = vmatpush1.msra.mxu0 %v2832
        %2834 = vmatprep.subr.mxu0 0.0
        %v2835 = vand.u32 %v2535, 4294901760
        %v2836 = vsub.f32 %v2535, %v2835
        %2837 = vmatpush1.msra.mxu0 %v2836
        %2838 = vmatprep.subr.mxu0 0.0
        %v2839 = vand.u32 %v2536, 4294901760
        %v2840 = vsub.f32 %v2536, %v2839
        %2841 = vmatpush1.msra.mxu0 %v2840
        %2842 = vmatprep.subr.mxu0 0.0
        %v2843 = vand.u32 %v2537, 4294901760
        %v2844 = vsub.f32 %v2537, %v2843
        %2845 = vmatpush1.msra.mxu0 %v2844
        %2846 = vmatprep.subr.mxu0 0.0
        %v2847 = vand.u32 %v2538, 4294901760
        %v2848 = vsub.f32 %v2538, %v2847
        %2849 = vmatpush1.msra.mxu0 %v2848
        %2850 = vmatprep.subr.mxu0 0.0
        %v2851 = vand.u32 %v2539, 4294901760
        %v2852 = vsub.f32 %v2539, %v2851
        %2853 = vmatpush1.msra.mxu0 %v2852
        %2854 = vmatprep.subr.mxu0 0.0
        %2855 = vmatpush1.msra.mxu0 0.0
        %2856 = vmatprep.subr.mxu0 0.0
        %2857 = vmatpush1.msra.mxu0 0.0
        %2858 = vmatprep.subr.mxu0 0.0
        %2859 = vmatpush1.msra.mxu0 0.0
        %2860 = vmatprep.subr.mxu0 0.0
        %2861 = vmatpush1.msra.mxu0 0.0
        %2862 = vmatprep.subr.mxu0 0.0
        %2863 = vmatpush1.msra.mxu0 0.0
        %2864 = vmatprep.subr.mxu0 0.0
        %2865 = vmatpush1.msra.mxu0 0.0
        %2866 = vmatprep.subr.mxu0 0.0
        %2867 = vmatpush1.msra.mxu0 0.0
        %2868 = vmatprep.subr.mxu0 0.0
        %2869 = vmatpush1.msra.mxu0 0.0
        %2870 = vmatprep.subr.mxu0 0.0
        %2871 = vmatpush1.msra.mxu0 0.0
        %2872 = vmatprep.subr.mxu0 0.0
        %2873 = vmatpush1.msra.mxu0 0.0
        %2874 = vmatprep.subr.mxu0 0.0
        %2875 = vmatpush1.msra.mxu0 0.0
        %2876 = vmatprep.subr.mxu0 0.0
        %2877 = vmatpush1.msra.mxu0 0.0
        %2878 = vmatprep.subr.mxu0 0.0
        %2879 = vmatpush1.msra.mxu0 0.0
        %2880 = vmatprep.subr.mxu0 0.0
        %2881 = vmatpush1.msra.mxu0 0.0
        %2882 = vmatprep.subr.mxu0 0.0
        %2883 = vmatpush1.msra.mxu0 0.0
        %2884 = vmatprep.subr.mxu0 0.0
        %2885 = vmatpush1.msra.mxu0 0.0
        %2886 = vmatprep.subr.mxu0 0.0
        %2887 = vmatpush1.msra.mxu0 0.0
        %2888 = vmatprep.subr.mxu0 0.0
        %2889 = vmatpush1.msra.mxu0 0.0
        %2890 = vmatprep.subr.mxu0 0.0
        %2891 = vmatpush1.msra.mxu0 0.0
        %2892 = vmatprep.subr.mxu0 0.0
        %2893 = vmatpush1.msra.mxu0 0.0
        %2894 = vmatprep.subr.mxu0 0.0
        %2895 = vmatpush1.msra.mxu0 0.0
        %2896 = vmatprep.subr.mxu0 0.0
        %2897 = vmatpush1.msra.mxu0 0.0
        %2898 = vmatprep.subr.mxu0 0.0
        %2899 = vmatpush1.msra.mxu0 0.0
        %2900 = vmatprep.subr.mxu0 0.0
        %2901 = vmatpush1.msra.mxu0 0.0
        %2902 = vmatprep.mubr.f32.mxu0 0.0
        %v2903 = vand.u32 %v2569, 4294901760
        %v2904 = vsub.f32 %v2569, %v2903
        %2905 = vmatmul.mubr.f32.gmra.mrb[0].mxu0 %v2904
        %v2906 = vpop.f32.mrb[0].mxu0
        %v2907 = vadd.f32 %v2801, %v2906
        %v2908 = vpop.f32.mrb[0].mxu0
        %2909 = vmatprep.mubr.f32.mxu0 0.0
        %v2910 = vand.u32 %v2572, 4294901760
        %v2911 = vsub.f32 %v2572, %v2910
        %2912 = vmatmul.mubr.f32.gmra.mrb[0].mxu0 %v2911
        %v2913 = vpop.f32.mrb[0].mxu0
        %v2914 = vadd.f32 %v2807, %v2913
        %v2915 = vpop.f32.mrb[0].mxu0
        %2916 = vmatprep.mubr.f32.mxu0 0.0
        %v2917 = vand.u32 %v2575, 4294901760
        %v2918 = vsub.f32 %v2575, %v2917
        %2919 = vmatmul.mubr.f32.gmra.mrb[0].mxu0 %v2918
        %v2920 = vpop.f32.mrb[0].mxu0
        %v2921 = vadd.f32 %v2813, %v2920
        %v2922 = vpop.f32.mrb[0].mxu0
        %2923 = vmatprep.mubr.f32.mxu0 0.0
        %v2924 = vand.u32 %v2578, 4294901760
        %v2925 = vsub.f32 %v2578, %v2924
        %2926 = vmatmul.mubr.f32.gmra.mrb[0].mxu0 %v2925
        %v2927 = vpop.f32.mrb[0].mxu0
        %v2928 = vadd.f32 %v2819, %v2927
        %v2929 = vpop.f32.mrb[0].mxu0
        %2930 = vdwg.mxu0
        %2931 = vmatprep.subr.mxu0 0.0
        %v2932 = vand.u32 %v2532, 4294901760
        %2933 = vmatpush1.msra.mxu0 %v2932
        %2934 = vmatprep.subr.mxu0 0.0
        %v2935 = vand.u32 %v2533, 4294901760
        %2936 = vmatpush1.msra.mxu0 %v2935
        %2937 = vmatprep.subr.mxu0 0.0
        %v2938 = vand.u32 %v2534, 4294901760
        %2939 = vmatpush1.msra.mxu0 %v2938
        %2940 = vmatprep.subr.mxu0 0.0
        %v2941 = vand.u32 %v2535, 4294901760
        %2942 = vmatpush1.msra.mxu0 %v2941
        %2943 = vmatprep.subr.mxu0 0.0
        %v2944 = vand.u32 %v2536, 4294901760
        %2945 = vmatpush1.msra.mxu0 %v2944
        %2946 = vmatprep.subr.mxu0 0.0
        %v2947 = vand.u32 %v2537, 4294901760
        %2948 = vmatpush1.msra.mxu0 %v2947
        %2949 = vmatprep.subr.mxu0 0.0
        %v2950 = vand.u32 %v2538, 4294901760
        %2951 = vmatpush1.msra.mxu0 %v2950
        %2952 = vmatprep.subr.mxu0 0.0
        %v2953 = vand.u32 %v2539, 4294901760
        %2954 = vmatpush1.msra.mxu0 %v2953
        %2955 = vmatprep.subr.mxu0 0.0
        %2956 = vmatpush1.msra.mxu0 0.0
        %2957 = vmatprep.subr.mxu0 0.0
        %2958 = vmatpush1.msra.mxu0 0.0
        %2959 = vmatprep.subr.mxu0 0.0
        %2960 = vmatpush1.msra.mxu0 0.0
        %2961 = vmatprep.subr.mxu0 0.0
        %2962 = vmatpush1.msra.mxu0 0.0
        %2963 = vmatprep.subr.mxu0 0.0
        %2964 = vmatpush1.msra.mxu0 0.0
        %2965 = vmatprep.subr.mxu0 0.0
        %2966 = vmatpush1.msra.mxu0 0.0
        %2967 = vmatprep.subr.mxu0 0.0
        %2968 = vmatpush1.msra.mxu0 0.0
        %2969 = vmatprep.subr.mxu0 0.0
        %2970 = vmatpush1.msra.mxu0 0.0
        %2971 = vmatprep.subr.mxu0 0.0
        %2972 = vmatpush1.msra.mxu0 0.0
        %2973 = vmatprep.subr.mxu0 0.0
        %2974 = vmatpush1.msra.mxu0 0.0
        %2975 = vmatprep.subr.mxu0 0.0
        %2976 = vmatpush1.msra.mxu0 0.0
        %2977 = vmatprep.subr.mxu0 0.0
        %2978 = vmatpush1.msra.mxu0 0.0
        %2979 = vmatprep.subr.mxu0 0.0
        %2980 = vmatpush1.msra.mxu0 0.0
        %2981 = vmatprep.subr.mxu0 0.0
        %2982 = vmatpush1.msra.mxu0 0.0
        %2983 = vmatprep.subr.mxu0 0.0
        %2984 = vmatpush1.msra.mxu0 0.0
        %2985 = vmatprep.subr.mxu0 0.0
        %2986 = vmatpush1.msra.mxu0 0.0
        %2987 = vmatprep.subr.mxu0 0.0
        %2988 = vmatpush1.msra.mxu0 0.0
        %2989 = vmatprep.subr.mxu0 0.0
        %2990 = vmatpush1.msra.mxu0 0.0
        %2991 = vmatprep.subr.mxu0 0.0
        %2992 = vmatpush1.msra.mxu0 0.0
        %2993 = vmatprep.subr.mxu0 0.0
        %2994 = vmatpush1.msra.mxu0 0.0
        %2995 = vmatprep.subr.mxu0 0.0
        %2996 = vmatpush1.msra.mxu0 0.0
        %2997 = vmatprep.subr.mxu0 0.0
        %2998 = vmatpush1.msra.mxu0 0.0
        %2999 = vmatprep.subr.mxu0 0.0
        %3000 = vmatpush1.msra.mxu0 0.0
        %3001 = vmatprep.subr.mxu0 0.0
        %3002 = vmatpush1.msra.mxu0 0.0
        %3003 = vmatprep.mubr.f32.mxu0 0.0
        %v3004 = vand.u32 %v2569, 4294901760
        %v3005 = vsub.f32 %v2569, %v3004
        %v3006 = vand.u32 %v3005, 4294901760
        %3007 = vmatmul.mubr.f32.gmra.mrb[0].mxu0 %v3006
        %v3008 = vpop.f32.mrb[0].mxu0
        %v3009 = vadd.f32 %v2907, %v3008
        %v3010 = vpop.f32.mrb[0].mxu0
        %3011 = vmatprep.mubr.f32.mxu0 0.0
        %v3012 = vand.u32 %v2572, 4294901760
        %v3013 = vsub.f32 %v2572, %v3012
        %v3014 = vand.u32 %v3013, 4294901760
        %3015 = vmatmul.mubr.f32.gmra.mrb[0].mxu0 %v3014
        %v3016 = vpop.f32.mrb[0].mxu0
        %v3017 = vadd.f32 %v2914, %v3016
        %v3018 = vpop.f32.mrb[0].mxu0
        %3019 = vmatprep.mubr.f32.mxu0 0.0
        %v3020 = vand.u32 %v2575, 4294901760
        %v3021 = vsub.f32 %v2575, %v3020
        %v3022 = vand.u32 %v3021, 4294901760
        %3023 = vmatmul.mubr.f32.gmra.mrb[0].mxu0 %v3022
        %v3024 = vpop.f32.mrb[0].mxu0
        %v3025 = vadd.f32 %v2921, %v3024
        %v3026 = vpop.f32.mrb[0].mxu0
        %3027 = vmatprep.mubr.f32.mxu0 0.0
        %v3028 = vand.u32 %v2578, 4294901760
        %v3029 = vsub.f32 %v2578, %v3028
        %v3030 = vand.u32 %v3029, 4294901760
        %3031 = vmatmul.mubr.f32.gmra.mrb[0].mxu0 %v3030
        %v3032 = vpop.f32.mrb[0].mxu0
        %v3033 = vadd.f32 %v2928, %v3032
        %v3034 = vpop.f32.mrb[0].mxu0
        %3035 = vdwg.mxu0
        %3036 = vmatprep.subr.mxu0 0.0
        %v3037 = vand.u32 %v2532, 4294901760
        %v3038 = vsub.f32 %v2532, %v3037
        %v3039 = vand.u32 %v3038, 4294901760
        %3040 = vmatpush1.msra.mxu0 %v3039
        %3041 = vmatprep.subr.mxu0 0.0
        %v3042 = vand.u32 %v2533, 4294901760
        %v3043 = vsub.f32 %v2533, %v3042
        %v3044 = vand.u32 %v3043, 4294901760
        %3045 = vmatpush1.msra.mxu0 %v3044
        %3046 = vmatprep.subr.mxu0 0.0
        %v3047 = vand.u32 %v2534, 4294901760
        %v3048 = vsub.f32 %v2534, %v3047
        %v3049 = vand.u32 %v3048, 4294901760
        %3050 = vmatpush1.msra.mxu0 %v3049
        %3051 = vmatprep.subr.mxu0 0.0
        %v3052 = vand.u32 %v2535, 4294901760
        %v3053 = vsub.f32 %v2535, %v3052
        %v3054 = vand.u32 %v3053, 4294901760
        %3055 = vmatpush1.msra.mxu0 %v3054
        %3056 = vmatprep.subr.mxu0 0.0
        %v3057 = vand.u32 %v2536, 4294901760
        %v3058 = vsub.f32 %v2536, %v3057
        %v3059 = vand.u32 %v3058, 4294901760
        %3060 = vmatpush1.msra.mxu0 %v3059
        %3061 = vmatprep.subr.mxu0 0.0
        %v3062 = vand.u32 %v2537, 4294901760
        %v3063 = vsub.f32 %v2537, %v3062
        %v3064 = vand.u32 %v3063, 4294901760
        %3065 = vmatpush1.msra.mxu0 %v3064
        %3066 = vmatprep.subr.mxu0 0.0
        %v3067 = vand.u32 %v2538, 4294901760
        %v3068 = vsub.f32 %v2538, %v3067
        %v3069 = vand.u32 %v3068, 4294901760
        %3070 = vmatpush1.msra.mxu0 %v3069
        %3071 = vmatprep.subr.mxu0 0.0
        %v3072 = vand.u32 %v2539, 4294901760
        %v3073 = vsub.f32 %v2539, %v3072
        %v3074 = vand.u32 %v3073, 4294901760
        %3075 = vmatpush1.msra.mxu0 %v3074
        %3076 = vmatprep.subr.mxu0 0.0
        %3077 = vmatpush1.msra.mxu0 0.0
        %3078 = vmatprep.subr.mxu0 0.0
        %3079 = vmatpush1.msra.mxu0 0.0
        %3080 = vmatprep.subr.mxu0 0.0
        %3081 = vmatpush1.msra.mxu0 0.0
        %3082 = vmatprep.subr.mxu0 0.0
        %3083 = vmatpush1.msra.mxu0 0.0
        %3084 = vmatprep.subr.mxu0 0.0
        %3085 = vmatpush1.msra.mxu0 0.0
        %3086 = vmatprep.subr.mxu0 0.0
        %3087 = vmatpush1.msra.mxu0 0.0
        %3088 = vmatprep.subr.mxu0 0.0
        %3089 = vmatpush1.msra.mxu0 0.0
        %3090 = vmatprep.subr.mxu0 0.0
        %3091 = vmatpush1.msra.mxu0 0.0
        %3092 = vmatprep.subr.mxu0 0.0
        %3093 = vmatpush1.msra.mxu0 0.0
        %3094 = vmatprep.subr.mxu0 0.0
        %3095 = vmatpush1.msra.mxu0 0.0
        %3096 = vmatprep.subr.mxu0 0.0
        %3097 = vmatpush1.msra.mxu0 0.0
        %3098 = vmatprep.subr.mxu0 0.0
        %3099 = vmatpush1.msra.mxu0 0.0
        %3100 = vmatprep.subr.mxu0 0.0
        %3101 = vmatpush1.msra.mxu0 0.0
        %3102 = vmatprep.subr.mxu0 0.0
        %3103 = vmatpush1.msra.mxu0 0.0
        %3104 = vmatprep.subr.mxu0 0.0
        %3105 = vmatpush1.msra.mxu0 0.0
        %3106 = vmatprep.subr.mxu0 0.0
        %3107 = vmatpush1.msra.mxu0 0.0
        %3108 = vmatprep.subr.mxu0 0.0
        %3109 = vmatpush1.msra.mxu0 0.0
        %3110 = vmatprep.subr.mxu0 0.0
        %3111 = vmatpush1.msra.mxu0 0.0
        %3112 = vmatprep.subr.mxu0 0.0
        %3113 = vmatpush1.msra.mxu0 0.0
        %3114 = vmatprep.subr.mxu0 0.0
        %3115 = vmatpush1.msra.mxu0 0.0
        %3116 = vmatprep.subr.mxu0 0.0
        %3117 = vmatpush1.msra.mxu0 0.0
        %3118 = vmatprep.subr.mxu0 0.0
        %3119 = vmatpush1.msra.mxu0 0.0
        %3120 = vmatprep.subr.mxu0 0.0
        %3121 = vmatpush1.msra.mxu0 0.0
        %3122 = vmatprep.subr.mxu0 0.0
        %3123 = vmatpush1.msra.mxu0 0.0
        %3124 = vmatprep.mubr.f32.mxu0 0.0
        %v3125 = vand.u32 %v2569, 4294901760
        %3126 = vmatmul.mubr.f32.gmra.mrb[0].mxu0 %v3125
        %v3127 = vpop.f32.mrb[0].mxu0
        %v3128 = vadd.f32 %v3009, %v3127
        %v3129 = vpop.f32.mrb[0].mxu0
        %3130 = vmatprep.mubr.f32.mxu0 0.0
        %v3131 = vand.u32 %v2572, 4294901760
        %3132 = vmatmul.mubr.f32.gmra.mrb[0].mxu0 %v3131
        %v3133 = vpop.f32.mrb[0].mxu0
        %v3134 = vadd.f32 %v3017, %v3133
        %v3135 = vpop.f32.mrb[0].mxu0
        %3136 = vmatprep.mubr.f32.mxu0 0.0
        %v3137 = vand.u32 %v2575, 4294901760
        %3138 = vmatmul.mubr.f32.gmra.mrb[0].mxu0 %v3137
        %v3139 = vpop.f32.mrb[0].mxu0
        %v3140 = vadd.f32 %v3025, %v3139
        %v3141 = vpop.f32.mrb[0].mxu0
        %3142 = vmatprep.mubr.f32.mxu0 0.0
        %v3143 = vand.u32 %v2578, 4294901760
        %3144 = vmatmul.mubr.f32.gmra.mrb[0].mxu0 %v3143
        %v3145 = vpop.f32.mrb[0].mxu0
        %v3146 = vadd.f32 %v3033, %v3145
        %v3147 = vpop.f32.mrb[0].mxu0
        %3148 = vdwg.mxu0
        %3149 = vmatprep.subr.mxu0 0.0
        %v3150 = vand.u32 %v2532, 4294901760
        %3151 = vmatpush1.msra.mxu0 %v3150
        %3152 = vmatprep.subr.mxu0 0.0
        %v3153 = vand.u32 %v2533, 4294901760
        %3154 = vmatpush1.msra.mxu0 %v3153
        %3155 = vmatprep.subr.mxu0 0.0
        %v3156 = vand.u32 %v2534, 4294901760
        %3157 = vmatpush1.msra.mxu0 %v3156
        %3158 = vmatprep.subr.mxu0 0.0
        %v3159 = vand.u32 %v2535, 4294901760
        %3160 = vmatpush1.msra.mxu0 %v3159
        %3161 = vmatprep.subr.mxu0 0.0
        %v3162 = vand.u32 %v2536, 4294901760
        %3163 = vmatpush1.msra.mxu0 %v3162
        %3164 = vmatprep.subr.mxu0 0.0
        %v3165 = vand.u32 %v2537, 4294901760
        %3166 = vmatpush1.msra.mxu0 %v3165
        %3167 = vmatprep.subr.mxu0 0.0
        %v3168 = vand.u32 %v2538, 4294901760
        %3169 = vmatpush1.msra.mxu0 %v3168
        %3170 = vmatprep.subr.mxu0 0.0
        %v3171 = vand.u32 %v2539, 4294901760
        %3172 = vmatpush1.msra.mxu0 %v3171
        %3173 = vmatprep.subr.mxu0 0.0
        %3174 = vmatpush1.msra.mxu0 0.0
        %3175 = vmatprep.subr.mxu0 0.0
        %3176 = vmatpush1.msra.mxu0 0.0
        %3177 = vmatprep.subr.mxu0 0.0
        %3178 = vmatpush1.msra.mxu0 0.0
        %3179 = vmatprep.subr.mxu0 0.0
        %3180 = vmatpush1.msra.mxu0 0.0
        %3181 = vmatprep.subr.mxu0 0.0
        %3182 = vmatpush1.msra.mxu0 0.0
        %3183 = vmatprep.subr.mxu0 0.0
        %3184 = vmatpush1.msra.mxu0 0.0
        %3185 = vmatprep.subr.mxu0 0.0
        %3186 = vmatpush1.msra.mxu0 0.0
        %3187 = vmatprep.subr.mxu0 0.0
        %3188 = vmatpush1.msra.mxu0 0.0
        %3189 = vmatprep.subr.mxu0 0.0
        %3190 = vmatpush1.msra.mxu0 0.0
        %3191 = vmatprep.subr.mxu0 0.0
        %3192 = vmatpush1.msra.mxu0 0.0
        %3193 = vmatprep.subr.mxu0 0.0
        %3194 = vmatpush1.msra.mxu0 0.0
        %3195 = vmatprep.subr.mxu0 0.0
        %3196 = vmatpush1.msra.mxu0 0.0
        %3197 = vmatprep.subr.mxu0 0.0
        %3198 = vmatpush1.msra.mxu0 0.0
        %3199 = vmatprep.subr.mxu0 0.0
        %3200 = vmatpush1.msra.mxu0 0.0
        %3201 = vmatprep.subr.mxu0 0.0
        %3202 = vmatpush1.msra.mxu0 0.0
        %3203 = vmatprep.subr.mxu0 0.0
        %3204 = vmatpush1.msra.mxu0 0.0
        %3205 = vmatprep.subr.mxu0 0.0
        %3206 = vmatpush1.msra.mxu0 0.0
        %3207 = vmatprep.subr.mxu0 0.0
        %3208 = vmatpush1.msra.mxu0 0.0
        %3209 = vmatprep.subr.mxu0 0.0
        %3210 = vmatpush1.msra.mxu0 0.0
        %3211 = vmatprep.subr.mxu0 0.0
        %3212 = vmatpush1.msra.mxu0 0.0
        %3213 = vmatprep.subr.mxu0 0.0
        %3214 = vmatpush1.msra.mxu0 0.0
        %3215 = vmatprep.subr.mxu0 0.0
        %3216 = vmatpush1.msra.mxu0 0.0
        %3217 = vmatprep.subr.mxu0 0.0
        %3218 = vmatpush1.msra.mxu0 0.0
        %3219 = vmatprep.subr.mxu0 0.0
        %3220 = vmatpush1.msra.mxu0 0.0
        %3221 = vmatprep.mubr.f32.mxu0 0.0
        %v3222 = vand.u32 %v2569, 4294901760
        %3223 = vmatmul.mubr.f32.gmra.mrb[0].mxu0 %v3222
        %v3224 = vpop.f32.mrb[0].mxu0
        %v3225 = vadd.f32 %v3128, %v3224
        %v3226 = vpop.f32.mrb[0].mxu0
        %3227 = vmatprep.mubr.f32.mxu0 0.0
        %v3228 = vand.u32 %v2572, 4294901760
        %3229 = vmatmul.mubr.f32.gmra.mrb[0].mxu0 %v3228
        %v3230 = vpop.f32.mrb[0].mxu0
        %v3231 = vadd.f32 %v3134, %v3230
        %v3232 = vpop.f32.mrb[0].mxu0
        %3233 = vmatprep.mubr.f32.mxu0 0.0
        %v3234 = vand.u32 %v2575, 4294901760
        %3235 = vmatmul.mubr.f32.gmra.mrb[0].mxu0 %v3234
        %v3236 = vpop.f32.mrb[0].mxu0
        %v3237 = vadd.f32 %v3140, %v3236
        %v3238 = vpop.f32.mrb[0].mxu0
        %3239 = vmatprep.mubr.f32.mxu0 0.0
        %v3240 = vand.u32 %v2578, 4294901760
        %3241 = vmatmul.mubr.f32.gmra.mrb[0].mxu0 %v3240
        %v3242 = vpop.f32.mrb[0].mxu0
        %v3243 = vadd.f32 %v3146, %v3242
        %v3244 = vpop.f32.mrb[0].mxu0
        %3245 = vdwg.mxu0
        %v3246 = vmax.f32 %v3225, 0.0
        %v3247 = vmax.f32 %v3231, 0.0
        %v3248 = vmax.f32 %v3237, 0.0
        %v3249 = vmax.f32 %v3243, 0.0
        %v3250 = vld [vmem:[%s1 + $0xb0] sm:$0xff]
        %v3251 = vld [vmem:[%s1 + $0xb8] sm:$0xff]
        %3252 = vset.pattern.permute.xlu0 4
        %3253 = vperm.xlu0 %3252, %v1095
        %v3254 = vpop.permute.xlu0 %3253
        %3256 = vset.pattern.permute.xlu0 4
        %3257 = vperm.xlu0 %3256, %v1096
        %v3258 = vpop.permute.xlu0 %3257
        %v3261 = vsel %vm282, %v3250, 0
        %v3264 = vsel %vm282, %v3251, 0
        %3266 = vmatprep.subr.mxu0 0.0
        %v3267 = vand.u32 %v3246, 4294901760
        %3268 = vmatpush1.msra.mxu0 %v3267
        %3269 = vmatprep.subr.mxu0 0.0
        %v3270 = vand.u32 %v3247, 4294901760
        %3271 = vmatpush1.msra.mxu0 %v3270
        %3272 = vmatprep.subr.mxu0 0.0
        %v3273 = vand.u32 %v3248, 4294901760
        %3274 = vmatpush1.msra.mxu0 %v3273
        %3275 = vmatprep.subr.mxu0 0.0
        %v3276 = vand.u32 %v3249, 4294901760
        %3277 = vmatpush1.msra.mxu0 %v3276
        %3278 = vmatprep.subr.mxu0 0.0
        %3279 = vmatpush1.msra.mxu0 0.0
        %3280 = vmatprep.subr.mxu0 0.0
        %3281 = vmatpush1.msra.mxu0 0.0
        %3282 = vmatprep.subr.mxu0 0.0
        %3283 = vmatpush1.msra.mxu0 0.0
        %3284 = vmatprep.subr.mxu0 0.0
        %3285 = vmatpush1.msra.mxu0 0.0
        %3286 = vmatprep.subr.mxu0 0.0
        %3287 = vmatpush1.msra.mxu0 0.0
        %3288 = vmatprep.subr.mxu0 0.0
        %3289 = vmatpush1.msra.mxu0 0.0
        %3290 = vmatprep.subr.mxu0 0.0
        %3291 = vmatpush1.msra.mxu0 0.0
        %3292 = vmatprep.subr.mxu0 0.0
        %3293 = vmatpush1.msra.mxu0 0.0
        %3294 = vmatprep.subr.mxu0 0.0
        %3295 = vmatpush1.msra.mxu0 0.0
        %3296 = vmatprep.subr.mxu0 0.0
        %3297 = vmatpush1.msra.mxu0 0.0
        %3298 = vmatprep.subr.mxu0 0.0
        %3299 = vmatpush1.msra.mxu0 0.0
        %3300 = vmatprep.subr.mxu0 0.0
        %3301 = vmatpush1.msra.mxu0 0.0
        %3302 = vmatprep.subr.mxu0 0.0
        %3303 = vmatpush1.msra.mxu0 0.0
        %3304 = vmatprep.subr.mxu0 0.0
        %3305 = vmatpush1.msra.mxu0 0.0
        %3306 = vmatprep.subr.mxu0 0.0
        %3307 = vmatpush1.msra.mxu0 0.0
        %3308 = vmatprep.subr.mxu0 0.0
        %3309 = vmatpush1.msra.mxu0 0.0
        %3310 = vmatprep.subr.mxu0 0.0
        %3311 = vmatpush1.msra.mxu0 0.0
        %3312 = vmatprep.subr.mxu0 0.0
        %3313 = vmatpush1.msra.mxu0 0.0
        %3314 = vmatprep.subr.mxu0 0.0
        %3315 = vmatpush1.msra.mxu0 0.0
        %3316 = vmatprep.subr.mxu0 0.0
        %3317 = vmatpush1.msra.mxu0 0.0
        %3318 = vmatprep.subr.mxu0 0.0
        %3319 = vmatpush1.msra.mxu0 0.0
        %3320 = vmatprep.subr.mxu0 0.0
        %3321 = vmatpush1.msra.mxu0 0.0
        %3322 = vmatprep.subr.mxu0 0.0
        %3323 = vmatpush1.msra.mxu0 0.0
        %3324 = vmatprep.subr.mxu0 0.0
        %3325 = vmatpush1.msra.mxu0 0.0
        %3326 = vmatprep.subr.mxu0 0.0
        %3327 = vmatpush1.msra.mxu0 0.0
        %3328 = vmatprep.subr.mxu0 0.0
        %3329 = vmatpush1.msra.mxu0 0.0
        %3330 = vmatprep.subr.mxu0 0.0
        %3331 = vmatpush1.msra.mxu0 0.0
        %3332 = vmatprep.subr.mxu0 0.0
        %3333 = vmatpush1.msra.mxu0 0.0
        %3334 = vmatprep.mubr.f32.mxu0 0.0
        %v3335 = vand.u32 %v3261, 4294901760
        %v3336 = vsub.f32 %v3261, %v3335
        %v3337 = vand.u32 %v3336, 4294901760
        %v3338 = vsub.f32 %v3336, %v3337
        %v3339 = vand.u32 %v3338, 4294901760
        %3340 = vmatmul.mubr.f32.gmra.mrb[0].mxu0 %v3339
        %v3341 = vpop.f32.mrb[0].mxu0
        %v3342 = vadd.f32 %v3254, %v3341
        %v3343 = vpop.f32.mrb[0].mxu0
        %3344 = vmatprep.mubr.f32.mxu0 0.0
        %v3345 = vand.u32 %v3264, 4294901760
        %v3346 = vsub.f32 %v3264, %v3345
        %v3347 = vand.u32 %v3346, 4294901760
        %v3348 = vsub.f32 %v3346, %v3347
        %v3349 = vand.u32 %v3348, 4294901760
        %3350 = vmatmul.mubr.f32.gmra.mrb[0].mxu0 %v3349
        %v3351 = vpop.f32.mrb[0].mxu0
        %v3352 = vadd.f32 %v3258, %v3351
        %v3353 = vpop.f32.mrb[0].mxu0
        %3354 = vdwg.mxu0
        %3355 = vmatprep.subr.mxu0 0.0
        %v3356 = vand.u32 %v3246, 4294901760
        %v3357 = vsub.f32 %v3246, %v3356
        %v3358 = vand.u32 %v3357, 4294901760
        %v3359 = vsub.f32 %v3357, %v3358
        %v3360 = vand.u32 %v3359, 4294901760
        %3361 = vmatpush1.msra.mxu0 %v3360
        %3362 = vmatprep.subr.mxu0 0.0
        %v3363 = vand.u32 %v3247, 4294901760
        %v3364 = vsub.f32 %v3247, %v3363
        %v3365 = vand.u32 %v3364, 4294901760
        %v3366 = vsub.f32 %v3364, %v3365
        %v3367 = vand.u32 %v3366, 4294901760
        %3368 = vmatpush1.msra.mxu0 %v3367
        %3369 = vmatprep.subr.mxu0 0.0
        %v3370 = vand.u32 %v3248, 4294901760
        %v3371 = vsub.f32 %v3248, %v3370
        %v3372 = vand.u32 %v3371, 4294901760
        %v3373 = vsub.f32 %v3371, %v3372
        %v3374 = vand.u32 %v3373, 4294901760
        %3375 = vmatpush1.msra.mxu0 %v3374
        %3376 = vmatprep.subr.mxu0 0.0
        %v3377 = vand.u32 %v3249, 4294901760
        %v3378 = vsub.f32 %v3249, %v3377
        %v3379 = vand.u32 %v3378, 4294901760
        %v3380 = vsub.f32 %v3378, %v3379
        %v3381 = vand.u32 %v3380, 4294901760
        %3382 = vmatpush1.msra.mxu0 %v3381
        %3383 = vmatprep.subr.mxu0 0.0
        %3384 = vmatpush1.msra.mxu0 0.0
        %3385 = vmatprep.subr.mxu0 0.0
        %3386 = vmatpush1.msra.mxu0 0.0
        %3387 = vmatprep.subr.mxu0 0.0
        %3388 = vmatpush1.msra.mxu0 0.0
        %3389 = vmatprep.subr.mxu0 0.0
        %3390 = vmatpush1.msra.mxu0 0.0
        %3391 = vmatprep.subr.mxu0 0.0
        %3392 = vmatpush1.msra.mxu0 0.0
        %3393 = vmatprep.subr.mxu0 0.0
        %3394 = vmatpush1.msra.mxu0 0.0
        %3395 = vmatprep.subr.mxu0 0.0
        %3396 = vmatpush1.msra.mxu0 0.0
        %3397 = vmatprep.subr.mxu0 0.0
        %3398 = vmatpush1.msra.mxu0 0.0
        %3399 = vmatprep.subr.mxu0 0.0
        %3400 = vmatpush1.msra.mxu0 0.0
        %3401 = vmatprep.subr.mxu0 0.0
        %3402 = vmatpush1.msra.mxu0 0.0
        %3403 = vmatprep.subr.mxu0 0.0
        %3404 = vmatpush1.msra.mxu0 0.0
        %3405 = vmatprep.subr.mxu0 0.0
        %3406 = vmatpush1.msra.mxu0 0.0
        %3407 = vmatprep.subr.mxu0 0.0
        %3408 = vmatpush1.msra.mxu0 0.0
        %3409 = vmatprep.subr.mxu0 0.0
        %3410 = vmatpush1.msra.mxu0 0.0
        %3411 = vmatprep.subr.mxu0 0.0
        %3412 = vmatpush1.msra.mxu0 0.0
        %3413 = vmatprep.subr.mxu0 0.0
        %3414 = vmatpush1.msra.mxu0 0.0
        %3415 = vmatprep.subr.mxu0 0.0
        %3416 = vmatpush1.msra.mxu0 0.0
        %3417 = vmatprep.subr.mxu0 0.0
        %3418 = vmatpush1.msra.mxu0 0.0
        %3419 = vmatprep.subr.mxu0 0.0
        %3420 = vmatpush1.msra.mxu0 0.0
        %3421 = vmatprep.subr.mxu0 0.0
        %3422 = vmatpush1.msra.mxu0 0.0
        %3423 = vmatprep.subr.mxu0 0.0
        %3424 = vmatpush1.msra.mxu0 0.0
        %3425 = vmatprep.subr.mxu0 0.0
        %3426 = vmatpush1.msra.mxu0 0.0
        %3427 = vmatprep.subr.mxu0 0.0
        %3428 = vmatpush1.msra.mxu0 0.0
        %3429 = vmatprep.subr.mxu0 0.0
        %3430 = vmatpush1.msra.mxu0 0.0
        %3431 = vmatprep.subr.mxu0 0.0
        %3432 = vmatpush1.msra.mxu0 0.0
        %3433 = vmatprep.subr.mxu0 0.0
        %3434 = vmatpush1.msra.mxu0 0.0
        %3435 = vmatprep.subr.mxu0 0.0
        %3436 = vmatpush1.msra.mxu0 0.0
        %3437 = vmatprep.subr.mxu0 0.0
        %3438 = vmatpush1.msra.mxu0 0.0
        %3439 = vmatprep.mubr.f32.mxu0 0.0
        %v3440 = vand.u32 %v3261, 4294901760
        %3441 = vmatmul.mubr.f32.gmra.mrb[0].mxu0 %v3440
        %v3442 = vpop.f32.mrb[0].mxu0
        %v3443 = vadd.f32 %v3342, %v3442
        %v3444 = vpop.f32.mrb[0].mxu0
        %3445 = vmatprep.mubr.f32.mxu0 0.0
        %v3446 = vand.u32 %v3264, 4294901760
        %3447 = vmatmul.mubr.f32.gmra.mrb[0].mxu0 %v3446
        %v3448 = vpop.f32.mrb[0].mxu0
        %v3449 = vadd.f32 %v3352, %v3448
        %v3450 = vpop.f32.mrb[0].mxu0
        %3451 = vdwg.mxu0
        %3452 = vmatprep.subr.mxu0 0.0
        %v3453 = vand.u32 %v3246, 4294901760
        %v3454 = vsub.f32 %v3246, %v3453
        %3455 = vmatpush1.msra.mxu0 %v3454
        %3456 = vmatprep.subr.mxu0 0.0
        %v3457 = vand.u32 %v3247, 4294901760
        %v3458 = vsub.f32 %v3247, %v3457
        %3459 = vmatpush1.msra.mxu0 %v3458
        %3460 = vmatprep.subr.mxu0 0.0
        %v3461 = vand.u32 %v3248, 4294901760
        %v3462 = vsub.f32 %v3248, %v3461
        %3463 = vmatpush1.msra.mxu0 %v3462
        %3464 = vmatprep.subr.mxu0 0.0
        %v3465 = vand.u32 %v3249, 4294901760
        %v3466 = vsub.f32 %v3249, %v3465
        %3467 = vmatpush1.msra.mxu0 %v3466
        %3468 = vmatprep.subr.mxu0 0.0
        %3469 = vmatpush1.msra.mxu0 0.0
        %3470 = vmatprep.subr.mxu0 0.0
        %3471 = vmatpush1.msra.mxu0 0.0
        %3472 = vmatprep.subr.mxu0 0.0
        %3473 = vmatpush1.msra.mxu0 0.0
        %3474 = vmatprep.subr.mxu0 0.0
        %3475 = vmatpush1.msra.mxu0 0.0
        %3476 = vmatprep.subr.mxu0 0.0
        %3477 = vmatpush1.msra.mxu0 0.0
        %3478 = vmatprep.subr.mxu0 0.0
        %3479 = vmatpush1.msra.mxu0 0.0
        %3480 = vmatprep.subr.mxu0 0.0
        %3481 = vmatpush1.msra.mxu0 0.0
        %3482 = vmatprep.subr.mxu0 0.0
        %3483 = vmatpush1.msra.mxu0 0.0
        %3484 = vmatprep.subr.mxu0 0.0
        %3485 = vmatpush1.msra.mxu0 0.0
        %3486 = vmatprep.subr.mxu0 0.0
        %3487 = vmatpush1.msra.mxu0 0.0
        %3488 = vmatprep.subr.mxu0 0.0
        %3489 = vmatpush1.msra.mxu0 0.0
        %3490 = vmatprep.subr.mxu0 0.0
        %3491 = vmatpush1.msra.mxu0 0.0
        %3492 = vmatprep.subr.mxu0 0.0
        %3493 = vmatpush1.msra.mxu0 0.0
        %3494 = vmatprep.subr.mxu0 0.0
        %3495 = vmatpush1.msra.mxu0 0.0
        %3496 = vmatprep.subr.mxu0 0.0
        %3497 = vmatpush1.msra.mxu0 0.0
        %3498 = vmatprep.subr.mxu0 0.0
        %3499 = vmatpush1.msra.mxu0 0.0
        %3500 = vmatprep.subr.mxu0 0.0
        %3501 = vmatpush1.msra.mxu0 0.0
        %3502 = vmatprep.subr.mxu0 0.0
        %3503 = vmatpush1.msra.mxu0 0.0
        %3504 = vmatprep.subr.mxu0 0.0
        %3505 = vmatpush1.msra.mxu0 0.0
        %3506 = vmatprep.subr.mxu0 0.0
        %3507 = vmatpush1.msra.mxu0 0.0
        %3508 = vmatprep.subr.mxu0 0.0
        %3509 = vmatpush1.msra.mxu0 0.0
        %3510 = vmatprep.subr.mxu0 0.0
        %3511 = vmatpush1.msra.mxu0 0.0
        %3512 = vmatprep.subr.mxu0 0.0
        %3513 = vmatpush1.msra.mxu0 0.0
        %3514 = vmatprep.subr.mxu0 0.0
        %3515 = vmatpush1.msra.mxu0 0.0
        %3516 = vmatprep.subr.mxu0 0.0
        %3517 = vmatpush1.msra.mxu0 0.0
        %3518 = vmatprep.subr.mxu0 0.0
        %3519 = vmatpush1.msra.mxu0 0.0
        %3520 = vmatprep.subr.mxu0 0.0
        %3521 = vmatpush1.msra.mxu0 0.0
        %3522 = vmatprep.subr.mxu0 0.0
        %3523 = vmatpush1.msra.mxu0 0.0
        %3524 = vmatprep.mubr.f32.mxu0 0.0
        %v3525 = vand.u32 %v3261, 4294901760
        %v3526 = vsub.f32 %v3261, %v3525
        %3527 = vmatmul.mubr.f32.gmra.mrb[0].mxu0 %v3526
        %v3528 = vpop.f32.mrb[0].mxu0
        %v3529 = vadd.f32 %v3443, %v3528
        %v3530 = vpop.f32.mrb[0].mxu0
        %3531 = vmatprep.mubr.f32.mxu0 0.0
        %v3532 = vand.u32 %v3264, 4294901760
        %v3533 = vsub.f32 %v3264, %v3532
        %3534 = vmatmul.mubr.f32.gmra.mrb[0].mxu0 %v3533
        %v3535 = vpop.f32.mrb[0].mxu0
        %v3536 = vadd.f32 %v3449, %v3535
        %v3537 = vpop.f32.mrb[0].mxu0
        %3538 = vdwg.mxu0
        %3539 = vmatprep.subr.mxu0 0.0
        %v3540 = vand.u32 %v3246, 4294901760
        %3541 = vmatpush1.msra.mxu0 %v3540
        %3542 = vmatprep.subr.mxu0 0.0
        %v3543 = vand.u32 %v3247, 4294901760
        %3544 = vmatpush1.msra.mxu0 %v3543
        %3545 = vmatprep.subr.mxu0 0.0
        %v3546 = vand.u32 %v3248, 4294901760
        %3547 = vmatpush1.msra.mxu0 %v3546
        %3548 = vmatprep.subr.mxu0 0.0
        %v3549 = vand.u32 %v3249, 4294901760
        %3550 = vmatpush1.msra.mxu0 %v3549
        %3551 = vmatprep.subr.mxu0 0.0
        %3552 = vmatpush1.msra.mxu0 0.0
        %3553 = vmatprep.subr.mxu0 0.0
        %3554 = vmatpush1.msra.mxu0 0.0
        %3555 = vmatprep.subr.mxu0 0.0
        %3556 = vmatpush1.msra.mxu0 0.0
        %3557 = vmatprep.subr.mxu0 0.0
        %3558 = vmatpush1.msra.mxu0 0.0
        %3559 = vmatprep.subr.mxu0 0.0
        %3560 = vmatpush1.msra.mxu0 0.0
        %3561 = vmatprep.subr.mxu0 0.0
        %3562 = vmatpush1.msra.mxu0 0.0
        %3563 = vmatprep.subr.mxu0 0.0
        %3564 = vmatpush1.msra.mxu0 0.0
        %3565 = vmatprep.subr.mxu0 0.0
        %3566 = vmatpush1.msra.mxu0 0.0
        %3567 = vmatprep.subr.mxu0 0.0
        %3568 = vmatpush1.msra.mxu0 0.0
        %3569 = vmatprep.subr.mxu0 0.0
        %3570 = vmatpush1.msra.mxu0 0.0
        %3571 = vmatprep.subr.mxu0 0.0
        %3572 = vmatpush1.msra.mxu0 0.0
        %3573 = vmatprep.subr.mxu0 0.0
        %3574 = vmatpush1.msra.mxu0 0.0
        %3575 = vmatprep.subr.mxu0 0.0
        %3576 = vmatpush1.msra.mxu0 0.0
        %3577 = vmatprep.subr.mxu0 0.0
        %3578 = vmatpush1.msra.mxu0 0.0
        %3579 = vmatprep.subr.mxu0 0.0
        %3580 = vmatpush1.msra.mxu0 0.0
        %3581 = vmatprep.subr.mxu0 0.0
        %3582 = vmatpush1.msra.mxu0 0.0
        %3583 = vmatprep.subr.mxu0 0.0
        %3584 = vmatpush1.msra.mxu0 0.0
        %3585 = vmatprep.subr.mxu0 0.0
        %3586 = vmatpush1.msra.mxu0 0.0
        %3587 = vmatprep.subr.mxu0 0.0
        %3588 = vmatpush1.msra.mxu0 0.0
        %3589 = vmatprep.subr.mxu0 0.0
        %3590 = vmatpush1.msra.mxu0 0.0
        %3591 = vmatprep.subr.mxu0 0.0
        %3592 = vmatpush1.msra.mxu0 0.0
        %3593 = vmatprep.subr.mxu0 0.0
        %3594 = vmatpush1.msra.mxu0 0.0
        %3595 = vmatprep.subr.mxu0 0.0
        %3596 = vmatpush1.msra.mxu0 0.0
        %3597 = vmatprep.subr.mxu0 0.0
        %3598 = vmatpush1.msra.mxu0 0.0
        %3599 = vmatprep.subr.mxu0 0.0
        %3600 = vmatpush1.msra.mxu0 0.0
        %3601 = vmatprep.subr.mxu0 0.0
        %3602 = vmatpush1.msra.mxu0 0.0
        %3603 = vmatprep.subr.mxu0 0.0
        %3604 = vmatpush1.msra.mxu0 0.0
        %3605 = vmatprep.subr.mxu0 0.0
        %3606 = vmatpush1.msra.mxu0 0.0
        %3607 = vmatprep.mubr.f32.mxu0 0.0
        %v3608 = vand.u32 %v3261, 4294901760
        %v3609 = vsub.f32 %v3261, %v3608
        %v3610 = vand.u32 %v3609, 4294901760
        %3611 = vmatmul.mubr.f32.gmra.mrb[0].mxu0 %v3610
        %v3612 = vpop.f32.mrb[0].mxu0
        %v3613 = vadd.f32 %v3529, %v3612
        %v3614 = vpop.f32.mrb[0].mxu0
        %3615 = vmatprep.mubr.f32.mxu0 0.0
        %v3616 = vand.u32 %v3264, 4294901760
        %v3617 = vsub.f32 %v3264, %v3616
        %v3618 = vand.u32 %v3617, 4294901760
        %3619 = vmatmul.mubr.f32.gmra.mrb[0].mxu0 %v3618
        %v3620 = vpop.f32.mrb[0].mxu0
        %v3621 = vadd.f32 %v3536, %v3620
        %v3622 = vpop.f32.mrb[0].mxu0
        %3623 = vdwg.mxu0
        %3624 = vmatprep.subr.mxu0 0.0
        %v3625 = vand.u32 %v3246, 4294901760
        %v3626 = vsub.f32 %v3246, %v3625
        %v3627 = vand.u32 %v3626, 4294901760
        %3628 = vmatpush1.msra.mxu0 %v3627
        %3629 = vmatprep.subr.mxu0 0.0
        %v3630 = vand.u32 %v3247, 4294901760
        %v3631 = vsub.f32 %v3247, %v3630
        %v3632 = vand.u32 %v3631, 4294901760
        %3633 = vmatpush1.msra.mxu0 %v3632
        %3634 = vmatprep.subr.mxu0 0.0
        %v3635 = vand.u32 %v3248, 4294901760
        %v3636 = vsub.f32 %v3248, %v3635
        %v3637 = vand.u32 %v3636, 4294901760
        %3638 = vmatpush1.msra.mxu0 %v3637
        %3639 = vmatprep.subr.mxu0 0.0
        %v3640 = vand.u32 %v3249, 4294901760
        %v3641 = vsub.f32 %v3249, %v3640
        %v3642 = vand.u32 %v3641, 4294901760
        %3643 = vmatpush1.msra.mxu0 %v3642
        %3644 = vmatprep.subr.mxu0 0.0
        %3645 = vmatpush1.msra.mxu0 0.0
        %3646 = vmatprep.subr.mxu0 0.0
        %3647 = vmatpush1.msra.mxu0 0.0
        %3648 = vmatprep.subr.mxu0 0.0
        %3649 = vmatpush1.msra.mxu0 0.0
        %3650 = vmatprep.subr.mxu0 0.0
        %3651 = vmatpush1.msra.mxu0 0.0
        %3652 = vmatprep.subr.mxu0 0.0
        %3653 = vmatpush1.msra.mxu0 0.0
        %3654 = vmatprep.subr.mxu0 0.0
        %3655 = vmatpush1.msra.mxu0 0.0
        %3656 = vmatprep.subr.mxu0 0.0
        %3657 = vmatpush1.msra.mxu0 0.0
        %3658 = vmatprep.subr.mxu0 0.0
        %3659 = vmatpush1.msra.mxu0 0.0
        %3660 = vmatprep.subr.mxu0 0.0
        %3661 = vmatpush1.msra.mxu0 0.0
        %3662 = vmatprep.subr.mxu0 0.0
        %3663 = vmatpush1.msra.mxu0 0.0
        %3664 = vmatprep.subr.mxu0 0.0
        %3665 = vmatpush1.msra.mxu0 0.0
        %3666 = vmatprep.subr.mxu0 0.0
        %3667 = vmatpush1.msra.mxu0 0.0
        %3668 = vmatprep.subr.mxu0 0.0
        %3669 = vmatpush1.msra.mxu0 0.0
        %3670 = vmatprep.subr.mxu0 0.0
        %3671 = vmatpush1.msra.mxu0 0.0
        %3672 = vmatprep.subr.mxu0 0.0
        %3673 = vmatpush1.msra.mxu0 0.0
        %3674 = vmatprep.subr.mxu0 0.0
        %3675 = vmatpush1.msra.mxu0 0.0
        %3676 = vmatprep.subr.mxu0 0.0
        %3677 = vmatpush1.msra.mxu0 0.0
        %3678 = vmatprep.subr.mxu0 0.0
        %3679 = vmatpush1.msra.mxu0 0.0
        %3680 = vmatprep.subr.mxu0 0.0
        %3681 = vmatpush1.msra.mxu0 0.0
        %3682 = vmatprep.subr.mxu0 0.0
        %3683 = vmatpush1.msra.mxu0 0.0
        %3684 = vmatprep.subr.mxu0 0.0
        %3685 = vmatpush1.msra.mxu0 0.0
        %3686 = vmatprep.subr.mxu0 0.0
        %3687 = vmatpush1.msra.mxu0 0.0
        %3688 = vmatprep.subr.mxu0 0.0
        %3689 = vmatpush1.msra.mxu0 0.0
        %3690 = vmatprep.subr.mxu0 0.0
        %3691 = vmatpush1.msra.mxu0 0.0
        %3692 = vmatprep.subr.mxu0 0.0
        %3693 = vmatpush1.msra.mxu0 0.0
        %3694 = vmatprep.subr.mxu0 0.0
        %3695 = vmatpush1.msra.mxu0 0.0
        %3696 = vmatprep.subr.mxu0 0.0
        %3697 = vmatpush1.msra.mxu0 0.0
        %3698 = vmatprep.subr.mxu0 0.0
        %3699 = vmatpush1.msra.mxu0 0.0
        %3700 = vmatprep.mubr.f32.mxu0 0.0
        %v3701 = vand.u32 %v3261, 4294901760
        %3702 = vmatmul.mubr.f32.gmra.mrb[0].mxu0 %v3701
        %v3703 = vpop.f32.mrb[0].mxu0
        %v3704 = vadd.f32 %v3613, %v3703
        %v3705 = vpop.f32.mrb[0].mxu0
        %3706 = vmatprep.mubr.f32.mxu0 0.0
        %v3707 = vand.u32 %v3264, 4294901760
        %3708 = vmatmul.mubr.f32.gmra.mrb[0].mxu0 %v3707
        %v3709 = vpop.f32.mrb[0].mxu0
        %v3710 = vadd.f32 %v3621, %v3709
        %v3711 = vpop.f32.mrb[0].mxu0
        %3712 = vdwg.mxu0
        %3713 = vmatprep.subr.mxu0 0.0
        %v3714 = vand.u32 %v3246, 4294901760
        %3715 = vmatpush1.msra.mxu0 %v3714
        %3716 = vmatprep.subr.mxu0 0.0
        %v3717 = vand.u32 %v3247, 4294901760
        %3718 = vmatpush1.msra.mxu0 %v3717
        %3719 = vmatprep.subr.mxu0 0.0
        %v3720 = vand.u32 %v3248, 4294901760
        %3721 = vmatpush1.msra.mxu0 %v3720
        %3722 = vmatprep.subr.mxu0 0.0
        %v3723 = vand.u32 %v3249, 4294901760
        %3724 = vmatpush1.msra.mxu0 %v3723
        %3725 = vmatprep.subr.mxu0 0.0
        %3726 = vmatpush1.msra.mxu0 0.0
        %3727 = vmatprep.subr.mxu0 0.0
        %3728 = vmatpush1.msra.mxu0 0.0
        %3729 = vmatprep.subr.mxu0 0.0
        %3730 = vmatpush1.msra.mxu0 0.0
        %3731 = vmatprep.subr.mxu0 0.0
        %3732 = vmatpush1.msra.mxu0 0.0
        %3733 = vmatprep.subr.mxu0 0.0
        %3734 = vmatpush1.msra.mxu0 0.0
        %3735 = vmatprep.subr.mxu0 0.0
        %3736 = vmatpush1.msra.mxu0 0.0
        %3737 = vmatprep.subr.mxu0 0.0
        %3738 = vmatpush1.msra.mxu0 0.0
        %3739 = vmatprep.subr.mxu0 0.0
        %3740 = vmatpush1.msra.mxu0 0.0
        %3741 = vmatprep.subr.mxu0 0.0
        %3742 = vmatpush1.msra.mxu0 0.0
        %3743 = vmatprep.subr.mxu0 0.0
        %3744 = vmatpush1.msra.mxu0 0.0
        %3745 = vmatprep.subr.mxu0 0.0
        %3746 = vmatpush1.msra.mxu0 0.0
        %3747 = vmatprep.subr.mxu0 0.0
        %3748 = vmatpush1.msra.mxu0 0.0
        %3749 = vmatprep.subr.mxu0 0.0
        %3750 = vmatpush1.msra.mxu0 0.0
        %3751 = vmatprep.subr.mxu0 0.0
        %3752 = vmatpush1.msra.mxu0 0.0
        %3753 = vmatprep.subr.mxu0 0.0
        %3754 = vmatpush1.msra.mxu0 0.0
        %3755 = vmatprep.subr.mxu0 0.0
        %3756 = vmatpush1.msra.mxu0 0.0
        %3757 = vmatprep.subr.mxu0 0.0
        %3758 = vmatpush1.msra.mxu0 0.0
        %3759 = vmatprep.subr.mxu0 0.0
        %3760 = vmatpush1.msra.mxu0 0.0
        %3761 = vmatprep.subr.mxu0 0.0
        %3762 = vmatpush1.msra.mxu0 0.0
        %3763 = vmatprep.subr.mxu0 0.0
        %3764 = vmatpush1.msra.mxu0 0.0
        %3765 = vmatprep.subr.mxu0 0.0
        %3766 = vmatpush1.msra.mxu0 0.0
        %3767 = vmatprep.subr.mxu0 0.0
        %3768 = vmatpush1.msra.mxu0 0.0
        %3769 = vmatprep.subr.mxu0 0.0
        %3770 = vmatpush1.msra.mxu0 0.0
        %3771 = vmatprep.subr.mxu0 0.0
        %3772 = vmatpush1.msra.mxu0 0.0
        %3773 = vmatprep.subr.mxu0 0.0
        %3774 = vmatpush1.msra.mxu0 0.0
        %3775 = vmatprep.subr.mxu0 0.0
        %3776 = vmatpush1.msra.mxu0 0.0
        %3777 = vmatprep.subr.mxu0 0.0
        %3778 = vmatpush1.msra.mxu0 0.0
        %3779 = vmatprep.subr.mxu0 0.0
        %3780 = vmatpush1.msra.mxu0 0.0
        %3781 = vmatprep.mubr.f32.mxu0 0.0
        %v3782 = vand.u32 %v3261, 4294901760
        %3783 = vmatmul.mubr.f32.gmra.mrb[0].mxu0 %v3782
        %v3784 = vpop.f32.mrb[0].mxu0
        %v3785 = vadd.f32 %v3704, %v3784
        %v3786 = vpop.f32.mrb[0].mxu0
        %3787 = vmatprep.mubr.f32.mxu0 0.0
        %v3788 = vand.u32 %v3264, 4294901760
        %3789 = vmatmul.mubr.f32.gmra.mrb[0].mxu0 %v3788
        %v3790 = vpop.f32.mrb[0].mxu0
        %v3791 = vadd.f32 %v3710, %v3790
        %v3792 = vpop.f32.mrb[0].mxu0
        %3793 = vdwg.mxu0
        %v3794 = vmul.f32 %v3791, 0.5
        %v3795 = vmul.f32 %v3794, 1.442695
        %v3796 = vpow.pop %v3795
        %v3797 = vmul.f32 %v3796, %v225
        %v3798 = vadd.f32 %v3785, %v3797
        %v3799 = vld [vmem:[%s1 + $0xc0] sm:$0xff]
        %v3800 = vld [vmem:[%s1 + $0xc8] sm:$0xff]
        %v3801 = vld [vmem:[%s1 + $0xd0] sm:$0xff]
        %v3802 = vld [vmem:[%s1 + $0xd8] sm:$0xff]
        %3803 = vset.pattern.permute.xlu0 5
        %3804 = vperm.xlu0 %3803, %v2544
        %v3805 = vpop.permute.xlu0 %3804
        %3807 = vset.pattern.permute.xlu0 5
        %3808 = vperm.xlu0 %3807, %v2545
        %v3809 = vpop.permute.xlu0 %3808
        %3811 = vset.pattern.permute.xlu0 5
        %3812 = vperm.xlu0 %3811, %v2546
        %v3813 = vpop.permute.xlu0 %3812
        %3815 = vset.pattern.permute.xlu0 5
        %3816 = vperm.xlu0 %3815, %v2547
        %v3817 = vpop.permute.xlu0 %3816
        %v3820 = vsel %vm1107, %v3799, 0
        %v3823 = vsel %vm1107, %v3800, 0
        %v3826 = vsel %vm1107, %v3801, 0
        %v3829 = vsel %vm1107, %v3802, 0
        %3831 = vmatprep.subr.mxu0 0.0
        %v3832 = vand.u32 %v3798, 4294901760
        %3833 = vmatpush1.msra.mxu0 %v3832
        %3834 = vmatprep.subr.mxu0 0.0
        %v3835 = vand.u32 %v1620, 4294901760
        %3836 = vmatpush1.msra.mxu0 %v3835
        %3837 = vmatprep.subr.mxu0 0.0
        %v3838 = vand.u32 %v1626, 4294901760
        %3839 = vmatpush1.msra.mxu0 %v3838
        %3840 = vmatprep.subr.mxu0 0.0
        %3841 = vmatpush1.msra.mxu0 0.0
        %3842 = vmatprep.subr.mxu0 0.0
        %3843 = vmatpush1.msra.mxu0 0.0
        %3844 = vmatprep.subr.mxu0 0.0
        %3845 = vmatpush1.msra.mxu0 0.0
        %3846 = vmatprep.subr.mxu0 0.0
        %3847 = vmatpush1.msra.mxu0 0.0
        %3848 = vmatprep.subr.mxu0 0.0
        %3849 = vmatpush1.msra.mxu0 0.0
        %3850 = vmatprep.subr.mxu0 0.0
        %3851 = vmatpush1.msra.mxu0 0.0
        %3852 = vmatprep.subr.mxu0 0.0
        %3853 = vmatpush1.msra.mxu0 0.0
        %3854 = vmatprep.subr.mxu0 0.0
        %3855 = vmatpush1.msra.mxu0 0.0
        %3856 = vmatprep.subr.mxu0 0.0
        %3857 = vmatpush1.msra.mxu0 0.0
        %3858 = vmatprep.subr.mxu0 0.0
        %3859 = vmatpush1.msra.mxu0 0.0
        %3860 = vmatprep.subr.mxu0 0.0
        %3861 = vmatpush1.msra.mxu0 0.0
        %3862 = vmatprep.subr.mxu0 0.0
        %3863 = vmatpush1.msra.mxu0 0.0
        %3864 = vmatprep.subr.mxu0 0.0
        %3865 = vmatpush1.msra.mxu0 0.0
        %3866 = vmatprep.subr.mxu0 0.0
        %3867 = vmatpush1.msra.mxu0 0.0
        %3868 = vmatprep.subr.mxu0 0.0
        %3869 = vmatpush1.msra.mxu0 0.0
        %3870 = vmatprep.subr.mxu0 0.0
        %3871 = vmatpush1.msra.mxu0 0.0
        %3872 = vmatprep.subr.mxu0 0.0
        %3873 = vmatpush1.msra.mxu0 0.0
        %3874 = vmatprep.subr.mxu0 0.0
        %3875 = vmatpush1.msra.mxu0 0.0
        %3876 = vmatprep.subr.mxu0 0.0
        %3877 = vmatpush1.msra.mxu0 0.0
        %3878 = vmatprep.subr.mxu0 0.0
        %3879 = vmatpush1.msra.mxu0 0.0
        %3880 = vmatprep.subr.mxu0 0.0
        %3881 = vmatpush1.msra.mxu0 0.0
        %3882 = vmatprep.subr.mxu0 0.0
        %3883 = vmatpush1.msra.mxu0 0.0
        %3884 = vmatprep.subr.mxu0 0.0
        %3885 = vmatpush1.msra.mxu0 0.0
        %3886 = vmatprep.subr.mxu0 0.0
        %3887 = vmatpush1.msra.mxu0 0.0
        %3888 = vmatprep.subr.mxu0 0.0
        %3889 = vmatpush1.msra.mxu0 0.0
        %3890 = vmatprep.subr.mxu0 0.0
        %3891 = vmatpush1.msra.mxu0 0.0
        %3892 = vmatprep.subr.mxu0 0.0
        %3893 = vmatpush1.msra.mxu0 0.0
        %3894 = vmatprep.subr.mxu0 0.0
        %3895 = vmatpush1.msra.mxu0 0.0
        %3896 = vmatprep.subr.mxu0 0.0
        %3897 = vmatpush1.msra.mxu0 0.0
        %3898 = vmatprep.mubr.f32.mxu0 0.0
        %v3899 = vand.u32 %v3820, 4294901760
        %v3900 = vsub.f32 %v3820, %v3899
        %v3901 = vand.u32 %v3900, 4294901760
        %v3902 = vsub.f32 %v3900, %v3901
        %v3903 = vand.u32 %v3902, 4294901760
        %3904 = vmatmul.mubr.f32.gmra.mrb[0].mxu0 %v3903
        %v3905 = vpop.f32.mrb[0].mxu0
        %v3906 = vadd.f32 %v3805, %v3905
        %v3907 = vpop.f32.mrb[0].mxu0
        %3908 = vmatprep.mubr.f32.mxu0 0.0
        %v3909 = vand.u32 %v3823, 4294901760
        %v3910 = vsub.f32 %v3823, %v3909
        %v3911 = vand.u32 %v3910, 4294901760
        %v3912 = vsub.f32 %v3910, %v3911
        %v3913 = vand.u32 %v3912, 4294901760
        %3914 = vmatmul.mubr.f32.gmra.mrb[0].mxu0 %v3913
        %v3915 = vpop.f32.mrb[0].mxu0
        %v3916 = vadd.f32 %v3809, %v3915
        %v3917 = vpop.f32.mrb[0].mxu0
        %3918 = vmatprep.mubr.f32.mxu0 0.0
        %v3919 = vand.u32 %v3826, 4294901760
        %v3920 = vsub.f32 %v3826, %v3919
        %v3921 = vand.u32 %v3920, 4294901760
        %v3922 = vsub.f32 %v3920, %v3921
        %v3923 = vand.u32 %v3922, 4294901760
        %3924 = vmatmul.mubr.f32.gmra.mrb[0].mxu0 %v3923
        %v3925 = vpop.f32.mrb[0].mxu0
        %v3926 = vadd.f32 %v3813, %v3925
        %v3927 = vpop.f32.mrb[0].mxu0
        %3928 = vmatprep.mubr.f32.mxu0 0.0
        %v3929 = vand.u32 %v3829, 4294901760
        %v3930 = vsub.f32 %v3829, %v3929
        %v3931 = vand.u32 %v3930, 4294901760
        %v3932 = vsub.f32 %v3930, %v3931
        %v3933 = vand.u32 %v3932, 4294901760
        %3934 = vmatmul.mubr.f32.gmra.mrb[0].mxu0 %v3933
        %v3935 = vpop.f32.mrb[0].mxu0
        %v3936 = vadd.f32 %v3817, %v3935
        %v3937 = vpop.f32.mrb[0].mxu0
        %3938 = vdwg.mxu0
        %3939 = vmatprep.subr.mxu0 0.0
        %v3940 = vand.u32 %v3798, 4294901760
        %v3941 = vsub.f32 %v3798, %v3940
        %v3942 = vand.u32 %v3941, 4294901760
        %v3943 = vsub.f32 %v3941, %v3942
        %v3944 = vand.u32 %v3943, 4294901760
        %3945 = vmatpush1.msra.mxu0 %v3944
        %3946 = vmatprep.subr.mxu0 0.0
        %v3947 = vand.u32 %v1620, 4294901760
        %v3948 = vsub.f32 %v1620, %v3947
        %v3949 = vand.u32 %v3948, 4294901760
        %v3950 = vsub.f32 %v3948, %v3949
        %v3951 = vand.u32 %v3950, 4294901760
        %3952 = vmatpush1.msra.mxu0 %v3951
        %3953 = vmatprep.subr.mxu0 0.0
        %v3954 = vand.u32 %v1626, 4294901760
        %v3955 = vsub.f32 %v1626, %v3954
        %v3956 = vand.u32 %v3955, 4294901760
        %v3957 = vsub.f32 %v3955, %v3956
        %v3958 = vand.u32 %v3957, 4294901760
        %3959 = vmatpush1.msra.mxu0 %v3958
        %3960 = vmatprep.subr.mxu0 0.0
        %3961 = vmatpush1.msra.mxu0 0.0
        %3962 = vmatprep.subr.mxu0 0.0
        %3963 = vmatpush1.msra.mxu0 0.0
        %3964 = vmatprep.subr.mxu0 0.0
        %3965 = vmatpush1.msra.mxu0 0.0
        %3966 = vmatprep.subr.mxu0 0.0
        %3967 = vmatpush1.msra.mxu0 0.0
        %3968 = vmatprep.subr.mxu0 0.0
        %3969 = vmatpush1.msra.mxu0 0.0
        %3970 = vmatprep.subr.mxu0 0.0
        %3971 = vmatpush1.msra.mxu0 0.0
        %3972 = vmatprep.subr.mxu0 0.0
        %3973 = vmatpush1.msra.mxu0 0.0
        %3974 = vmatprep.subr.mxu0 0.0
        %3975 = vmatpush1.msra.mxu0 0.0
        %3976 = vmatprep.subr.mxu0 0.0
        %3977 = vmatpush1.msra.mxu0 0.0
        %3978 = vmatprep.subr.mxu0 0.0
        %3979 = vmatpush1.msra.mxu0 0.0
        %3980 = vmatprep.subr.mxu0 0.0
        %3981 = vmatpush1.msra.mxu0 0.0
        %3982 = vmatprep.subr.mxu0 0.0
        %3983 = vmatpush1.msra.mxu0 0.0
        %3984 = vmatprep.subr.mxu0 0.0
        %3985 = vmatpush1.msra.mxu0 0.0
        %3986 = vmatprep.subr.mxu0 0.0
        %3987 = vmatpush1.msra.mxu0 0.0
        %3988 = vmatprep.subr.mxu0 0.0
        %3989 = vmatpush1.msra.mxu0 0.0
        %3990 = vmatprep.subr.mxu0 0.0
        %3991 = vmatpush1.msra.mxu0 0.0
        %3992 = vmatprep.subr.mxu0 0.0
        %3993 = vmatpush1.msra.mxu0 0.0
        %3994 = vmatprep.subr.mxu0 0.0
        %3995 = vmatpush1.msra.mxu0 0.0
        %3996 = vmatprep.subr.mxu0 0.0
        %3997 = vmatpush1.msra.mxu0 0.0
        %3998 = vmatprep.subr.mxu0 0.0
        %3999 = vmatpush1.msra.mxu0 0.0
        %4000 = vmatprep.subr.mxu0 0.0
        %4001 = vmatpush1.msra.mxu0 0.0
        %4002 = vmatprep.subr.mxu0 0.0
        %4003 = vmatpush1.msra.mxu0 0.0
        %4004 = vmatprep.subr.mxu0 0.0
        %4005 = vmatpush1.msra.mxu0 0.0
        %4006 = vmatprep.subr.mxu0 0.0
        %4007 = vmatpush1.msra.mxu0 0.0
        %4008 = vmatprep.subr.mxu0 0.0
        %4009 = vmatpush1.msra.mxu0 0.0
        %4010 = vmatprep.subr.mxu0 0.0
        %4011 = vmatpush1.msra.mxu0 0.0
        %4012 = vmatprep.subr.mxu0 0.0
        %4013 = vmatpush1.msra.mxu0 0.0
        %4014 = vmatprep.subr.mxu0 0.0
        %4015 = vmatpush1.msra.mxu0 0.0
        %4016 = vmatprep.subr.mxu0 0.0
        %4017 = vmatpush1.msra.mxu0 0.0
        %4018 = vmatprep.mubr.f32.mxu0 0.0
        %v4019 = vand.u32 %v3820, 4294901760
        %4020 = vmatmul.mubr.f32.gmra.mrb[0].mxu0 %v4019
        %v4021 = vpop.f32.mrb[0].mxu0
        %v4022 = vadd.f32 %v3906, %v4021
        %v4023 = vpop.f32.mrb[0].mxu0
        %4024 = vmatprep.mubr.f32.mxu0 0.0
        %v4025 = vand.u32 %v3823, 4294901760
        %4026 = vmatmul.mubr.f32.gmra.mrb[0].mxu0 %v4025
        %v4027 = vpop.f32.mrb[0].mxu0
        %v4028 = vadd.f32 %v3916, %v4027
        %v4029 = vpop.f32.mrb[0].mxu0
        %4030 = vmatprep.mubr.f32.mxu0 0.0
        %v4031 = vand.u32 %v3826, 4294901760
        %4032 = vmatmul.mubr.f32.gmra.mrb[0].mxu0 %v4031
        %v4033 = vpop.f32.mrb[0].mxu0
        %v4034 = vadd.f32 %v3926, %v4033
        %v4035 = vpop.f32.mrb[0].mxu0
        %4036 = vmatprep.mubr.f32.mxu0 0.0
        %v4037 = vand.u32 %v3829, 4294901760
        %4038 = vmatmul.mubr.f32.gmra.mrb[0].mxu0 %v4037
        %v4039 = vpop.f32.mrb[0].mxu0
        %v4040 = vadd.f32 %v3936, %v4039
        %v4041 = vpop.f32.mrb[0].mxu0
        %4042 = vdwg.mxu0
        %4043 = vmatprep.subr.mxu0 0.0
        %v4044 = vand.u32 %v3798, 4294901760
        %v4045 = vsub.f32 %v3798, %v4044
        %4046 = vmatpush1.msra.mxu0 %v4045
        %4047 = vmatprep.subr.mxu0 0.0
        %v4048 = vand.u32 %v1620, 4294901760
        %v4049 = vsub.f32 %v1620, %v4048
        %4050 = vmatpush1.msra.mxu0 %v4049
        %4051 = vmatprep.subr.mxu0 0.0
        %v4052 = vand.u32 %v1626, 4294901760
        %v4053 = vsub.f32 %v1626, %v4052
        %4054 = vmatpush1.msra.mxu0 %v4053
        %4055 = vmatprep.subr.mxu0 0.0
        %4056 = vmatpush1.msra.mxu0 0.0
        %4057 = vmatprep.subr.mxu0 0.0
        %4058 = vmatpush1.msra.mxu0 0.0
        %4059 = vmatprep.subr.mxu0 0.0
        %4060 = vmatpush1.msra.mxu0 0.0
        %4061 = vmatprep.subr.mxu0 0.0
        %4062 = vmatpush1.msra.mxu0 0.0
        %4063 = vmatprep.subr.mxu0 0.0
        %4064 = vmatpush1.msra.mxu0 0.0
        %4065 = vmatprep.subr.mxu0 0.0
        %4066 = vmatpush1.msra.mxu0 0.0
        %4067 = vmatprep.subr.mxu0 0.0
        %4068 = vmatpush1.msra.mxu0 0.0
        %4069 = vmatprep.subr.mxu0 0.0
        %4070 = vmatpush1.msra.mxu0 0.0
        %4071 = vmatprep.subr.mxu0 0.0
        %4072 = vmatpush1.msra.mxu0 0.0
        %4073 = vmatprep.subr.mxu0 0.0
        %4074 = vmatpush1.msra.mxu0 0.0
        %4075 = vmatprep.subr.mxu0 0.0
        %4076 = vmatpush1.msra.mxu0 0.0
        %4077 = vmatprep.subr.mxu0 0.0
        %4078 = vmatpush1.msra.mxu0 0.0
        %4079 = vmatprep.subr.mxu0 0.0
        %4080 = vmatpush1.msra.mxu0 0.0
        %4081 = vmatprep.subr.mxu0 0.0
        %4082 = vmatpush1.msra.mxu0 0.0
        %4083 = vmatprep.subr.mxu0 0.0
        %4084 = vmatpush1.msra.mxu0 0.0
        %4085 = vmatprep.subr.mxu0 0.0
        %4086 = vmatpush1.msra.mxu0 0.0
        %4087 = vmatprep.subr.mxu0 0.0
        %4088 = vmatpush1.msra.mxu0 0.0
        %4089 = vmatprep.subr.mxu0 0.0
        %4090 = vmatpush1.msra.mxu0 0.0
        %4091 = vmatprep.subr.mxu0 0.0
        %4092 = vmatpush1.msra.mxu0 0.0
        %4093 = vmatprep.subr.mxu0 0.0
        %4094 = vmatpush1.msra.mxu0 0.0
        %4095 = vmatprep.subr.mxu0 0.0
        %4096 = vmatpush1.msra.mxu0 0.0
        %4097 = vmatprep.subr.mxu0 0.0
        %4098 = vmatpush1.msra.mxu0 0.0
        %4099 = vmatprep.subr.mxu0 0.0
        %4100 = vmatpush1.msra.mxu0 0.0
        %4101 = vmatprep.subr.mxu0 0.0
        %4102 = vmatpush1.msra.mxu0 0.0
        %4103 = vmatprep.subr.mxu0 0.0
        %4104 = vmatpush1.msra.mxu0 0.0
        %4105 = vmatprep.subr.mxu0 0.0
        %4106 = vmatpush1.msra.mxu0 0.0
        %4107 = vmatprep.subr.mxu0 0.0
        %4108 = vmatpush1.msra.mxu0 0.0
        %4109 = vmatprep.subr.mxu0 0.0
        %4110 = vmatpush1.msra.mxu0 0.0
        %4111 = vmatprep.subr.mxu0 0.0
        %4112 = vmatpush1.msra.mxu0 0.0
        %4113 = vmatprep.mubr.f32.mxu0 0.0
        %v4114 = vand.u32 %v3820, 4294901760
        %v4115 = vsub.f32 %v3820, %v4114
        %4116 = vmatmul.mubr.f32.gmra.mrb[0].mxu0 %v4115
        %v4117 = vpop.f32.mrb[0].mxu0
        %v4118 = vadd.f32 %v4022, %v4117
        %v4119 = vpop.f32.mrb[0].mxu0
        %4120 = vmatprep.mubr.f32.mxu0 0.0
        %v4121 = vand.u32 %v3823, 4294901760
        %v4122 = vsub.f32 %v3823, %v4121
        %4123 = vmatmul.mubr.f32.gmra.mrb[0].mxu0 %v4122
        %v4124 = vpop.f32.mrb[0].mxu0
        %v4125 = vadd.f32 %v4028, %v4124
        %v4126 = vpop.f32.mrb[0].mxu0
        %4127 = vmatprep.mubr.f32.mxu0 0.0
        %v4128 = vand.u32 %v3826, 4294901760
        %v4129 = vsub.f32 %v3826, %v4128
        %4130 = vmatmul.mubr.f32.gmra.mrb[0].mxu0 %v4129
        %v4131 = vpop.f32.mrb[0].mxu0
        %v4132 = vadd.f32 %v4034, %v4131
        %v4133 = vpop.f32.mrb[0].mxu0
        %4134 = vmatprep.mubr.f32.mxu0 0.0
        %v4135 = vand.u32 %v3829, 4294901760
        %v4136 = vsub.f32 %v3829, %v4135
        %4137 = vmatmul.mubr.f32.gmra.mrb[0].mxu0 %v4136
        %v4138 = vpop.f32.mrb[0].mxu0
        %v4139 = vadd.f32 %v4040, %v4138
        %v4140 = vpop.f32.mrb[0].mxu0
        %4141 = vdwg.mxu0
        %4142 = vmatprep.subr.mxu0 0.0
        %v4143 = vand.u32 %v3798, 4294901760
        %4144 = vmatpush1.msra.mxu0 %v4143
        %4145 = vmatprep.subr.mxu0 0.0
        %v4146 = vand.u32 %v1620, 4294901760
        %4147 = vmatpush1.msra.mxu0 %v4146
        %4148 = vmatprep.subr.mxu0 0.0
        %v4149 = vand.u32 %v1626, 4294901760
        %4150 = vmatpush1.msra.mxu0 %v4149
        %4151 = vmatprep.subr.mxu0 0.0
        %4152 = vmatpush1.msra.mxu0 0.0
        %4153 = vmatprep.subr.mxu0 0.0
        %4154 = vmatpush1.msra.mxu0 0.0
        %4155 = vmatprep.subr.mxu0 0.0
        %4156 = vmatpush1.msra.mxu0 0.0
        %4157 = vmatprep.subr.mxu0 0.0
        %4158 = vmatpush1.msra.mxu0 0.0
        %4159 = vmatprep.subr.mxu0 0.0
        %4160 = vmatpush1.msra.mxu0 0.0
        %4161 = vmatprep.subr.mxu0 0.0
        %4162 = vmatpush1.msra.mxu0 0.0
        %4163 = vmatprep.subr.mxu0 0.0
        %4164 = vmatpush1.msra.mxu0 0.0
        %4165 = vmatprep.subr.mxu0 0.0
        %4166 = vmatpush1.msra.mxu0 0.0
        %4167 = vmatprep.subr.mxu0 0.0
        %4168 = vmatpush1.msra.mxu0 0.0
        %4169 = vmatprep.subr.mxu0 0.0
        %4170 = vmatpush1.msra.mxu0 0.0
        %4171 = vmatprep.subr.mxu0 0.0
        %4172 = vmatpush1.msra.mxu0 0.0
        %4173 = vmatprep.subr.mxu0 0.0
        %4174 = vmatpush1.msra.mxu0 0.0
        %4175 = vmatprep.subr.mxu0 0.0
        %4176 = vmatpush1.msra.mxu0 0.0
        %4177 = vmatprep.subr.mxu0 0.0
        %4178 = vmatpush1.msra.mxu0 0.0
        %4179 = vmatprep.subr.mxu0 0.0
        %4180 = vmatpush1.msra.mxu0 0.0
        %4181 = vmatprep.subr.mxu0 0.0
        %4182 = vmatpush1.msra.mxu0 0.0
        %4183 = vmatprep.subr.mxu0 0.0
        %4184 = vmatpush1.msra.mxu0 0.0
        %4185 = vmatprep.subr.mxu0 0.0
        %4186 = vmatpush1.msra.mxu0 0.0
        %4187 = vmatprep.subr.mxu0 0.0
        %4188 = vmatpush1.msra.mxu0 0.0
        %4189 = vmatprep.subr.mxu0 0.0
        %4190 = vmatpush1.msra.mxu0 0.0
        %4191 = vmatprep.subr.mxu0 0.0
        %4192 = vmatpush1.msra.mxu0 0.0
        %4193 = vmatprep.subr.mxu0 0.0
        %4194 = vmatpush1.msra.mxu0 0.0
        %4195 = vmatprep.subr.mxu0 0.0
        %4196 = vmatpush1.msra.mxu0 0.0
        %4197 = vmatprep.subr.mxu0 0.0
        %4198 = vmatpush1.msra.mxu0 0.0
        %4199 = vmatprep.subr.mxu0 0.0
        %4200 = vmatpush1.msra.mxu0 0.0
        %4201 = vmatprep.subr.mxu0 0.0
        %4202 = vmatpush1.msra.mxu0 0.0
        %4203 = vmatprep.subr.mxu0 0.0
        %4204 = vmatpush1.msra.mxu0 0.0
        %4205 = vmatprep.subr.mxu0 0.0
        %4206 = vmatpush1.msra.mxu0 0.0
        %4207 = vmatprep.subr.mxu0 0.0
        %4208 = vmatpush1.msra.mxu0 0.0
        %4209 = vmatprep.mubr.f32.mxu0 0.0
        %v4210 = vand.u32 %v3820, 4294901760
        %v4211 = vsub.f32 %v3820, %v4210
        %v4212 = vand.u32 %v4211, 4294901760
        %4213 = vmatmul.mubr.f32.gmra.mrb[0].mxu0 %v4212
        %v4214 = vpop.f32.mrb[0].mxu0
        %v4215 = vadd.f32 %v4118, %v4214
        %v4216 = vpop.f32.mrb[0].mxu0
        %4217 = vmatprep.mubr.f32.mxu0 0.0
        %v4218 = vand.u32 %v3823, 4294901760
        %v4219 = vsub.f32 %v3823, %v4218
        %v4220 = vand.u32 %v4219, 4294901760
        %4221 = vmatmul.mubr.f32.gmra.mrb[0].mxu0 %v4220
        %v4222 = vpop.f32.mrb[0].mxu0
        %v4223 = vadd.f32 %v4125, %v4222
        %v4224 = vpop.f32.mrb[0].mxu0
        %4225 = vmatprep.mubr.f32.mxu0 0.0
        %v4226 = vand.u32 %v3826, 4294901760
        %v4227 = vsub.f32 %v3826, %v4226
        %v4228 = vand.u32 %v4227, 4294901760
        %4229 = vmatmul.mubr.f32.gmra.mrb[0].mxu0 %v4228
        %v4230 = vpop.f32.mrb[0].mxu0
        %v4231 = vadd.f32 %v4132, %v4230
        %v4232 = vpop.f32.mrb[0].mxu0
        %4233 = vmatprep.mubr.f32.mxu0 0.0
        %v4234 = vand.u32 %v3829, 4294901760
        %v4235 = vsub.f32 %v3829, %v4234
        %v4236 = vand.u32 %v4235, 4294901760
        %4237 = vmatmul.mubr.f32.gmra.mrb[0].mxu0 %v4236
        %v4238 = vpop.f32.mrb[0].mxu0
        %v4239 = vadd.f32 %v4139, %v4238
        %v4240 = vpop.f32.mrb[0].mxu0
        %4241 = vdwg.mxu0
        %4242 = vmatprep.subr.mxu0 0.0
        %v4243 = vand.u32 %v3798, 4294901760
        %v4244 = vsub.f32 %v3798, %v4243
        %v4245 = vand.u32 %v4244, 4294901760
        %4246 = vmatpush1.msra.mxu0 %v4245
        %4247 = vmatprep.subr.mxu0 0.0
        %v4248 = vand.u32 %v1620, 4294901760
        %v4249 = vsub.f32 %v1620, %v4248
        %v4250 = vand.u32 %v4249, 4294901760
        %4251 = vmatpush1.msra.mxu0 %v4250
        %4252 = vmatprep.subr.mxu0 0.0
        %v4253 = vand.u32 %v1626, 4294901760
        %v4254 = vsub.f32 %v1626, %v4253
        %v4255 = vand.u32 %v4254, 4294901760
        %4256 = vmatpush1.msra.mxu0 %v4255
        %4257 = vmatprep.subr.mxu0 0.0
        %4258 = vmatpush1.msra.mxu0 0.0
        %4259 = vmatprep.subr.mxu0 0.0
        %4260 = vmatpush1.msra.mxu0 0.0
        %4261 = vmatprep.subr.mxu0 0.0
        %4262 = vmatpush1.msra.mxu0 0.0
        %4263 = vmatprep.subr.mxu0 0.0
        %4264 = vmatpush1.msra.mxu0 0.0
        %4265 = vmatprep.subr.mxu0 0.0
        %4266 = vmatpush1.msra.mxu0 0.0
        %4267 = vmatprep.subr.mxu0 0.0
        %4268 = vmatpush1.msra.mxu0 0.0
        %4269 = vmatprep.subr.mxu0 0.0
        %4270 = vmatpush1.msra.mxu0 0.0
        %4271 = vmatprep.subr.mxu0 0.0
        %4272 = vmatpush1.msra.mxu0 0.0
        %4273 = vmatprep.subr.mxu0 0.0
        %4274 = vmatpush1.msra.mxu0 0.0
        %4275 = vmatprep.subr.mxu0 0.0
        %4276 = vmatpush1.msra.mxu0 0.0
        %4277 = vmatprep.subr.mxu0 0.0
        %4278 = vmatpush1.msra.mxu0 0.0
        %4279 = vmatprep.subr.mxu0 0.0
        %4280 = vmatpush1.msra.mxu0 0.0
        %4281 = vmatprep.subr.mxu0 0.0
        %4282 = vmatpush1.msra.mxu0 0.0
        %4283 = vmatprep.subr.mxu0 0.0
        %4284 = vmatpush1.msra.mxu0 0.0
        %4285 = vmatprep.subr.mxu0 0.0
        %4286 = vmatpush1.msra.mxu0 0.0
        %4287 = vmatprep.subr.mxu0 0.0
        %4288 = vmatpush1.msra.mxu0 0.0
        %4289 = vmatprep.subr.mxu0 0.0
        %4290 = vmatpush1.msra.mxu0 0.0
        %4291 = vmatprep.subr.mxu0 0.0
        %4292 = vmatpush1.msra.mxu0 0.0
        %4293 = vmatprep.subr.mxu0 0.0
        %4294 = vmatpush1.msra.mxu0 0.0
        %4295 = vmatprep.subr.mxu0 0.0
        %4296 = vmatpush1.msra.mxu0 0.0
        %4297 = vmatprep.subr.mxu0 0.0
        %4298 = vmatpush1.msra.mxu0 0.0
        %4299 = vmatprep.subr.mxu0 0.0
        %4300 = vmatpush1.msra.mxu0 0.0
        %4301 = vmatprep.subr.mxu0 0.0
        %4302 = vmatpush1.msra.mxu0 0.0
        %4303 = vmatprep.subr.mxu0 0.0
        %4304 = vmatpush1.msra.mxu0 0.0
        %4305 = vmatprep.subr.mxu0 0.0
        %4306 = vmatpush1.msra.mxu0 0.0
        %4307 = vmatprep.subr.mxu0 0.0
        %4308 = vmatpush1.msra.mxu0 0.0
        %4309 = vmatprep.subr.mxu0 0.0
        %4310 = vmatpush1.msra.mxu0 0.0
        %4311 = vmatprep.subr.mxu0 0.0
        %4312 = vmatpush1.msra.mxu0 0.0
        %4313 = vmatprep.subr.mxu0 0.0
        %4314 = vmatpush1.msra.mxu0 0.0
        %4315 = vmatprep.mubr.f32.mxu0 0.0
        %v4316 = vand.u32 %v3820, 4294901760
        %4317 = vmatmul.mubr.f32.gmra.mrb[0].mxu0 %v4316
        %v4318 = vpop.f32.mrb[0].mxu0
        %v4319 = vadd.f32 %v4215, %v4318
        %v4320 = vpop.f32.mrb[0].mxu0
        %4321 = vmatprep.mubr.f32.mxu0 0.0
        %v4322 = vand.u32 %v3823, 4294901760
        %4323 = vmatmul.mubr.f32.gmra.mrb[0].mxu0 %v4322
        %v4324 = vpop.f32.mrb[0].mxu0
        %v4325 = vadd.f32 %v4223, %v4324
        %v4326 = vpop.f32.mrb[0].mxu0
        %4327 = vmatprep.mubr.f32.mxu0 0.0
        %v4328 = vand.u32 %v3826, 4294901760
        %4329 = vmatmul.mubr.f32.gmra.mrb[0].mxu0 %v4328
        %v4330 = vpop.f32.mrb[0].mxu0
        %v4331 = vadd.f32 %v4231, %v4330
        %v4332 = vpop.f32.mrb[0].mxu0
        %4333 = vmatprep.mubr.f32.mxu0 0.0
        %v4334 = vand.u32 %v3829, 4294901760
        %4335 = vmatmul.mubr.f32.gmra.mrb[0].mxu0 %v4334
        %v4336 = vpop.f32.mrb[0].mxu0
        %v4337 = vadd.f32 %v4239, %v4336
        %v4338 = vpop.f32.mrb[0].mxu0
        %4339 = vdwg.mxu0
        %4340 = vmatprep.subr.mxu0 0.0
        %v4341 = vand.u32 %v3798, 4294901760
        %4342 = vmatpush1.msra.mxu0 %v4341
        %4343 = vmatprep.subr.mxu0 0.0
        %v4344 = vand.u32 %v1620, 4294901760
        %4345 = vmatpush1.msra.mxu0 %v4344
        %4346 = vmatprep.subr.mxu0 0.0
        %v4347 = vand.u32 %v1626, 4294901760
        %4348 = vmatpush1.msra.mxu0 %v4347
        %4349 = vmatprep.subr.mxu0 0.0
        %4350 = vmatpush1.msra.mxu0 0.0
        %4351 = vmatprep.subr.mxu0 0.0
        %4352 = vmatpush1.msra.mxu0 0.0
        %4353 = vmatprep.subr.mxu0 0.0
        %4354 = vmatpush1.msra.mxu0 0.0
        %4355 = vmatprep.subr.mxu0 0.0
        %4356 = vmatpush1.msra.mxu0 0.0
        %4357 = vmatprep.subr.mxu0 0.0
        %4358 = vmatpush1.msra.mxu0 0.0
        %4359 = vmatprep.subr.mxu0 0.0
        %4360 = vmatpush1.msra.mxu0 0.0
        %4361 = vmatprep.subr.mxu0 0.0
        %4362 = vmatpush1.msra.mxu0 0.0
        %4363 = vmatprep.subr.mxu0 0.0
        %4364 = vmatpush1.msra.mxu0 0.0
        %4365 = vmatprep.subr.mxu0 0.0
        %4366 = vmatpush1.msra.mxu0 0.0
        %4367 = vmatprep.subr.mxu0 0.0
        %4368 = vmatpush1.msra.mxu0 0.0
        %4369 = vmatprep.subr.mxu0 0.0
        %4370 = vmatpush1.msra.mxu0 0.0
        %4371 = vmatprep.subr.mxu0 0.0
        %4372 = vmatpush1.msra.mxu0 0.0
        %4373 = vmatprep.subr.mxu0 0.0
        %4374 = vmatpush1.msra.mxu0 0.0
        %4375 = vmatprep.subr.mxu0 0.0
        %4376 = vmatpush1.msra.mxu0 0.0
        %4377 = vmatprep.subr.mxu0 0.0
        %4378 = vmatpush1.msra.mxu0 0.0
        %4379 = vmatprep.subr.mxu0 0.0
        %4380 = vmatpush1.msra.mxu0 0.0
        %4381 = vmatprep.subr.mxu0 0.0
        %4382 = vmatpush1.msra.mxu0 0.0
        %4383 = vmatprep.subr.mxu0 0.0
        %4384 = vmatpush1.msra.mxu0 0.0
        %4385 = vmatprep.subr.mxu0 0.0
        %4386 = vmatpush1.msra.mxu0 0.0
        %4387 = vmatprep.subr.mxu0 0.0
        %4388 = vmatpush1.msra.mxu0 0.0
        %4389 = vmatprep.subr.mxu0 0.0
        %4390 = vmatpush1.msra.mxu0 0.0
        %4391 = vmatprep.subr.mxu0 0.0
        %4392 = vmatpush1.msra.mxu0 0.0
        %4393 = vmatprep.subr.mxu0 0.0
        %4394 = vmatpush1.msra.mxu0 0.0
        %4395 = vmatprep.subr.mxu0 0.0
        %4396 = vmatpush1.msra.mxu0 0.0
        %4397 = vmatprep.subr.mxu0 0.0
        %4398 = vmatpush1.msra.mxu0 0.0
        %4399 = vmatprep.subr.mxu0 0.0
        %4400 = vmatpush1.msra.mxu0 0.0
        %4401 = vmatprep.subr.mxu0 0.0
        %4402 = vmatpush1.msra.mxu0 0.0
        %4403 = vmatprep.subr.mxu0 0.0
        %4404 = vmatpush1.msra.mxu0 0.0
        %4405 = vmatprep.subr.mxu0 0.0
        %4406 = vmatpush1.msra.mxu0 0.0
        %4407 = vmatprep.mubr.f32.mxu0 0.0
        %v4408 = vand.u32 %v3820, 4294901760
        %4409 = vmatmul.mubr.f32.gmra.mrb[0].mxu0 %v4408
        %v4410 = vpop.f32.mrb[0].mxu0
        %v4411 = vadd.f32 %v4319, %v4410
        %v4412 = vpop.f32.mrb[0].mxu0
        %4413 = vmatprep.mubr.f32.mxu0 0.0
        %v4414 = vand.u32 %v3823, 4294901760
        %4415 = vmatmul.mubr.f32.gmra.mrb[0].mxu0 %v4414
        %v4416 = vpop.f32.mrb[0].mxu0
        %v4417 = vadd.f32 %v4325, %v4416
        %v4418 = vpop.f32.mrb[0].mxu0
        %4419 = vmatprep.mubr.f32.mxu0 0.0
        %v4420 = vand.u32 %v3826, 4294901760
        %4421 = vmatmul.mubr.f32.gmra.mrb[0].mxu0 %v4420
        %v4422 = vpop.f32.mrb[0].mxu0
        %v4423 = vadd.f32 %v4331, %v4422
        %v4424 = vpop.f32.mrb[0].mxu0
        %4425 = vmatprep.mubr.f32.mxu0 0.0
        %v4426 = vand.u32 %v3829, 4294901760
        %4427 = vmatmul.mubr.f32.gmra.mrb[0].mxu0 %v4426
        %v4428 = vpop.f32.mrb[0].mxu0
        %v4429 = vadd.f32 %v4337, %v4428
        %v4430 = vpop.f32.mrb[0].mxu0
        %4431 = vdwg.mxu0
        %v4432 = vmax.f32 %v4411, 0.0
        %v4433 = vmax.f32 %v4417, 0.0
        %v4434 = vmax.f32 %v4423, 0.0
        %v4435 = vmax.f32 %v4429, 0.0
        %v4436 = vld [vmem:[%s1 + $0xe0] sm:$0xff]
        %v4437 = vld [vmem:[%s1 + $0xe8] sm:$0xff]
        %v4438 = vld [vmem:[%s1 + $0xf0] sm:$0xff]
        %v4439 = vld [vmem:[%s1 + $0xf8] sm:$0xff]
        %v4440 = vld [vmem:[%s1 + $0x100] sm:$0xff]
        %v4441 = vld [vmem:[%s1 + $0x108] sm:$0xff]
        %v4442 = vld [vmem:[%s1 + $0x110] sm:$0xff]
        %v4443 = vld [vmem:[%s1 + $0x118] sm:$0xff]
        %4444 = vset.pattern.permute.xlu0 6
        %4445 = vperm.xlu0 %4444, %v234
        %v4446 = vpop.permute.xlu0 %4445
        %4448 = vset.pattern.permute.xlu0 6
        %4449 = vperm.xlu0 %4448, %v235
        %v4450 = vpop.permute.xlu0 %4449
        %4452 = vset.pattern.permute.xlu0 6
        %4453 = vperm.xlu0 %4452, %v236
        %v4454 = vpop.permute.xlu0 %4453
        %4456 = vset.pattern.permute.xlu0 6
        %4457 = vperm.xlu0 %4456, %v237
        %v4458 = vpop.permute.xlu0 %4457
        %4460 = vset.pattern.permute.xlu0 6
        %4461 = vperm.xlu0 %4460, %v238
        %v4462 = vpop.permute.xlu0 %4461
        %4464 = vset.pattern.permute.xlu0 6
        %4465 = vperm.xlu0 %4464, %v239
        %v4466 = vpop.permute.xlu0 %4465
        %4468 = vset.pattern.permute.xlu0 6
        %4469 = vperm.xlu0 %4468, %v240
        %v4470 = vpop.permute.xlu0 %4469
        %4472 = vset.pattern.permute.xlu0 6
        %4473 = vperm.xlu0 %4472, %v241
        %v4474 = vpop.permute.xlu0 %4473
        %v4477 = vsel %vm282, %v4436, 0
        %v4480 = vsel %vm282, %v4437, 0
        %v4483 = vsel %vm282, %v4438, 0
        %v4486 = vsel %vm282, %v4439, 0
        %v4489 = vsel %vm282, %v4440, 0
        %v4492 = vsel %vm282, %v4441, 0
        %v4495 = vsel %vm282, %v4442, 0
        %v4498 = vsel %vm282, %v4443, 0
        %4500 = vmatprep.subr.mxu0 0.0
        %v4501 = vand.u32 %v4432, 4294901760
        %4502 = vmatpush1.msra.mxu0 %v4501
        %4503 = vmatprep.subr.mxu0 0.0
        %v4504 = vand.u32 %v4433, 4294901760
        %4505 = vmatpush1.msra.mxu0 %v4504
        %4506 = vmatprep.subr.mxu0 0.0
        %v4507 = vand.u32 %v4434, 4294901760
        %4508 = vmatpush1.msra.mxu0 %v4507
        %4509 = vmatprep.subr.mxu0 0.0
        %v4510 = vand.u32 %v4435, 4294901760
        %4511 = vmatpush1.msra.mxu0 %v4510
        %4512 = vmatprep.subr.mxu0 0.0
        %4513 = vmatpush1.msra.mxu0 0.0
        %4514 = vmatprep.subr.mxu0 0.0
        %4515 = vmatpush1.msra.mxu0 0.0
        %4516 = vmatprep.subr.mxu0 0.0
        %4517 = vmatpush1.msra.mxu0 0.0
        %4518 = vmatprep.subr.mxu0 0.0
        %4519 = vmatpush1.msra.mxu0 0.0
        %4520 = vmatprep.subr.mxu0 0.0
        %4521 = vmatpush1.msra.mxu0 0.0
        %4522 = vmatprep.subr.mxu0 0.0
        %4523 = vmatpush1.msra.mxu0 0.0
        %4524 = vmatprep.subr.mxu0 0.0
        %4525 = vmatpush1.msra.mxu0 0.0
        %4526 = vmatprep.subr.mxu0 0.0
        %4527 = vmatpush1.msra.mxu0 0.0
        %4528 = vmatprep.subr.mxu0 0.0
        %4529 = vmatpush1.msra.mxu0 0.0
        %4530 = vmatprep.subr.mxu0 0.0
        %4531 = vmatpush1.msra.mxu0 0.0
        %4532 = vmatprep.subr.mxu0 0.0
        %4533 = vmatpush1.msra.mxu0 0.0
        %4534 = vmatprep.subr.mxu0 0.0
        %4535 = vmatpush1.msra.mxu0 0.0
        %4536 = vmatprep.subr.mxu0 0.0
        %4537 = vmatpush1.msra.mxu0 0.0
        %4538 = vmatprep.subr.mxu0 0.0
        %4539 = vmatpush1.msra.mxu0 0.0
        %4540 = vmatprep.subr.mxu0 0.0
        %4541 = vmatpush1.msra.mxu0 0.0
        %4542 = vmatprep.subr.mxu0 0.0
        %4543 = vmatpush1.msra.mxu0 0.0
        %4544 = vmatprep.subr.mxu0 0.0
        %4545 = vmatpush1.msra.mxu0 0.0
        %4546 = vmatprep.subr.mxu0 0.0
        %4547 = vmatpush1.msra.mxu0 0.0
        %4548 = vmatprep.subr.mxu0 0.0
        %4549 = vmatpush1.msra.mxu0 0.0
        %4550 = vmatprep.subr.mxu0 0.0
        %4551 = vmatpush1.msra.mxu0 0.0
        %4552 = vmatprep.subr.mxu0 0.0
        %4553 = vmatpush1.msra.mxu0 0.0
        %4554 = vmatprep.subr.mxu0 0.0
        %4555 = vmatpush1.msra.mxu0 0.0
        %4556 = vmatprep.subr.mxu0 0.0
        %4557 = vmatpush1.msra.mxu0 0.0
        %4558 = vmatprep.subr.mxu0 0.0
        %4559 = vmatpush1.msra.mxu0 0.0
        %4560 = vmatprep.subr.mxu0 0.0
        %4561 = vmatpush1.msra.mxu0 0.0
        %4562 = vmatprep.subr.mxu0 0.0
        %4563 = vmatpush1.msra.mxu0 0.0
        %4564 = vmatprep.subr.mxu0 0.0
        %4565 = vmatpush1.msra.mxu0 0.0
        %4566 = vmatprep.subr.mxu0 0.0
        %4567 = vmatpush1.msra.mxu0 0.0
        %4568 = vmatprep.mubr.f32.mxu0 0.0
        %v4569 = vand.u32 %v4477, 4294901760
        %v4570 = vsub.f32 %v4477, %v4569
        %v4571 = vand.u32 %v4570, 4294901760
        %v4572 = vsub.f32 %v4570, %v4571
        %v4573 = vand.u32 %v4572, 4294901760
        %4574 = vmatmul.mubr.f32.gmra.mrb[0].mxu0 %v4573
        %v4575 = vpop.f32.mrb[0].mxu0
        %v4576 = vadd.f32 %v4446, %v4575
        %v4577 = vpop.f32.mrb[0].mxu0
        %4578 = vmatprep.mubr.f32.mxu0 0.0
        %v4579 = vand.u32 %v4480, 4294901760
        %v4580 = vsub.f32 %v4480, %v4579
        %v4581 = vand.u32 %v4580, 4294901760
        %v4582 = vsub.f32 %v4580, %v4581
        %v4583 = vand.u32 %v4582, 4294901760
        %4584 = vmatmul.mubr.f32.gmra.mrb[0].mxu0 %v4583
        %v4585 = vpop.f32.mrb[0].mxu0
        %v4586 = vadd.f32 %v4450, %v4585
        %v4587 = vpop.f32.mrb[0].mxu0
        %4588 = vmatprep.mubr.f32.mxu0 0.0
        %v4589 = vand.u32 %v4483, 4294901760
        %v4590 = vsub.f32 %v4483, %v4589
        %v4591 = vand.u32 %v4590, 4294901760
        %v4592 = vsub.f32 %v4590, %v4591
        %v4593 = vand.u32 %v4592, 4294901760
        %4594 = vmatmul.mubr.f32.gmra.mrb[0].mxu0 %v4593
        %v4595 = vpop.f32.mrb[0].mxu0
        %v4596 = vadd.f32 %v4454, %v4595
        %v4597 = vpop.f32.mrb[0].mxu0
        %4598 = vmatprep.mubr.f32.mxu0 0.0
        %v4599 = vand.u32 %v4486, 4294901760
        %v4600 = vsub.f32 %v4486, %v4599
        %v4601 = vand.u32 %v4600, 4294901760
        %v4602 = vsub.f32 %v4600, %v4601
        %v4603 = vand.u32 %v4602, 4294901760
        %4604 = vmatmul.mubr.f32.gmra.mrb[0].mxu0 %v4603
        %v4605 = vpop.f32.mrb[0].mxu0
        %v4606 = vadd.f32 %v4458, %v4605
        %v4607 = vpop.f32.mrb[0].mxu0
        %4608 = vmatprep.mubr.f32.mxu0 0.0
        %v4609 = vand.u32 %v4489, 4294901760
        %v4610 = vsub.f32 %v4489, %v4609
        %v4611 = vand.u32 %v4610, 4294901760
        %v4612 = vsub.f32 %v4610, %v4611
        %v4613 = vand.u32 %v4612, 4294901760
        %4614 = vmatmul.mubr.f32.gmra.mrb[0].mxu0 %v4613
        %v4615 = vpop.f32.mrb[0].mxu0
        %v4616 = vadd.f32 %v4462, %v4615
        %v4617 = vpop.f32.mrb[0].mxu0
        %4618 = vmatprep.mubr.f32.mxu0 0.0
        %v4619 = vand.u32 %v4492, 4294901760
        %v4620 = vsub.f32 %v4492, %v4619
        %v4621 = vand.u32 %v4620, 4294901760
        %v4622 = vsub.f32 %v4620, %v4621
        %v4623 = vand.u32 %v4622, 4294901760
        %4624 = vmatmul.mubr.f32.gmra.mrb[0].mxu0 %v4623
        %v4625 = vpop.f32.mrb[0].mxu0
        %v4626 = vadd.f32 %v4466, %v4625
        %v4627 = vpop.f32.mrb[0].mxu0
        %4628 = vmatprep.mubr.f32.mxu0 0.0
        %v4629 = vand.u32 %v4495, 4294901760
        %v4630 = vsub.f32 %v4495, %v4629
        %v4631 = vand.u32 %v4630, 4294901760
        %v4632 = vsub.f32 %v4630, %v4631
        %v4633 = vand.u32 %v4632, 4294901760
        %4634 = vmatmul.mubr.f32.gmra.mrb[0].mxu0 %v4633
        %v4635 = vpop.f32.mrb[0].mxu0
        %v4636 = vadd.f32 %v4470, %v4635
        %v4637 = vpop.f32.mrb[0].mxu0
        %4638 = vmatprep.mubr.f32.mxu0 0.0
        %v4639 = vand.u32 %v4498, 4294901760
        %v4640 = vsub.f32 %v4498, %v4639
        %v4641 = vand.u32 %v4640, 4294901760
        %v4642 = vsub.f32 %v4640, %v4641
        %v4643 = vand.u32 %v4642, 4294901760
        %4644 = vmatmul.mubr.f32.gmra.mrb[0].mxu0 %v4643
        %v4645 = vpop.f32.mrb[0].mxu0
        %v4646 = vadd.f32 %v4474, %v4645
        %v4647 = vpop.f32.mrb[0].mxu0
        %4648 = vdwg.mxu0
        %4649 = vmatprep.subr.mxu0 0.0
        %v4650 = vand.u32 %v4432, 4294901760
        %v4651 = vsub.f32 %v4432, %v4650
        %v4652 = vand.u32 %v4651, 4294901760
        %v4653 = vsub.f32 %v4651, %v4652
        %v4654 = vand.u32 %v4653, 4294901760
        %4655 = vmatpush1.msra.mxu0 %v4654
        %4656 = vmatprep.subr.mxu0 0.0
        %v4657 = vand.u32 %v4433, 4294901760
        %v4658 = vsub.f32 %v4433, %v4657
        %v4659 = vand.u32 %v4658, 4294901760
        %v4660 = vsub.f32 %v4658, %v4659
        %v4661 = vand.u32 %v4660, 4294901760
        %4662 = vmatpush1.msra.mxu0 %v4661
        %4663 = vmatprep.subr.mxu0 0.0
        %v4664 = vand.u32 %v4434, 4294901760
        %v4665 = vsub.f32 %v4434, %v4664
        %v4666 = vand.u32 %v4665, 4294901760
        %v4667 = vsub.f32 %v4665, %v4666
        %v4668 = vand.u32 %v4667, 4294901760
        %4669 = vmatpush1.msra.mxu0 %v4668
        %4670 = vmatprep.subr.mxu0 0.0
        %v4671 = vand.u32 %v4435, 4294901760
        %v4672 = vsub.f32 %v4435, %v4671
        %v4673 = vand.u32 %v4672, 4294901760
        %v4674 = vsub.f32 %v4672, %v4673
        %v4675 = vand.u32 %v4674, 4294901760
        %4676 = vmatpush1.msra.mxu0 %v4675
        %4677 = vmatprep.subr.mxu0 0.0
        %4678 = vmatpush1.msra.mxu0 0.0
        %4679 = vmatprep.subr.mxu0 0.0
        %4680 = vmatpush1.msra.mxu0 0.0
        %4681 = vmatprep.subr.mxu0 0.0
        %4682 = vmatpush1.msra.mxu0 0.0
        %4683 = vmatprep.subr.mxu0 0.0
        %4684 = vmatpush1.msra.mxu0 0.0
        %4685 = vmatprep.subr.mxu0 0.0
        %4686 = vmatpush1.msra.mxu0 0.0
        %4687 = vmatprep.subr.mxu0 0.0
        %4688 = vmatpush1.msra.mxu0 0.0
        %4689 = vmatprep.subr.mxu0 0.0
        %4690 = vmatpush1.msra.mxu0 0.0
        %4691 = vmatprep.subr.mxu0 0.0
        %4692 = vmatpush1.msra.mxu0 0.0
        %4693 = vmatprep.subr.mxu0 0.0
        %4694 = vmatpush1.msra.mxu0 0.0
        %4695 = vmatprep.subr.mxu0 0.0
        %4696 = vmatpush1.msra.mxu0 0.0
        %4697 = vmatprep.subr.mxu0 0.0
        %4698 = vmatpush1.msra.mxu0 0.0
        %4699 = vmatprep.subr.mxu0 0.0
        %4700 = vmatpush1.msra.mxu0 0.0
        %4701 = vmatprep.subr.mxu0 0.0
        %4702 = vmatpush1.msra.mxu0 0.0
        %4703 = vmatprep.subr.mxu0 0.0
        %4704 = vmatpush1.msra.mxu0 0.0
        %4705 = vmatprep.subr.mxu0 0.0
        %4706 = vmatpush1.msra.mxu0 0.0
        %4707 = vmatprep.subr.mxu0 0.0
        %4708 = vmatpush1.msra.mxu0 0.0
        %4709 = vmatprep.subr.mxu0 0.0
        %4710 = vmatpush1.msra.mxu0 0.0
        %4711 = vmatprep.subr.mxu0 0.0
        %4712 = vmatpush1.msra.mxu0 0.0
        %4713 = vmatprep.subr.mxu0 0.0
        %4714 = vmatpush1.msra.mxu0 0.0
        %4715 = vmatprep.subr.mxu0 0.0
        %4716 = vmatpush1.msra.mxu0 0.0
        %4717 = vmatprep.subr.mxu0 0.0
        %4718 = vmatpush1.msra.mxu0 0.0
        %4719 = vmatprep.subr.mxu0 0.0
        %4720 = vmatpush1.msra.mxu0 0.0
        %4721 = vmatprep.subr.mxu0 0.0
        %4722 = vmatpush1.msra.mxu0 0.0
        %4723 = vmatprep.subr.mxu0 0.0
        %4724 = vmatpush1.msra.mxu0 0.0
        %4725 = vmatprep.subr.mxu0 0.0
        %4726 = vmatpush1.msra.mxu0 0.0
        %4727 = vmatprep.subr.mxu0 0.0
        %4728 = vmatpush1.msra.mxu0 0.0
        %4729 = vmatprep.subr.mxu0 0.0
        %4730 = vmatpush1.msra.mxu0 0.0
        %4731 = vmatprep.subr.mxu0 0.0
        %4732 = vmatpush1.msra.mxu0 0.0
        %4733 = vmatprep.mubr.f32.mxu0 0.0
        %v4734 = vand.u32 %v4477, 4294901760
        %4735 = vmatmul.mubr.f32.gmra.mrb[0].mxu0 %v4734
        %v4736 = vpop.f32.mrb[0].mxu0
        %v4737 = vadd.f32 %v4576, %v4736
        %v4738 = vpop.f32.mrb[0].mxu0
        %4739 = vmatprep.mubr.f32.mxu0 0.0
        %v4740 = vand.u32 %v4480, 4294901760
        %4741 = vmatmul.mubr.f32.gmra.mrb[0].mxu0 %v4740
        %v4742 = vpop.f32.mrb[0].mxu0
        %v4743 = vadd.f32 %v4586, %v4742
        %v4744 = vpop.f32.mrb[0].mxu0
        %4745 = vmatprep.mubr.f32.mxu0 0.0
        %v4746 = vand.u32 %v4483, 4294901760
        %4747 = vmatmul.mubr.f32.gmra.mrb[0].mxu0 %v4746
        %v4748 = vpop.f32.mrb[0].mxu0
        %v4749 = vadd.f32 %v4596, %v4748
        %v4750 = vpop.f32.mrb[0].mxu0
        %4751 = vmatprep.mubr.f32.mxu0 0.0
        %v4752 = vand.u32 %v4486, 4294901760
        %4753 = vmatmul.mubr.f32.gmra.mrb[0].mxu0 %v4752
        %v4754 = vpop.f32.mrb[0].mxu0
        %v4755 = vadd.f32 %v4606, %v4754
        %v4756 = vpop.f32.mrb[0].mxu0
        %4757 = vmatprep.mubr.f32.mxu0 0.0
        %v4758 = vand.u32 %v4489, 4294901760
        %4759 = vmatmul.mubr.f32.gmra.mrb[0].mxu0 %v4758
        %v4760 = vpop.f32.mrb[0].mxu0
        %v4761 = vadd.f32 %v4616, %v4760
        %v4762 = vpop.f32.mrb[0].mxu0
        %4763 = vmatprep.mubr.f32.mxu0 0.0
        %v4764 = vand.u32 %v4492, 4294901760
        %4765 = vmatmul.mubr.f32.gmra.mrb[0].mxu0 %v4764
        %v4766 = vpop.f32.mrb[0].mxu0
        %v4767 = vadd.f32 %v4626, %v4766
        %v4768 = vpop.f32.mrb[0].mxu0
        %4769 = vmatprep.mubr.f32.mxu0 0.0
        %v4770 = vand.u32 %v4495, 4294901760
        %4771 = vmatmul.mubr.f32.gmra.mrb[0].mxu0 %v4770
        %v4772 = vpop.f32.mrb[0].mxu0
        %v4773 = vadd.f32 %v4636, %v4772
        %v4774 = vpop.f32.mrb[0].mxu0
        %4775 = vmatprep.mubr.f32.mxu0 0.0
        %v4776 = vand.u32 %v4498, 4294901760
        %4777 = vmatmul.mubr.f32.gmra.mrb[0].mxu0 %v4776
        %v4778 = vpop.f32.mrb[0].mxu0
        %v4779 = vadd.f32 %v4646, %v4778
        %v4780 = vpop.f32.mrb[0].mxu0
        %4781 = vdwg.mxu0
        %4782 = vmatprep.subr.mxu0 0.0
        %v4783 = vand.u32 %v4432, 4294901760
        %v4784 = vsub.f32 %v4432, %v4783
        %4785 = vmatpush1.msra.mxu0 %v4784
        %4786 = vmatprep.subr.mxu0 0.0
        %v4787 = vand.u32 %v4433, 4294901760
        %v4788 = vsub.f32 %v4433, %v4787
        %4789 = vmatpush1.msra.mxu0 %v4788
        %4790 = vmatprep.subr.mxu0 0.0
        %v4791 = vand.u32 %v4434, 4294901760
        %v4792 = vsub.f32 %v4434, %v4791
        %4793 = vmatpush1.msra.mxu0 %v4792
        %4794 = vmatprep.subr.mxu0 0.0
        %v4795 = vand.u32 %v4435, 4294901760
        %v4796 = vsub.f32 %v4435, %v4795
        %4797 = vmatpush1.msra.mxu0 %v4796
        %4798 = vmatprep.subr.mxu0 0.0
        %4799 = vmatpush1.msra.mxu0 0.0
        %4800 = vmatprep.subr.mxu0 0.0
        %4801 = vmatpush1.msra.mxu0 0.0
        %4802 = vmatprep.subr.mxu0 0.0
        %4803 = vmatpush1.msra.mxu0 0.0
        %4804 = vmatprep.subr.mxu0 0.0
        %4805 = vmatpush1.msra.mxu0 0.0
        %4806 = vmatprep.subr.mxu0 0.0
        %4807 = vmatpush1.msra.mxu0 0.0
        %4808 = vmatprep.subr.mxu0 0.0
        %4809 = vmatpush1.msra.mxu0 0.0
        %4810 = vmatprep.subr.mxu0 0.0
        %4811 = vmatpush1.msra.mxu0 0.0
        %4812 = vmatprep.subr.mxu0 0.0
        %4813 = vmatpush1.msra.mxu0 0.0
        %4814 = vmatprep.subr.mxu0 0.0
        %4815 = vmatpush1.msra.mxu0 0.0
        %4816 = vmatprep.subr.mxu0 0.0
        %4817 = vmatpush1.msra.mxu0 0.0
        %4818 = vmatprep.subr.mxu0 0.0
        %4819 = vmatpush1.msra.mxu0 0.0
        %4820 = vmatprep.subr.mxu0 0.0
        %4821 = vmatpush1.msra.mxu0 0.0
        %4822 = vmatprep.subr.mxu0 0.0
        %4823 = vmatpush1.msra.mxu0 0.0
        %4824 = vmatprep.subr.mxu0 0.0
        %4825 = vmatpush1.msra.mxu0 0.0
        %4826 = vmatprep.subr.mxu0 0.0
        %4827 = vmatpush1.msra.mxu0 0.0
        %4828 = vmatprep.subr.mxu0 0.0
        %4829 = vmatpush1.msra.mxu0 0.0
        %4830 = vmatprep.subr.mxu0 0.0
        %4831 = vmatpush1.msra.mxu0 0.0
        %4832 = vmatprep.subr.mxu0 0.0
        %4833 = vmatpush1.msra.mxu0 0.0
        %4834 = vmatprep.subr.mxu0 0.0
        %4835 = vmatpush1.msra.mxu0 0.0
        %4836 = vmatprep.subr.mxu0 0.0
        %4837 = vmatpush1.msra.mxu0 0.0
        %4838 = vmatprep.subr.mxu0 0.0
        %4839 = vmatpush1.msra.mxu0 0.0
        %4840 = vmatprep.subr.mxu0 0.0
        %4841 = vmatpush1.msra.mxu0 0.0
        %4842 = vmatprep.subr.mxu0 0.0
        %4843 = vmatpush1.msra.mxu0 0.0
        %4844 = vmatprep.subr.mxu0 0.0
        %4845 = vmatpush1.msra.mxu0 0.0
        %4846 = vmatprep.subr.mxu0 0.0
        %4847 = vmatpush1.msra.mxu0 0.0
        %4848 = vmatprep.subr.mxu0 0.0
        %4849 = vmatpush1.msra.mxu0 0.0
        %4850 = vmatprep.subr.mxu0 0.0
        %4851 = vmatpush1.msra.mxu0 0.0
        %4852 = vmatprep.subr.mxu0 0.0
        %4853 = vmatpush1.msra.mxu0 0.0
        %4854 = vmatprep.mubr.f32.mxu0 0.0
        %v4855 = vand.u32 %v4477, 4294901760
        %v4856 = vsub.f32 %v4477, %v4855
        %4857 = vmatmul.mubr.f32.gmra.mrb[0].mxu0 %v4856
        %v4858 = vpop.f32.mrb[0].mxu0
        %v4859 = vadd.f32 %v4737, %v4858
        %v4860 = vpop.f32.mrb[0].mxu0
        %4861 = vmatprep.mubr.f32.mxu0 0.0
        %v4862 = vand.u32 %v4480, 4294901760
        %v4863 = vsub.f32 %v4480, %v4862
        %4864 = vmatmul.mubr.f32.gmra.mrb[0].mxu0 %v4863
        %v4865 = vpop.f32.mrb[0].mxu0
        %v4866 = vadd.f32 %v4743, %v4865
        %v4867 = vpop.f32.mrb[0].mxu0
        %4868 = vmatprep.mubr.f32.mxu0 0.0
        %v4869 = vand.u32 %v4483, 4294901760
        %v4870 = vsub.f32 %v4483, %v4869
        %4871 = vmatmul.mubr.f32.gmra.mrb[0].mxu0 %v4870
        %v4872 = vpop.f32.mrb[0].mxu0
        %v4873 = vadd.f32 %v4749, %v4872
        %v4874 = vpop.f32.mrb[0].mxu0
        %4875 = vmatprep.mubr.f32.mxu0 0.0
        %v4876 = vand.u32 %v4486, 4294901760
        %v4877 = vsub.f32 %v4486, %v4876
        %4878 = vmatmul.mubr.f32.gmra.mrb[0].mxu0 %v4877
        %v4879 = vpop.f32.mrb[0].mxu0
        %v4880 = vadd.f32 %v4755, %v4879
        %v4881 = vpop.f32.mrb[0].mxu0
        %4882 = vmatprep.mubr.f32.mxu0 0.0
        %v4883 = vand.u32 %v4489, 4294901760
        %v4884 = vsub.f32 %v4489, %v4883
        %4885 = vmatmul.mubr.f32.gmra.mrb[0].mxu0 %v4884
        %v4886 = vpop.f32.mrb[0].mxu0
        %v4887 = vadd.f32 %v4761, %v4886
        %v4888 = vpop.f32.mrb[0].mxu0
        %4889 = vmatprep.mubr.f32.mxu0 0.0
        %v4890 = vand.u32 %v4492, 4294901760
        %v4891 = vsub.f32 %v4492, %v4890
        %4892 = vmatmul.mubr.f32.gmra.mrb[0].mxu0 %v4891
        %v4893 = vpop.f32.mrb[0].mxu0
        %v4894 = vadd.f32 %v4767, %v4893
        %v4895 = vpop.f32.mrb[0].mxu0
        %4896 = vmatprep.mubr.f32.mxu0 0.0
        %v4897 = vand.u32 %v4495, 4294901760
        %v4898 = vsub.f32 %v4495, %v4897
        %4899 = vmatmul.mubr.f32.gmra.mrb[0].mxu0 %v4898
        %v4900 = vpop.f32.mrb[0].mxu0
        %v4901 = vadd.f32 %v4773, %v4900
        %v4902 = vpop.f32.mrb[0].mxu0
        %4903 = vmatprep.mubr.f32.mxu0 0.0
        %v4904 = vand.u32 %v4498, 4294901760
        %v4905 = vsub.f32 %v4498, %v4904
        %4906 = vmatmul.mubr.f32.gmra.mrb[0].mxu0 %v4905
        %v4907 = vpop.f32.mrb[0].mxu0
        %v4908 = vadd.f32 %v4779, %v4907
        %v4909 = vpop.f32.mrb[0].mxu0
        %4910 = vdwg.mxu0
        %4911 = vmatprep.subr.mxu0 0.0
        %v4912 = vand.u32 %v4432, 4294901760
        %4913 = vmatpush1.msra.mxu0 %v4912
        %4914 = vmatprep.subr.mxu0 0.0
        %v4915 = vand.u32 %v4433, 4294901760
        %4916 = vmatpush1.msra.mxu0 %v4915
        %4917 = vmatprep.subr.mxu0 0.0
        %v4918 = vand.u32 %v4434, 4294901760
        %4919 = vmatpush1.msra.mxu0 %v4918
        %4920 = vmatprep.subr.mxu0 0.0
        %v4921 = vand.u32 %v4435, 4294901760
        %4922 = vmatpush1.msra.mxu0 %v4921
        %4923 = vmatprep.subr.mxu0 0.0
        %4924 = vmatpush1.msra.mxu0 0.0
        %4925 = vmatprep.subr.mxu0 0.0
        %4926 = vmatpush1.msra.mxu0 0.0
        %4927 = vmatprep.subr.mxu0 0.0
        %4928 = vmatpush1.msra.mxu0 0.0
        %4929 = vmatprep.subr.mxu0 0.0
        %4930 = vmatpush1.msra.mxu0 0.0
        %4931 = vmatprep.subr.mxu0 0.0
        %4932 = vmatpush1.msra.mxu0 0.0
        %4933 = vmatprep.subr.mxu0 0.0
        %4934 = vmatpush1.msra.mxu0 0.0
        %4935 = vmatprep.subr.mxu0 0.0
        %4936 = vmatpush1.msra.mxu0 0.0
        %4937 = vmatprep.subr.mxu0 0.0
        %4938 = vmatpush1.msra.mxu0 0.0
        %4939 = vmatprep.subr.mxu0 0.0
        %4940 = vmatpush1.msra.mxu0 0.0
        %4941 = vmatprep.subr.mxu0 0.0
        %4942 = vmatpush1.msra.mxu0 0.0
        %4943 = vmatprep.subr.mxu0 0.0
        %4944 = vmatpush1.msra.mxu0 0.0
        %4945 = vmatprep.subr.mxu0 0.0
        %4946 = vmatpush1.msra.mxu0 0.0
        %4947 = vmatprep.subr.mxu0 0.0
        %4948 = vmatpush1.msra.mxu0 0.0
        %4949 = vmatprep.subr.mxu0 0.0
        %4950 = vmatpush1.msra.mxu0 0.0
        %4951 = vmatprep.subr.mxu0 0.0
        %4952 = vmatpush1.msra.mxu0 0.0
        %4953 = vmatprep.subr.mxu0 0.0
        %4954 = vmatpush1.msra.mxu0 0.0
        %4955 = vmatprep.subr.mxu0 0.0
        %4956 = vmatpush1.msra.mxu0 0.0
        %4957 = vmatprep.subr.mxu0 0.0
        %4958 = vmatpush1.msra.mxu0 0.0
        %4959 = vmatprep.subr.mxu0 0.0
        %4960 = vmatpush1.msra.mxu0 0.0
        %4961 = vmatprep.subr.mxu0 0.0
        %4962 = vmatpush1.msra.mxu0 0.0
        %4963 = vmatprep.subr.mxu0 0.0
        %4964 = vmatpush1.msra.mxu0 0.0
        %4965 = vmatprep.subr.mxu0 0.0
        %4966 = vmatpush1.msra.mxu0 0.0
        %4967 = vmatprep.subr.mxu0 0.0
        %4968 = vmatpush1.msra.mxu0 0.0
        %4969 = vmatprep.subr.mxu0 0.0
        %4970 = vmatpush1.msra.mxu0 0.0
        %4971 = vmatprep.subr.mxu0 0.0
        %4972 = vmatpush1.msra.mxu0 0.0
        %4973 = vmatprep.subr.mxu0 0.0
        %4974 = vmatpush1.msra.mxu0 0.0
        %4975 = vmatprep.subr.mxu0 0.0
        %4976 = vmatpush1.msra.mxu0 0.0
        %4977 = vmatprep.subr.mxu0 0.0
        %4978 = vmatpush1.msra.mxu0 0.0
        %4979 = vmatprep.mubr.f32.mxu0 0.0
        %v4980 = vand.u32 %v4477, 4294901760
        %v4981 = vsub.f32 %v4477, %v4980
        %v4982 = vand.u32 %v4981, 4294901760
        %4983 = vmatmul.mubr.f32.gmra.mrb[0].mxu0 %v4982
        %v4984 = vpop.f32.mrb[0].mxu0
        %v4985 = vadd.f32 %v4859, %v4984
        %v4986 = vpop.f32.mrb[0].mxu0
        %4987 = vmatprep.mubr.f32.mxu0 0.0
        %v4988 = vand.u32 %v4480, 4294901760
        %v4989 = vsub.f32 %v4480, %v4988
        %v4990 = vand.u32 %v4989, 4294901760
        %4991 = vmatmul.mubr.f32.gmra.mrb[0].mxu0 %v4990
        %v4992 = vpop.f32.mrb[0].mxu0
        %v4993 = vadd.f32 %v4866, %v4992
        %v4994 = vpop.f32.mrb[0].mxu0
        %4995 = vmatprep.mubr.f32.mxu0 0.0
        %v4996 = vand.u32 %v4483, 4294901760
        %v4997 = vsub.f32 %v4483, %v4996
        %v4998 = vand.u32 %v4997, 4294901760
        %4999 = vmatmul.mubr.f32.gmra.mrb[0].mxu0 %v4998
        %v5000 = vpop.f32.mrb[0].mxu0
        %v5001 = vadd.f32 %v4873, %v5000
        %v5002 = vpop.f32.mrb[0].mxu0
        %5003 = vmatprep.mubr.f32.mxu0 0.0
        %v5004 = vand.u32 %v4486, 4294901760
        %v5005 = vsub.f32 %v4486, %v5004
        %v5006 = vand.u32 %v5005, 4294901760
        %5007 = vmatmul.mubr.f32.gmra.mrb[0].mxu0 %v5006
        %v5008 = vpop.f32.mrb[0].mxu0
        %v5009 = vadd.f32 %v4880, %v5008
        %v5010 = vpop.f32.mrb[0].mxu0
        %5011 = vmatprep.mubr.f32.mxu0 0.0
        %v5012 = vand.u32 %v4489, 4294901760
        %v5013 = vsub.f32 %v4489, %v5012
        %v5014 = vand.u32 %v5013, 4294901760
        %5015 = vmatmul.mubr.f32.gmra.mrb[0].mxu0 %v5014
        %v5016 = vpop.f32.mrb[0].mxu0
        %v5017 = vadd.f32 %v4887, %v5016
        %v5018 = vpop.f32.mrb[0].mxu0
        %5019 = vmatprep.mubr.f32.mxu0 0.0
        %v5020 = vand.u32 %v4492, 4294901760
        %v5021 = vsub.f32 %v4492, %v5020
        %v5022 = vand.u32 %v5021, 4294901760
        %5023 = vmatmul.mubr.f32.gmra.mrb[0].mxu0 %v5022
        %v5024 = vpop.f32.mrb[0].mxu0
        %v5025 = vadd.f32 %v4894, %v5024
        %v5026 = vpop.f32.mrb[0].mxu0
        %5027 = vmatprep.mubr.f32.mxu0 0.0
        %v5028 = vand.u32 %v4495, 4294901760
        %v5029 = vsub.f32 %v4495, %v5028
        %v5030 = vand.u32 %v5029, 4294901760
        %5031 = vmatmul.mubr.f32.gmra.mrb[0].mxu0 %v5030
        %v5032 = vpop.f32.mrb[0].mxu0
        %v5033 = vadd.f32 %v4901, %v5032
        %v5034 = vpop.f32.mrb[0].mxu0
        %5035 = vmatprep.mubr.f32.mxu0 0.0
        %v5036 = vand.u32 %v4498, 4294901760
        %v5037 = vsub.f32 %v4498, %v5036
        %v5038 = vand.u32 %v5037, 4294901760
        %5039 = vmatmul.mubr.f32.gmra.mrb[0].mxu0 %v5038
        %v5040 = vpop.f32.mrb[0].mxu0
        %v5041 = vadd.f32 %v4908, %v5040
        %v5042 = vpop.f32.mrb[0].mxu0
        %5043 = vdwg.mxu0
        %5044 = vmatprep.subr.mxu0 0.0
        %v5045 = vand.u32 %v4432, 4294901760
        %v5046 = vsub.f32 %v4432, %v5045
        %v5047 = vand.u32 %v5046, 4294901760
        %5048 = vmatpush1.msra.mxu0 %v5047
        %5049 = vmatprep.subr.mxu0 0.0
        %v5050 = vand.u32 %v4433, 4294901760
        %v5051 = vsub.f32 %v4433, %v5050
        %v5052 = vand.u32 %v5051, 4294901760
        %5053 = vmatpush1.msra.mxu0 %v5052
        %5054 = vmatprep.subr.mxu0 0.0
        %v5055 = vand.u32 %v4434, 4294901760
        %v5056 = vsub.f32 %v4434, %v5055
        %v5057 = vand.u32 %v5056, 4294901760
        %5058 = vmatpush1.msra.mxu0 %v5057
        %5059 = vmatprep.subr.mxu0 0.0
        %v5060 = vand.u32 %v4435, 4294901760
        %v5061 = vsub.f32 %v4435, %v5060
        %v5062 = vand.u32 %v5061, 4294901760
        %5063 = vmatpush1.msra.mxu0 %v5062
        %5064 = vmatprep.subr.mxu0 0.0
        %5065 = vmatpush1.msra.mxu0 0.0
        %5066 = vmatprep.subr.mxu0 0.0
        %5067 = vmatpush1.msra.mxu0 0.0
        %5068 = vmatprep.subr.mxu0 0.0
        %5069 = vmatpush1.msra.mxu0 0.0
        %5070 = vmatprep.subr.mxu0 0.0
        %5071 = vmatpush1.msra.mxu0 0.0
        %5072 = vmatprep.subr.mxu0 0.0
        %5073 = vmatpush1.msra.mxu0 0.0
        %5074 = vmatprep.subr.mxu0 0.0
        %5075 = vmatpush1.msra.mxu0 0.0
        %5076 = vmatprep.subr.mxu0 0.0
        %5077 = vmatpush1.msra.mxu0 0.0
        %5078 = vmatprep.subr.mxu0 0.0
        %5079 = vmatpush1.msra.mxu0 0.0
        %5080 = vmatprep.subr.mxu0 0.0
        %5081 = vmatpush1.msra.mxu0 0.0
        %5082 = vmatprep.subr.mxu0 0.0
        %5083 = vmatpush1.msra.mxu0 0.0
        %5084 = vmatprep.subr.mxu0 0.0
        %5085 = vmatpush1.msra.mxu0 0.0
        %5086 = vmatprep.subr.mxu0 0.0
        %5087 = vmatpush1.msra.mxu0 0.0
        %5088 = vmatprep.subr.mxu0 0.0
        %5089 = vmatpush1.msra.mxu0 0.0
        %5090 = vmatprep.subr.mxu0 0.0
        %5091 = vmatpush1.msra.mxu0 0.0
        %5092 = vmatprep.subr.mxu0 0.0
        %5093 = vmatpush1.msra.mxu0 0.0
        %5094 = vmatprep.subr.mxu0 0.0
        %5095 = vmatpush1.msra.mxu0 0.0
        %5096 = vmatprep.subr.mxu0 0.0
        %5097 = vmatpush1.msra.mxu0 0.0
        %5098 = vmatprep.subr.mxu0 0.0
        %5099 = vmatpush1.msra.mxu0 0.0
        %5100 = vmatprep.subr.mxu0 0.0
        %5101 = vmatpush1.msra.mxu0 0.0
        %5102 = vmatprep.subr.mxu0 0.0
        %5103 = vmatpush1.msra.mxu0 0.0
        %5104 = vmatprep.subr.mxu0 0.0
        %5105 = vmatpush1.msra.mxu0 0.0
        %5106 = vmatprep.subr.mxu0 0.0
        %5107 = vmatpush1.msra.mxu0 0.0
        %5108 = vmatprep.subr.mxu0 0.0
        %5109 = vmatpush1.msra.mxu0 0.0
        %5110 = vmatprep.subr.mxu0 0.0
        %5111 = vmatpush1.msra.mxu0 0.0
        %5112 = vmatprep.subr.mxu0 0.0
        %5113 = vmatpush1.msra.mxu0 0.0
        %5114 = vmatprep.subr.mxu0 0.0
        %5115 = vmatpush1.msra.mxu0 0.0
        %5116 = vmatprep.subr.mxu0 0.0
        %5117 = vmatpush1.msra.mxu0 0.0
        %5118 = vmatprep.subr.mxu0 0.0
        %5119 = vmatpush1.msra.mxu0 0.0
        %5120 = vmatprep.mubr.f32.mxu0 0.0
        %v5121 = vand.u32 %v4477, 4294901760
        %5122 = vmatmul.mubr.f32.gmra.mrb[0].mxu0 %v5121
        %v5123 = vpop.f32.mrb[0].mxu0
        %v5124 = vadd.f32 %v4985, %v5123
        %v5125 = vpop.f32.mrb[0].mxu0
        %5126 = vmatprep.mubr.f32.mxu0 0.0
        %v5127 = vand.u32 %v4480, 4294901760
        %5128 = vmatmul.mubr.f32.gmra.mrb[0].mxu0 %v5127
        %v5129 = vpop.f32.mrb[0].mxu0
        %v5130 = vadd.f32 %v4993, %v5129
        %v5131 = vpop.f32.mrb[0].mxu0
        %5132 = vmatprep.mubr.f32.mxu0 0.0
        %v5133 = vand.u32 %v4483, 4294901760
        %5134 = vmatmul.mubr.f32.gmra.mrb[0].mxu0 %v5133
        %v5135 = vpop.f32.mrb[0].mxu0
        %v5136 = vadd.f32 %v5001, %v5135
        %v5137 = vpop.f32.mrb[0].mxu0
        %5138 = vmatprep.mubr.f32.mxu0 0.0
        %v5139 = vand.u32 %v4486, 4294901760
        %5140 = vmatmul.mubr.f32.gmra.mrb[0].mxu0 %v5139
        %v5141 = vpop.f32.mrb[0].mxu0
        %v5142 = vadd.f32 %v5009, %v5141
        %v5143 = vpop.f32.mrb[0].mxu0
        %5144 = vmatprep.mubr.f32.mxu0 0.0
        %v5145 = vand.u32 %v4489, 4294901760
        %5146 = vmatmul.mubr.f32.gmra.mrb[0].mxu0 %v5145
        %v5147 = vpop.f32.mrb[0].mxu0
        %v5148 = vadd.f32 %v5017, %v5147
        %v5149 = vpop.f32.mrb[0].mxu0
        %5150 = vmatprep.mubr.f32.mxu0 0.0
        %v5151 = vand.u32 %v4492, 4294901760
        %5152 = vmatmul.mubr.f32.gmra.mrb[0].mxu0 %v5151
        %v5153 = vpop.f32.mrb[0].mxu0
        %v5154 = vadd.f32 %v5025, %v5153
        %v5155 = vpop.f32.mrb[0].mxu0
        %5156 = vmatprep.mubr.f32.mxu0 0.0
        %v5157 = vand.u32 %v4495, 4294901760
        %5158 = vmatmul.mubr.f32.gmra.mrb[0].mxu0 %v5157
        %v5159 = vpop.f32.mrb[0].mxu0
        %v5160 = vadd.f32 %v5033, %v5159
        %v5161 = vpop.f32.mrb[0].mxu0
        %5162 = vmatprep.mubr.f32.mxu0 0.0
        %v5163 = vand.u32 %v4498, 4294901760
        %5164 = vmatmul.mubr.f32.gmra.mrb[0].mxu0 %v5163
        %v5165 = vpop.f32.mrb[0].mxu0
        %v5166 = vadd.f32 %v5041, %v5165
        %v5167 = vpop.f32.mrb[0].mxu0
        %5168 = vdwg.mxu0
        %5169 = vmatprep.subr.mxu0 0.0
        %v5170 = vand.u32 %v4432, 4294901760
        %5171 = vmatpush1.msra.mxu0 %v5170
        %5172 = vmatprep.subr.mxu0 0.0
        %v5173 = vand.u32 %v4433, 4294901760
        %5174 = vmatpush1.msra.mxu0 %v5173
        %5175 = vmatprep.subr.mxu0 0.0
        %v5176 = vand.u32 %v4434, 4294901760
        %5177 = vmatpush1.msra.mxu0 %v5176
        %5178 = vmatprep.subr.mxu0 0.0
        %v5179 = vand.u32 %v4435, 4294901760
        %5180 = vmatpush1.msra.mxu0 %v5179
        %5181 = vmatprep.subr.mxu0 0.0
        %5182 = vmatpush1.msra.mxu0 0.0
        %5183 = vmatprep.subr.mxu0 0.0
        %5184 = vmatpush1.msra.mxu0 0.0
        %5185 = vmatprep.subr.mxu0 0.0
        %5186 = vmatpush1.msra.mxu0 0.0
        %5187 = vmatprep.subr.mxu0 0.0
        %5188 = vmatpush1.msra.mxu0 0.0
        %5189 = vmatprep.subr.mxu0 0.0
        %5190 = vmatpush1.msra.mxu0 0.0
        %5191 = vmatprep.subr.mxu0 0.0
        %5192 = vmatpush1.msra.mxu0 0.0
        %5193 = vmatprep.subr.mxu0 0.0
        %5194 = vmatpush1.msra.mxu0 0.0
        %5195 = vmatprep.subr.mxu0 0.0
        %5196 = vmatpush1.msra.mxu0 0.0
        %5197 = vmatprep.subr.mxu0 0.0
        %5198 = vmatpush1.msra.mxu0 0.0
        %5199 = vmatprep.subr.mxu0 0.0
        %5200 = vmatpush1.msra.mxu0 0.0
        %5201 = vmatprep.subr.mxu0 0.0
        %5202 = vmatpush1.msra.mxu0 0.0
        %5203 = vmatprep.subr.mxu0 0.0
        %5204 = vmatpush1.msra.mxu0 0.0
        %5205 = vmatprep.subr.mxu0 0.0
        %5206 = vmatpush1.msra.mxu0 0.0
        %5207 = vmatprep.subr.mxu0 0.0
        %5208 = vmatpush1.msra.mxu0 0.0
        %5209 = vmatprep.subr.mxu0 0.0
        %5210 = vmatpush1.msra.mxu0 0.0
        %5211 = vmatprep.subr.mxu0 0.0
        %5212 = vmatpush1.msra.mxu0 0.0
        %5213 = vmatprep.subr.mxu0 0.0
        %5214 = vmatpush1.msra.mxu0 0.0
        %5215 = vmatprep.subr.mxu0 0.0
        %5216 = vmatpush1.msra.mxu0 0.0
        %5217 = vmatprep.subr.mxu0 0.0
        %5218 = vmatpush1.msra.mxu0 0.0
        %5219 = vmatprep.subr.mxu0 0.0
        %5220 = vmatpush1.msra.mxu0 0.0
        %5221 = vmatprep.subr.mxu0 0.0
        %5222 = vmatpush1.msra.mxu0 0.0
        %5223 = vmatprep.subr.mxu0 0.0
        %5224 = vmatpush1.msra.mxu0 0.0
        %5225 = vmatprep.subr.mxu0 0.0
        %5226 = vmatpush1.msra.mxu0 0.0
        %5227 = vmatprep.subr.mxu0 0.0
        %5228 = vmatpush1.msra.mxu0 0.0
        %5229 = vmatprep.subr.mxu0 0.0
        %5230 = vmatpush1.msra.mxu0 0.0
        %5231 = vmatprep.subr.mxu0 0.0
        %5232 = vmatpush1.msra.mxu0 0.0
        %5233 = vmatprep.subr.mxu0 0.0
        %5234 = vmatpush1.msra.mxu0 0.0
        %5235 = vmatprep.subr.mxu0 0.0
        %5236 = vmatpush1.msra.mxu0 0.0
        %5237 = vmatprep.mubr.f32.mxu0 0.0
        %v5238 = vand.u32 %v4477, 4294901760
        %5239 = vmatmul.mubr.f32.gmra.mrb[0].mxu0 %v5238
        %v5240 = vpop.f32.mrb[0].mxu0
        %v5241 = vadd.f32 %v5124, %v5240
        %v5242 = vpop.f32.mrb[0].mxu0
        %5243 = vmatprep.mubr.f32.mxu0 0.0
        %v5244 = vand.u32 %v4480, 4294901760
        %5245 = vmatmul.mubr.f32.gmra.mrb[0].mxu0 %v5244
        %v5246 = vpop.f32.mrb[0].mxu0
        %v5247 = vadd.f32 %v5130, %v5246
        %v5248 = vpop.f32.mrb[0].mxu0
        %5249 = vmatprep.mubr.f32.mxu0 0.0
        %v5250 = vand.u32 %v4483, 4294901760
        %5251 = vmatmul.mubr.f32.gmra.mrb[0].mxu0 %v5250
        %v5252 = vpop.f32.mrb[0].mxu0
        %v5253 = vadd.f32 %v5136, %v5252
        %v5254 = vpop.f32.mrb[0].mxu0
        %5255 = vmatprep.mubr.f32.mxu0 0.0
        %v5256 = vand.u32 %v4486, 4294901760
        %5257 = vmatmul.mubr.f32.gmra.mrb[0].mxu0 %v5256
        %v5258 = vpop.f32.mrb[0].mxu0
        %v5259 = vadd.f32 %v5142, %v5258
        %v5260 = vpop.f32.mrb[0].mxu0
        %5261 = vmatprep.mubr.f32.mxu0 0.0
        %v5262 = vand.u32 %v4489, 4294901760
        %5263 = vmatmul.mubr.f32.gmra.mrb[0].mxu0 %v5262
        %v5264 = vpop.f32.mrb[0].mxu0
        %v5265 = vadd.f32 %v5148, %v5264
        %v5266 = vpop.f32.mrb[0].mxu0
        %5267 = vmatprep.mubr.f32.mxu0 0.0
        %v5268 = vand.u32 %v4492, 4294901760
        %5269 = vmatmul.mubr.f32.gmra.mrb[0].mxu0 %v5268
        %v5270 = vpop.f32.mrb[0].mxu0
        %v5271 = vadd.f32 %v5154, %v5270
        %v5272 = vpop.f32.mrb[0].mxu0
        %5273 = vmatprep.mubr.f32.mxu0 0.0
        %v5274 = vand.u32 %v4495, 4294901760
        %5275 = vmatmul.mubr.f32.gmra.mrb[0].mxu0 %v5274
        %v5276 = vpop.f32.mrb[0].mxu0
        %v5277 = vadd.f32 %v5160, %v5276
        %v5278 = vpop.f32.mrb[0].mxu0
        %5279 = vmatprep.mubr.f32.mxu0 0.0
        %v5280 = vand.u32 %v4498, 4294901760
        %5281 = vmatmul.mubr.f32.gmra.mrb[0].mxu0 %v5280
        %v5282 = vpop.f32.mrb[0].mxu0
        %v5283 = vadd.f32 %v5166, %v5282
        %v5284 = vpop.f32.mrb[0].mxu0
        %5285 = vdwg.mxu0
        %v5286 = vmax.f32 %v5241, 0.0
        %v5287 = vmax.f32 %v5247, 0.0
        %v5288 = vmax.f32 %v5253, 0.0
        %v5289 = vmax.f32 %v5259, 0.0
        %v5290 = vmax.f32 %v5265, 0.0
        %v5291 = vmax.f32 %v5271, 0.0
        %v5292 = vmax.f32 %v5277, 0.0
        %v5293 = vmax.f32 %v5283, 0.0
        %v5294 = vld [vmem:[%s1 + $0x120] sm:$0xff]
        %v5295 = vld [vmem:[%s1 + $0x128] sm:$0xff]
        %v5296 = vld [vmem:[%s1 + $0x130] sm:$0xff]
        %v5297 = vld [vmem:[%s1 + $0x138] sm:$0xff]
        %5298 = vset.pattern.permute.xlu0 7
        %5299 = vperm.xlu0 %5298, %v2544
        %v5300 = vpop.permute.xlu0 %5299
        %5302 = vset.pattern.permute.xlu0 7
        %5303 = vperm.xlu0 %5302, %v2545
        %v5304 = vpop.permute.xlu0 %5303
        %5306 = vset.pattern.permute.xlu0 7
        %5307 = vperm.xlu0 %5306, %v2546
        %v5308 = vpop.permute.xlu0 %5307
        %5310 = vset.pattern.permute.xlu0 7
        %5311 = vperm.xlu0 %5310, %v2547
        %v5312 = vpop.permute.xlu0 %5311
        %v5315 = vsel %vm1669, %v5294, 0
        %v5318 = vsel %vm1669, %v5295, 0
        %v5321 = vsel %vm1669, %v5296, 0
        %v5324 = vsel %vm1669, %v5297, 0
        %5326 = vmatprep.subr.mxu0 0.0
        %v5327 = vand.u32 %v5286, 4294901760
        %5328 = vmatpush1.msra.mxu0 %v5327
        %5329 = vmatprep.subr.mxu0 0.0
        %v5330 = vand.u32 %v5287, 4294901760
        %5331 = vmatpush1.msra.mxu0 %v5330
        %5332 = vmatprep.subr.mxu0 0.0
        %v5333 = vand.u32 %v5288, 4294901760
        %5334 = vmatpush1.msra.mxu0 %v5333
        %5335 = vmatprep.subr.mxu0 0.0
        %v5336 = vand.u32 %v5289, 4294901760
        %5337 = vmatpush1.msra.mxu0 %v5336
        %5338 = vmatprep.subr.mxu0 0.0
        %v5339 = vand.u32 %v5290, 4294901760
        %5340 = vmatpush1.msra.mxu0 %v5339
        %5341 = vmatprep.subr.mxu0 0.0
        %v5342 = vand.u32 %v5291, 4294901760
        %5343 = vmatpush1.msra.mxu0 %v5342
        %5344 = vmatprep.subr.mxu0 0.0
        %v5345 = vand.u32 %v5292, 4294901760
        %5346 = vmatpush1.msra.mxu0 %v5345
        %5347 = vmatprep.subr.mxu0 0.0
        %v5348 = vand.u32 %v5293, 4294901760
        %5349 = vmatpush1.msra.mxu0 %v5348
        %5350 = vmatprep.subr.mxu0 0.0
        %5351 = vmatpush1.msra.mxu0 0.0
        %5352 = vmatprep.subr.mxu0 0.0
        %5353 = vmatpush1.msra.mxu0 0.0
        %5354 = vmatprep.subr.mxu0 0.0
        %5355 = vmatpush1.msra.mxu0 0.0
        %5356 = vmatprep.subr.mxu0 0.0
        %5357 = vmatpush1.msra.mxu0 0.0
        %5358 = vmatprep.subr.mxu0 0.0
        %5359 = vmatpush1.msra.mxu0 0.0
        %5360 = vmatprep.subr.mxu0 0.0
        %5361 = vmatpush1.msra.mxu0 0.0
        %5362 = vmatprep.subr.mxu0 0.0
        %5363 = vmatpush1.msra.mxu0 0.0
        %5364 = vmatprep.subr.mxu0 0.0
        %5365 = vmatpush1.msra.mxu0 0.0
        %5366 = vmatprep.subr.mxu0 0.0
        %5367 = vmatpush1.msra.mxu0 0.0
        %5368 = vmatprep.subr.mxu0 0.0
        %5369 = vmatpush1.msra.mxu0 0.0
        %5370 = vmatprep.subr.mxu0 0.0
        %5371 = vmatpush1.msra.mxu0 0.0
        %5372 = vmatprep.subr.mxu0 0.0
        %5373 = vmatpush1.msra.mxu0 0.0
        %5374 = vmatprep.subr.mxu0 0.0
        %5375 = vmatpush1.msra.mxu0 0.0
        %5376 = vmatprep.subr.mxu0 0.0
        %5377 = vmatpush1.msra.mxu0 0.0
        %5378 = vmatprep.subr.mxu0 0.0
        %5379 = vmatpush1.msra.mxu0 0.0
        %5380 = vmatprep.subr.mxu0 0.0
        %5381 = vmatpush1.msra.mxu0 0.0
        %5382 = vmatprep.subr.mxu0 0.0
        %5383 = vmatpush1.msra.mxu0 0.0
        %5384 = vmatprep.subr.mxu0 0.0
        %5385 = vmatpush1.msra.mxu0 0.0
        %5386 = vmatprep.subr.mxu0 0.0
        %5387 = vmatpush1.msra.mxu0 0.0
        %5388 = vmatprep.subr.mxu0 0.0
        %5389 = vmatpush1.msra.mxu0 0.0
        %5390 = vmatprep.subr.mxu0 0.0
        %5391 = vmatpush1.msra.mxu0 0.0
        %5392 = vmatprep.subr.mxu0 0.0
        %5393 = vmatpush1.msra.mxu0 0.0
        %5394 = vmatprep.subr.mxu0 0.0
        %5395 = vmatpush1.msra.mxu0 0.0
        %5396 = vmatprep.subr.mxu0 0.0
        %5397 = vmatpush1.msra.mxu0 0.0
        %5398 = vmatprep.mubr.f32.mxu0 0.0
        %v5399 = vand.u32 %v5315, 4294901760
        %v5400 = vsub.f32 %v5315, %v5399
        %v5401 = vand.u32 %v5400, 4294901760
        %v5402 = vsub.f32 %v5400, %v5401
        %v5403 = vand.u32 %v5402, 4294901760
        %5404 = vmatmul.mubr.f32.gmra.mrb[0].mxu0 %v5403
        %v5405 = vpop.f32.mrb[0].mxu0
        %v5406 = vadd.f32 %v5300, %v5405
        %v5407 = vpop.f32.mrb[0].mxu0
        %5408 = vmatprep.mubr.f32.mxu0 0.0
        %v5409 = vand.u32 %v5318, 4294901760
        %v5410 = vsub.f32 %v5318, %v5409
        %v5411 = vand.u32 %v5410, 4294901760
        %v5412 = vsub.f32 %v5410, %v5411
        %v5413 = vand.u32 %v5412, 4294901760
        %5414 = vmatmul.mubr.f32.gmra.mrb[0].mxu0 %v5413
        %v5415 = vpop.f32.mrb[0].mxu0
        %v5416 = vadd.f32 %v5304, %v5415
        %v5417 = vpop.f32.mrb[0].mxu0
        %5418 = vmatprep.mubr.f32.mxu0 0.0
        %v5419 = vand.u32 %v5321, 4294901760
        %v5420 = vsub.f32 %v5321, %v5419
        %v5421 = vand.u32 %v5420, 4294901760
        %v5422 = vsub.f32 %v5420, %v5421
        %v5423 = vand.u32 %v5422, 4294901760
        %5424 = vmatmul.mubr.f32.gmra.mrb[0].mxu0 %v5423
        %v5425 = vpop.f32.mrb[0].mxu0
        %v5426 = vadd.f32 %v5308, %v5425
        %v5427 = vpop.f32.mrb[0].mxu0
        %5428 = vmatprep.mubr.f32.mxu0 0.0
        %v5429 = vand.u32 %v5324, 4294901760
        %v5430 = vsub.f32 %v5324, %v5429
        %v5431 = vand.u32 %v5430, 4294901760
        %v5432 = vsub.f32 %v5430, %v5431
        %v5433 = vand.u32 %v5432, 4294901760
        %5434 = vmatmul.mubr.f32.gmra.mrb[0].mxu0 %v5433
        %v5435 = vpop.f32.mrb[0].mxu0
        %v5436 = vadd.f32 %v5312, %v5435
        %v5437 = vpop.f32.mrb[0].mxu0
        %5438 = vdwg.mxu0
        %5439 = vmatprep.subr.mxu0 0.0
        %v5440 = vand.u32 %v5286, 4294901760
        %v5441 = vsub.f32 %v5286, %v5440
        %v5442 = vand.u32 %v5441, 4294901760
        %v5443 = vsub.f32 %v5441, %v5442
        %v5444 = vand.u32 %v5443, 4294901760
        %5445 = vmatpush1.msra.mxu0 %v5444
        %5446 = vmatprep.subr.mxu0 0.0
        %v5447 = vand.u32 %v5287, 4294901760
        %v5448 = vsub.f32 %v5287, %v5447
        %v5449 = vand.u32 %v5448, 4294901760
        %v5450 = vsub.f32 %v5448, %v5449
        %v5451 = vand.u32 %v5450, 4294901760
        %5452 = vmatpush1.msra.mxu0 %v5451
        %5453 = vmatprep.subr.mxu0 0.0
        %v5454 = vand.u32 %v5288, 4294901760
        %v5455 = vsub.f32 %v5288, %v5454
        %v5456 = vand.u32 %v5455, 4294901760
        %v5457 = vsub.f32 %v5455, %v5456
        %v5458 = vand.u32 %v5457, 4294901760
        %5459 = vmatpush1.msra.mxu0 %v5458
        %5460 = vmatprep.subr.mxu0 0.0
        %v5461 = vand.u32 %v5289, 4294901760
        %v5462 = vsub.f32 %v5289, %v5461
        %v5463 = vand.u32 %v5462, 4294901760
        %v5464 = vsub.f32 %v5462, %v5463
        %v5465 = vand.u32 %v5464, 4294901760
        %5466 = vmatpush1.msra.mxu0 %v5465
        %5467 = vmatprep.subr.mxu0 0.0
        %v5468 = vand.u32 %v5290, 4294901760
        %v5469 = vsub.f32 %v5290, %v5468
        %v5470 = vand.u32 %v5469, 4294901760
        %v5471 = vsub.f32 %v5469, %v5470
        %v5472 = vand.u32 %v5471, 4294901760
        %5473 = vmatpush1.msra.mxu0 %v5472
        %5474 = vmatprep.subr.mxu0 0.0
        %v5475 = vand.u32 %v5291, 4294901760
        %v5476 = vsub.f32 %v5291, %v5475
        %v5477 = vand.u32 %v5476, 4294901760
        %v5478 = vsub.f32 %v5476, %v5477
        %v5479 = vand.u32 %v5478, 4294901760
        %5480 = vmatpush1.msra.mxu0 %v5479
        %5481 = vmatprep.subr.mxu0 0.0
        %v5482 = vand.u32 %v5292, 4294901760
        %v5483 = vsub.f32 %v5292, %v5482
        %v5484 = vand.u32 %v5483, 4294901760
        %v5485 = vsub.f32 %v5483, %v5484
        %v5486 = vand.u32 %v5485, 4294901760
        %5487 = vmatpush1.msra.mxu0 %v5486
        %5488 = vmatprep.subr.mxu0 0.0
        %v5489 = vand.u32 %v5293, 4294901760
        %v5490 = vsub.f32 %v5293, %v5489
        %v5491 = vand.u32 %v5490, 4294901760
        %v5492 = vsub.f32 %v5490, %v5491
        %v5493 = vand.u32 %v5492, 4294901760
        %5494 = vmatpush1.msra.mxu0 %v5493
        %5495 = vmatprep.subr.mxu0 0.0
        %5496 = vmatpush1.msra.mxu0 0.0
        %5497 = vmatprep.subr.mxu0 0.0
        %5498 = vmatpush1.msra.mxu0 0.0
        %5499 = vmatprep.subr.mxu0 0.0
        %5500 = vmatpush1.msra.mxu0 0.0
        %5501 = vmatprep.subr.mxu0 0.0
        %5502 = vmatpush1.msra.mxu0 0.0
        %5503 = vmatprep.subr.mxu0 0.0
        %5504 = vmatpush1.msra.mxu0 0.0
        %5505 = vmatprep.subr.mxu0 0.0
        %5506 = vmatpush1.msra.mxu0 0.0
        %5507 = vmatprep.subr.mxu0 0.0
        %5508 = vmatpush1.msra.mxu0 0.0
        %5509 = vmatprep.subr.mxu0 0.0
        %5510 = vmatpush1.msra.mxu0 0.0
        %5511 = vmatprep.subr.mxu0 0.0
        %5512 = vmatpush1.msra.mxu0 0.0
        %5513 = vmatprep.subr.mxu0 0.0
        %5514 = vmatpush1.msra.mxu0 0.0
        %5515 = vmatprep.subr.mxu0 0.0
        %5516 = vmatpush1.msra.mxu0 0.0
        %5517 = vmatprep.subr.mxu0 0.0
        %5518 = vmatpush1.msra.mxu0 0.0
        %5519 = vmatprep.subr.mxu0 0.0
        %5520 = vmatpush1.msra.mxu0 0.0
        %5521 = vmatprep.subr.mxu0 0.0
        %5522 = vmatpush1.msra.mxu0 0.0
        %5523 = vmatprep.subr.mxu0 0.0
        %5524 = vmatpush1.msra.mxu0 0.0
        %5525 = vmatprep.subr.mxu0 0.0
        %5526 = vmatpush1.msra.mxu0 0.0
        %5527 = vmatprep.subr.mxu0 0.0
        %5528 = vmatpush1.msra.mxu0 0.0
        %5529 = vmatprep.subr.mxu0 0.0
        %5530 = vmatpush1.msra.mxu0 0.0
        %5531 = vmatprep.subr.mxu0 0.0
        %5532 = vmatpush1.msra.mxu0 0.0
        %5533 = vmatprep.subr.mxu0 0.0
        %5534 = vmatpush1.msra.mxu0 0.0
        %5535 = vmatprep.subr.mxu0 0.0
        %5536 = vmatpush1.msra.mxu0 0.0
        %5537 = vmatprep.subr.mxu0 0.0
        %5538 = vmatpush1.msra.mxu0 0.0
        %5539 = vmatprep.subr.mxu0 0.0
        %5540 = vmatpush1.msra.mxu0 0.0
        %5541 = vmatprep.subr.mxu0 0.0
        %5542 = vmatpush1.msra.mxu0 0.0
        %5543 = vmatprep.mubr.f32.mxu0 0.0
        %v5544 = vand.u32 %v5315, 4294901760
        %5545 = vmatmul.mubr.f32.gmra.mrb[0].mxu0 %v5544
        %v5546 = vpop.f32.mrb[0].mxu0
        %v5547 = vadd.f32 %v5406, %v5546
        %v5548 = vpop.f32.mrb[0].mxu0
        %5549 = vmatprep.mubr.f32.mxu0 0.0
        %v5550 = vand.u32 %v5318, 4294901760
        %5551 = vmatmul.mubr.f32.gmra.mrb[0].mxu0 %v5550
        %v5552 = vpop.f32.mrb[0].mxu0
        %v5553 = vadd.f32 %v5416, %v5552
        %v5554 = vpop.f32.mrb[0].mxu0
        %5555 = vmatprep.mubr.f32.mxu0 0.0
        %v5556 = vand.u32 %v5321, 4294901760
        %5557 = vmatmul.mubr.f32.gmra.mrb[0].mxu0 %v5556
        %v5558 = vpop.f32.mrb[0].mxu0
        %v5559 = vadd.f32 %v5426, %v5558
        %v5560 = vpop.f32.mrb[0].mxu0
        %5561 = vmatprep.mubr.f32.mxu0 0.0
        %v5562 = vand.u32 %v5324, 4294901760
        %5563 = vmatmul.mubr.f32.gmra.mrb[0].mxu0 %v5562
        %v5564 = vpop.f32.mrb[0].mxu0
        %v5565 = vadd.f32 %v5436, %v5564
        %v5566 = vpop.f32.mrb[0].mxu0
        %5567 = vdwg.mxu0
        %5568 = vmatprep.subr.mxu0 0.0
        %v5569 = vand.u32 %v5286, 4294901760
        %v5570 = vsub.f32 %v5286, %v5569
        %5571 = vmatpush1.msra.mxu0 %v5570
        %5572 = vmatprep.subr.mxu0 0.0
        %v5573 = vand.u32 %v5287, 4294901760
        %v5574 = vsub.f32 %v5287, %v5573
        %5575 = vmatpush1.msra.mxu0 %v5574
        %5576 = vmatprep.subr.mxu0 0.0
        %v5577 = vand.u32 %v5288, 4294901760
        %v5578 = vsub.f32 %v5288, %v5577
        %5579 = vmatpush1.msra.mxu0 %v5578
        %5580 = vmatprep.subr.mxu0 0.0
        %v5581 = vand.u32 %v5289, 4294901760
        %v5582 = vsub.f32 %v5289, %v5581
        %5583 = vmatpush1.msra.mxu0 %v5582
        %5584 = vmatprep.subr.mxu0 0.0
        %v5585 = vand.u32 %v5290, 4294901760
        %v5586 = vsub.f32 %v5290, %v5585
        %5587 = vmatpush1.msra.mxu0 %v5586
        %5588 = vmatprep.subr.mxu0 0.0
        %v5589 = vand.u32 %v5291, 4294901760
        %v5590 = vsub.f32 %v5291, %v5589
        %5591 = vmatpush1.msra.mxu0 %v5590
        %5592 = vmatprep.subr.mxu0 0.0
        %v5593 = vand.u32 %v5292, 4294901760
        %v5594 = vsub.f32 %v5292, %v5593
        %5595 = vmatpush1.msra.mxu0 %v5594
        %5596 = vmatprep.subr.mxu0 0.0
        %v5597 = vand.u32 %v5293, 4294901760
        %v5598 = vsub.f32 %v5293, %v5597
        %5599 = vmatpush1.msra.mxu0 %v5598
        %5600 = vmatprep.subr.mxu0 0.0
        %5601 = vmatpush1.msra.mxu0 0.0
        %5602 = vmatprep.subr.mxu0 0.0
        %5603 = vmatpush1.msra.mxu0 0.0
        %5604 = vmatprep.subr.mxu0 0.0
        %5605 = vmatpush1.msra.mxu0 0.0
        %5606 = vmatprep.subr.mxu0 0.0
        %5607 = vmatpush1.msra.mxu0 0.0
        %5608 = vmatprep.subr.mxu0 0.0
        %5609 = vmatpush1.msra.mxu0 0.0
        %5610 = vmatprep.subr.mxu0 0.0
        %5611 = vmatpush1.msra.mxu0 0.0
        %5612 = vmatprep.subr.mxu0 0.0
        %5613 = vmatpush1.msra.mxu0 0.0
        %5614 = vmatprep.subr.mxu0 0.0
        %5615 = vmatpush1.msra.mxu0 0.0
        %5616 = vmatprep.subr.mxu0 0.0
        %5617 = vmatpush1.msra.mxu0 0.0
        %5618 = vmatprep.subr.mxu0 0.0
        %5619 = vmatpush1.msra.mxu0 0.0
        %5620 = vmatprep.subr.mxu0 0.0
        %5621 = vmatpush1.msra.mxu0 0.0
        %5622 = vmatprep.subr.mxu0 0.0
        %5623 = vmatpush1.msra.mxu0 0.0
        %5624 = vmatprep.subr.mxu0 0.0
        %5625 = vmatpush1.msra.mxu0 0.0
        %5626 = vmatprep.subr.mxu0 0.0
        %5627 = vmatpush1.msra.mxu0 0.0
        %5628 = vmatprep.subr.mxu0 0.0
        %5629 = vmatpush1.msra.mxu0 0.0
        %5630 = vmatprep.subr.mxu0 0.0
        %5631 = vmatpush1.msra.mxu0 0.0
        %5632 = vmatprep.subr.mxu0 0.0
        %5633 = vmatpush1.msra.mxu0 0.0
        %5634 = vmatprep.subr.mxu0 0.0
        %5635 = vmatpush1.msra.mxu0 0.0
        %5636 = vmatprep.subr.mxu0 0.0
        %5637 = vmatpush1.msra.mxu0 0.0
        %5638 = vmatprep.subr.mxu0 0.0
        %5639 = vmatpush1.msra.mxu0 0.0
        %5640 = vmatprep.subr.mxu0 0.0
        %5641 = vmatpush1.msra.mxu0 0.0
        %5642 = vmatprep.subr.mxu0 0.0
        %5643 = vmatpush1.msra.mxu0 0.0
        %5644 = vmatprep.subr.mxu0 0.0
        %5645 = vmatpush1.msra.mxu0 0.0
        %5646 = vmatprep.subr.mxu0 0.0
        %5647 = vmatpush1.msra.mxu0 0.0
        %5648 = vmatprep.mubr.f32.mxu0 0.0
        %v5649 = vand.u32 %v5315, 4294901760
        %v5650 = vsub.f32 %v5315, %v5649
        %5651 = vmatmul.mubr.f32.gmra.mrb[0].mxu0 %v5650
        %v5652 = vpop.f32.mrb[0].mxu0
        %v5653 = vadd.f32 %v5547, %v5652
        %v5654 = vpop.f32.mrb[0].mxu0
        %5655 = vmatprep.mubr.f32.mxu0 0.0
        %v5656 = vand.u32 %v5318, 4294901760
        %v5657 = vsub.f32 %v5318, %v5656
        %5658 = vmatmul.mubr.f32.gmra.mrb[0].mxu0 %v5657
        %v5659 = vpop.f32.mrb[0].mxu0
        %v5660 = vadd.f32 %v5553, %v5659
        %v5661 = vpop.f32.mrb[0].mxu0
        %5662 = vmatprep.mubr.f32.mxu0 0.0
        %v5663 = vand.u32 %v5321, 4294901760
        %v5664 = vsub.f32 %v5321, %v5663
        %5665 = vmatmul.mubr.f32.gmra.mrb[0].mxu0 %v5664
        %v5666 = vpop.f32.mrb[0].mxu0
        %v5667 = vadd.f32 %v5559, %v5666
        %v5668 = vpop.f32.mrb[0].mxu0
        %5669 = vmatprep.mubr.f32.mxu0 0.0
        %v5670 = vand.u32 %v5324, 4294901760
        %v5671 = vsub.f32 %v5324, %v5670
        %5672 = vmatmul.mubr.f32.gmra.mrb[0].mxu0 %v5671
        %v5673 = vpop.f32.mrb[0].mxu0
        %v5674 = vadd.f32 %v5565, %v5673
        %v5675 = vpop.f32.mrb[0].mxu0
        %5676 = vdwg.mxu0
        %5677 = vmatprep.subr.mxu0 0.0
        %v5678 = vand.u32 %v5286, 4294901760
        %5679 = vmatpush1.msra.mxu0 %v5678
        %5680 = vmatprep.subr.mxu0 0.0
        %v5681 = vand.u32 %v5287, 4294901760
        %5682 = vmatpush1.msra.mxu0 %v5681
        %5683 = vmatprep.subr.mxu0 0.0
        %v5684 = vand.u32 %v5288, 4294901760
        %5685 = vmatpush1.msra.mxu0 %v5684
        %5686 = vmatprep.subr.mxu0 0.0
        %v5687 = vand.u32 %v5289, 4294901760
        %5688 = vmatpush1.msra.mxu0 %v5687
        %5689 = vmatprep.subr.mxu0 0.0
        %v5690 = vand.u32 %v5290, 4294901760
        %5691 = vmatpush1.msra.mxu0 %v5690
        %5692 = vmatprep.subr.mxu0 0.0
        %v5693 = vand.u32 %v5291, 4294901760
        %5694 = vmatpush1.msra.mxu0 %v5693
        %5695 = vmatprep.subr.mxu0 0.0
        %v5696 = vand.u32 %v5292, 4294901760
        %5697 = vmatpush1.msra.mxu0 %v5696
        %5698 = vmatprep.subr.mxu0 0.0
        %v5699 = vand.u32 %v5293, 4294901760
        %5700 = vmatpush1.msra.mxu0 %v5699
        %5701 = vmatprep.subr.mxu0 0.0
        %5702 = vmatpush1.msra.mxu0 0.0
        %5703 = vmatprep.subr.mxu0 0.0
        %5704 = vmatpush1.msra.mxu0 0.0
        %5705 = vmatprep.subr.mxu0 0.0
        %5706 = vmatpush1.msra.mxu0 0.0
        %5707 = vmatprep.subr.mxu0 0.0
        %5708 = vmatpush1.msra.mxu0 0.0
        %5709 = vmatprep.subr.mxu0 0.0
        %5710 = vmatpush1.msra.mxu0 0.0
        %5711 = vmatprep.subr.mxu0 0.0
        %5712 = vmatpush1.msra.mxu0 0.0
        %5713 = vmatprep.subr.mxu0 0.0
        %5714 = vmatpush1.msra.mxu0 0.0
        %5715 = vmatprep.subr.mxu0 0.0
        %5716 = vmatpush1.msra.mxu0 0.0
        %5717 = vmatprep.subr.mxu0 0.0
        %5718 = vmatpush1.msra.mxu0 0.0
        %5719 = vmatprep.subr.mxu0 0.0
        %5720 = vmatpush1.msra.mxu0 0.0
        %5721 = vmatprep.subr.mxu0 0.0
        %5722 = vmatpush1.msra.mxu0 0.0
        %5723 = vmatprep.subr.mxu0 0.0
        %5724 = vmatpush1.msra.mxu0 0.0
        %5725 = vmatprep.subr.mxu0 0.0
        %5726 = vmatpush1.msra.mxu0 0.0
        %5727 = vmatprep.subr.mxu0 0.0
        %5728 = vmatpush1.msra.mxu0 0.0
        %5729 = vmatprep.subr.mxu0 0.0
        %5730 = vmatpush1.msra.mxu0 0.0
        %5731 = vmatprep.subr.mxu0 0.0
        %5732 = vmatpush1.msra.mxu0 0.0
        %5733 = vmatprep.subr.mxu0 0.0
        %5734 = vmatpush1.msra.mxu0 0.0
        %5735 = vmatprep.subr.mxu0 0.0
        %5736 = vmatpush1.msra.mxu0 0.0
        %5737 = vmatprep.subr.mxu0 0.0
        %5738 = vmatpush1.msra.mxu0 0.0
        %5739 = vmatprep.subr.mxu0 0.0
        %5740 = vmatpush1.msra.mxu0 0.0
        %5741 = vmatprep.subr.mxu0 0.0
        %5742 = vmatpush1.msra.mxu0 0.0
        %5743 = vmatprep.subr.mxu0 0.0
        %5744 = vmatpush1.msra.mxu0 0.0
        %5745 = vmatprep.subr.mxu0 0.0
        %5746 = vmatpush1.msra.mxu0 0.0
        %5747 = vmatprep.subr.mxu0 0.0
        %5748 = vmatpush1.msra.mxu0 0.0
        %5749 = vmatprep.mubr.f32.mxu0 0.0
        %v5750 = vand.u32 %v5315, 4294901760
        %v5751 = vsub.f32 %v5315, %v5750
        %v5752 = vand.u32 %v5751, 4294901760
        %5753 = vmatmul.mubr.f32.gmra.mrb[0].mxu0 %v5752
        %v5754 = vpop.f32.mrb[0].mxu0
        %v5755 = vadd.f32 %v5653, %v5754
        %v5756 = vpop.f32.mrb[0].mxu0
        %5757 = vmatprep.mubr.f32.mxu0 0.0
        %v5758 = vand.u32 %v5318, 4294901760
        %v5759 = vsub.f32 %v5318, %v5758
        %v5760 = vand.u32 %v5759, 4294901760
        %5761 = vmatmul.mubr.f32.gmra.mrb[0].mxu0 %v5760
        %v5762 = vpop.f32.mrb[0].mxu0
        %v5763 = vadd.f32 %v5660, %v5762
        %v5764 = vpop.f32.mrb[0].mxu0
        %5765 = vmatprep.mubr.f32.mxu0 0.0
        %v5766 = vand.u32 %v5321, 4294901760
        %v5767 = vsub.f32 %v5321, %v5766
        %v5768 = vand.u32 %v5767, 4294901760
        %5769 = vmatmul.mubr.f32.gmra.mrb[0].mxu0 %v5768
        %v5770 = vpop.f32.mrb[0].mxu0
        %v5771 = vadd.f32 %v5667, %v5770
        %v5772 = vpop.f32.mrb[0].mxu0
        %5773 = vmatprep.mubr.f32.mxu0 0.0
        %v5774 = vand.u32 %v5324, 4294901760
        %v5775 = vsub.f32 %v5324, %v5774
        %v5776 = vand.u32 %v5775, 4294901760
        %5777 = vmatmul.mubr.f32.gmra.mrb[0].mxu0 %v5776
        %v5778 = vpop.f32.mrb[0].mxu0
        %v5779 = vadd.f32 %v5674, %v5778
        %v5780 = vpop.f32.mrb[0].mxu0
        %5781 = vdwg.mxu0
        %5782 = vmatprep.subr.mxu0 0.0
        %v5783 = vand.u32 %v5286, 4294901760
        %v5784 = vsub.f32 %v5286, %v5783
        %v5785 = vand.u32 %v5784, 4294901760
        %5786 = vmatpush1.msra.mxu0 %v5785
        %5787 = vmatprep.subr.mxu0 0.0
        %v5788 = vand.u32 %v5287, 4294901760
        %v5789 = vsub.f32 %v5287, %v5788
        %v5790 = vand.u32 %v5789, 4294901760
        %5791 = vmatpush1.msra.mxu0 %v5790
        %5792 = vmatprep.subr.mxu0 0.0
        %v5793 = vand.u32 %v5288, 4294901760
        %v5794 = vsub.f32 %v5288, %v5793
        %v5795 = vand.u32 %v5794, 4294901760
        %5796 = vmatpush1.msra.mxu0 %v5795
        %5797 = vmatprep.subr.mxu0 0.0
        %v5798 = vand.u32 %v5289, 4294901760
        %v5799 = vsub.f32 %v5289, %v5798
        %v5800 = vand.u32 %v5799, 4294901760
        %5801 = vmatpush1.msra.mxu0 %v5800
        %5802 = vmatprep.subr.mxu0 0.0
        %v5803 = vand.u32 %v5290, 4294901760
        %v5804 = vsub.f32 %v5290, %v5803
        %v5805 = vand.u32 %v5804, 4294901760
        %5806 = vmatpush1.msra.mxu0 %v5805
        %5807 = vmatprep.subr.mxu0 0.0
        %v5808 = vand.u32 %v5291, 4294901760
        %v5809 = vsub.f32 %v5291, %v5808
        %v5810 = vand.u32 %v5809, 4294901760
        %5811 = vmatpush1.msra.mxu0 %v5810
        %5812 = vmatprep.subr.mxu0 0.0
        %v5813 = vand.u32 %v5292, 4294901760
        %v5814 = vsub.f32 %v5292, %v5813
        %v5815 = vand.u32 %v5814, 4294901760
        %5816 = vmatpush1.msra.mxu0 %v5815
        %5817 = vmatprep.subr.mxu0 0.0
        %v5818 = vand.u32 %v5293, 4294901760
        %v5819 = vsub.f32 %v5293, %v5818
        %v5820 = vand.u32 %v5819, 4294901760
        %5821 = vmatpush1.msra.mxu0 %v5820
        %5822 = vmatprep.subr.mxu0 0.0
        %5823 = vmatpush1.msra.mxu0 0.0
        %5824 = vmatprep.subr.mxu0 0.0
        %5825 = vmatpush1.msra.mxu0 0.0
        %5826 = vmatprep.subr.mxu0 0.0
        %5827 = vmatpush1.msra.mxu0 0.0
        %5828 = vmatprep.subr.mxu0 0.0
        %5829 = vmatpush1.msra.mxu0 0.0
        %5830 = vmatprep.subr.mxu0 0.0
        %5831 = vmatpush1.msra.mxu0 0.0
        %5832 = vmatprep.subr.mxu0 0.0
        %5833 = vmatpush1.msra.mxu0 0.0
        %5834 = vmatprep.subr.mxu0 0.0
        %5835 = vmatpush1.msra.mxu0 0.0
        %5836 = vmatprep.subr.mxu0 0.0
        %5837 = vmatpush1.msra.mxu0 0.0
        %5838 = vmatprep.subr.mxu0 0.0
        %5839 = vmatpush1.msra.mxu0 0.0
        %5840 = vmatprep.subr.mxu0 0.0
        %5841 = vmatpush1.msra.mxu0 0.0
        %5842 = vmatprep.subr.mxu0 0.0
        %5843 = vmatpush1.msra.mxu0 0.0
        %5844 = vmatprep.subr.mxu0 0.0
        %5845 = vmatpush1.msra.mxu0 0.0
        %5846 = vmatprep.subr.mxu0 0.0
        %5847 = vmatpush1.msra.mxu0 0.0
        %5848 = vmatprep.subr.mxu0 0.0
        %5849 = vmatpush1.msra.mxu0 0.0
        %5850 = vmatprep.subr.mxu0 0.0
        %5851 = vmatpush1.msra.mxu0 0.0
        %5852 = vmatprep.subr.mxu0 0.0
        %5853 = vmatpush1.msra.mxu0 0.0
        %5854 = vmatprep.subr.mxu0 0.0
        %5855 = vmatpush1.msra.mxu0 0.0
        %5856 = vmatprep.subr.mxu0 0.0
        %5857 = vmatpush1.msra.mxu0 0.0
        %5858 = vmatprep.subr.mxu0 0.0
        %5859 = vmatpush1.msra.mxu0 0.0
        %5860 = vmatprep.subr.mxu0 0.0
        %5861 = vmatpush1.msra.mxu0 0.0
        %5862 = vmatprep.subr.mxu0 0.0
        %5863 = vmatpush1.msra.mxu0 0.0
        %5864 = vmatprep.subr.mxu0 0.0
        %5865 = vmatpush1.msra.mxu0 0.0
        %5866 = vmatprep.subr.mxu0 0.0
        %5867 = vmatpush1.msra.mxu0 0.0
        %5868 = vmatprep.subr.mxu0 0.0
        %5869 = vmatpush1.msra.mxu0 0.0
        %5870 = vmatprep.mubr.f32.mxu0 0.0
        %v5871 = vand.u32 %v5315, 4294901760
        %5872 = vmatmul.mubr.f32.gmra.mrb[0].mxu0 %v5871
        %v5873 = vpop.f32.mrb[0].mxu0
        %v5874 = vadd.f32 %v5755, %v5873
        %v5875 = vpop.f32.mrb[0].mxu0
        %5876 = vmatprep.mubr.f32.mxu0 0.0
        %v5877 = vand.u32 %v5318, 4294901760
        %5878 = vmatmul.mubr.f32.gmra.mrb[0].mxu0 %v5877
        %v5879 = vpop.f32.mrb[0].mxu0
        %v5880 = vadd.f32 %v5763, %v5879
        %v5881 = vpop.f32.mrb[0].mxu0
        %5882 = vmatprep.mubr.f32.mxu0 0.0
        %v5883 = vand.u32 %v5321, 4294901760
        %5884 = vmatmul.mubr.f32.gmra.mrb[0].mxu0 %v5883
        %v5885 = vpop.f32.mrb[0].mxu0
        %v5886 = vadd.f32 %v5771, %v5885
        %v5887 = vpop.f32.mrb[0].mxu0
        %5888 = vmatprep.mubr.f32.mxu0 0.0
        %v5889 = vand.u32 %v5324, 4294901760
        %5890 = vmatmul.mubr.f32.gmra.mrb[0].mxu0 %v5889
        %v5891 = vpop.f32.mrb[0].mxu0
        %v5892 = vadd.f32 %v5779, %v5891
        %v5893 = vpop.f32.mrb[0].mxu0
        %5894 = vdwg.mxu0
        %5895 = vmatprep.subr.mxu0 0.0
        %v5896 = vand.u32 %v5286, 4294901760
        %5897 = vmatpush1.msra.mxu0 %v5896
        %5898 = vmatprep.subr.mxu0 0.0
        %v5899 = vand.u32 %v5287, 4294901760
        %5900 = vmatpush1.msra.mxu0 %v5899
        %5901 = vmatprep.subr.mxu0 0.0
        %v5902 = vand.u32 %v5288, 4294901760
        %5903 = vmatpush1.msra.mxu0 %v5902
        %5904 = vmatprep.subr.mxu0 0.0
        %v5905 = vand.u32 %v5289, 4294901760
        %5906 = vmatpush1.msra.mxu0 %v5905
        %5907 = vmatprep.subr.mxu0 0.0
        %v5908 = vand.u32 %v5290, 4294901760
        %5909 = vmatpush1.msra.mxu0 %v5908
        %5910 = vmatprep.subr.mxu0 0.0
        %v5911 = vand.u32 %v5291, 4294901760
        %5912 = vmatpush1.msra.mxu0 %v5911
        %5913 = vmatprep.subr.mxu0 0.0
        %v5914 = vand.u32 %v5292, 4294901760
        %5915 = vmatpush1.msra.mxu0 %v5914
        %5916 = vmatprep.subr.mxu0 0.0
        %v5917 = vand.u32 %v5293, 4294901760
        %5918 = vmatpush1.msra.mxu0 %v5917
        %5919 = vmatprep.subr.mxu0 0.0
        %5920 = vmatpush1.msra.mxu0 0.0
        %5921 = vmatprep.subr.mxu0 0.0
        %5922 = vmatpush1.msra.mxu0 0.0
        %5923 = vmatprep.subr.mxu0 0.0
        %5924 = vmatpush1.msra.mxu0 0.0
        %5925 = vmatprep.subr.mxu0 0.0
        %5926 = vmatpush1.msra.mxu0 0.0
        %5927 = vmatprep.subr.mxu0 0.0
        %5928 = vmatpush1.msra.mxu0 0.0
        %5929 = vmatprep.subr.mxu0 0.0
        %5930 = vmatpush1.msra.mxu0 0.0
        %5931 = vmatprep.subr.mxu0 0.0
        %5932 = vmatpush1.msra.mxu0 0.0
        %5933 = vmatprep.subr.mxu0 0.0
        %5934 = vmatpush1.msra.mxu0 0.0
        %5935 = vmatprep.subr.mxu0 0.0
        %5936 = vmatpush1.msra.mxu0 0.0
        %5937 = vmatprep.subr.mxu0 0.0
        %5938 = vmatpush1.msra.mxu0 0.0
        %5939 = vmatprep.subr.mxu0 0.0
        %5940 = vmatpush1.msra.mxu0 0.0
        %5941 = vmatprep.subr.mxu0 0.0
        %5942 = vmatpush1.msra.mxu0 0.0
        %5943 = vmatprep.subr.mxu0 0.0
        %5944 = vmatpush1.msra.mxu0 0.0
        %5945 = vmatprep.subr.mxu0 0.0
        %5946 = vmatpush1.msra.mxu0 0.0
        %5947 = vmatprep.subr.mxu0 0.0
        %5948 = vmatpush1.msra.mxu0 0.0
        %5949 = vmatprep.subr.mxu0 0.0
        %5950 = vmatpush1.msra.mxu0 0.0
        %5951 = vmatprep.subr.mxu0 0.0
        %5952 = vmatpush1.msra.mxu0 0.0
        %5953 = vmatprep.subr.mxu0 0.0
        %5954 = vmatpush1.msra.mxu0 0.0
        %5955 = vmatprep.subr.mxu0 0.0
        %5956 = vmatpush1.msra.mxu0 0.0
        %5957 = vmatprep.subr.mxu0 0.0
        %5958 = vmatpush1.msra.mxu0 0.0
        %5959 = vmatprep.subr.mxu0 0.0
        %5960 = vmatpush1.msra.mxu0 0.0
        %5961 = vmatprep.subr.mxu0 0.0
        %5962 = vmatpush1.msra.mxu0 0.0
        %5963 = vmatprep.subr.mxu0 0.0
        %5964 = vmatpush1.msra.mxu0 0.0
        %5965 = vmatprep.subr.mxu0 0.0
        %5966 = vmatpush1.msra.mxu0 0.0
        %5967 = vmatprep.mubr.f32.mxu0 0.0
        %v5968 = vand.u32 %v5315, 4294901760
        %5969 = vmatmul.mubr.f32.gmra.mrb[0].mxu0 %v5968
        %v5970 = vpop.f32.mrb[0].mxu0
        %v5971 = vadd.f32 %v5874, %v5970
        %v5972 = vpop.f32.mrb[0].mxu0
        %5973 = vmatprep.mubr.f32.mxu0 0.0
        %v5974 = vand.u32 %v5318, 4294901760
        %5975 = vmatmul.mubr.f32.gmra.mrb[0].mxu0 %v5974
        %v5976 = vpop.f32.mrb[0].mxu0
        %v5977 = vadd.f32 %v5880, %v5976
        %v5978 = vpop.f32.mrb[0].mxu0
        %5979 = vmatprep.mubr.f32.mxu0 0.0
        %v5980 = vand.u32 %v5321, 4294901760
        %5981 = vmatmul.mubr.f32.gmra.mrb[0].mxu0 %v5980
        %v5982 = vpop.f32.mrb[0].mxu0
        %v5983 = vadd.f32 %v5886, %v5982
        %v5984 = vpop.f32.mrb[0].mxu0
        %5985 = vmatprep.mubr.f32.mxu0 0.0
        %v5986 = vand.u32 %v5324, 4294901760
        %5987 = vmatmul.mubr.f32.gmra.mrb[0].mxu0 %v5986
        %v5988 = vpop.f32.mrb[0].mxu0
        %v5989 = vadd.f32 %v5892, %v5988
        %v5990 = vpop.f32.mrb[0].mxu0
        %5991 = vdwg.mxu0
        %5992 = vst [vmem:[%s211] sm:$0xff] %v3785
        %5993 = vst [vmem:[%s211 + $0x8] sm:$0xff] %v3791
        %5994 = vst [vmem:[%s211 + $0x10] sm:$0xff] %v1620
        %5995 = vst [vmem:[%s211 + $0x18] sm:$0xff] %v1626
        %5996 = vst [vmem:[%s211 + $0x20] sm:$0xff] %v3798
        %5997 = vst [vmem:[%s211 + $0x28] sm:$0xff] %v5971
        %5998 = vst [vmem:[%s211 + $0x30] sm:$0xff] %v5977
        %5999 = vst [vmem:[%s211 + $0x38] sm:$0xff] %v5983
        %6000 = vst [vmem:[%s211 + $0x40] sm:$0xff] %v5989
        %s6001 = sand.u32 %s68, 1
        %s6002 = sand.u32 %s68, 1
        %s6003 = smul.addr %s6002, 72
        %s6004 = scalar_lea.vmem [#allocation3], %s6003
        // Predicated region
        $region67: #{mcvae_forward.1} parent=61 // pred_check
          %p6005 = pneg %p78
        $region68: #{mcvae_forward.1} parent=61 // pred_check_branch
          %6007 = sbr.rel (%p6005) target = $region70
        $region69: #{mcvae_forward.1} parent=61 // pred_region
          %s6008 = smul.addr %s13, 8
          %s6009 = scalar_lea.vmem %s2, %s6008
          // Predicated region
          $region71: #{mcvae_forward.1} parent=69 // pred_check
            _
          $region72: #{mcvae_forward.1} parent=69 // pred_check_branch
            %6011 = sbr.rel (0) target = $region74
          $region73: #{mcvae_forward.1} parent=69 // pred_region
            // Predicated region
            $region75: #{mcvae_forward.1} parent=73 // pred_check
              _
            $region76: #{mcvae_forward.1} parent=73 // pred_check_branch
              %6013 = sbr.rel (0) target = $region78
            $region77: #{mcvae_forward.1} parent=73 // pred_region
              // Predicated region
              $region90: #{mcvae_forward.1} parent=77 // pred_check
                _
              $region91: #{mcvae_forward.1} parent=77 // pred_check_branch
                %6044 = sbr.rel (0) target = $region93
              $region92: #{mcvae_forward.1} parent=77 // pred_region
                loop: start=0, step=1, limit=1
                $region94: #{mcvae_forward.1} parent=92 // loop_pre_header
                  _
                $region95: #{mcvae_forward.1} parent=92 // loop_header
                  %s6046 = sphi 0, %s6050
                  %p6047 = scmp.ge.s32.totalorder %s6046, 1
                  %s6051 = sphi %s6004, %s6004
                  %s6052 = sphi %s6009, %s6009
                $region96: #{mcvae_forward.1} parent=92 // loop_header_branch
                  %6049 = sbr.rel (%p6047) target = $region100
                $region97: #{mcvae_forward.1} parent=92 // loop_body
                  %v6053 = vld [vmem:[%s6051] sm:$0xff]
                  %6054 = vst [vmem:[%s6052] sm:$0xff] %v6053
                  %v6055 = vld [vmem:[%s6051 + $0x8] sm:$0xff]
                  %6056 = vst [vmem:[%s6052 + $0x10] sm:$0xff] %v6055
                  %v6057 = vld [vmem:[%s6051 + $0x10] sm:$0xff]
                  %6058 = vst [vmem:[%s6052 + $0x20] sm:$0xff] %v6057
                  %v6059 = vld [vmem:[%s6051 + $0x18] sm:$0xff]
                  %6060 = vst [vmem:[%s6052 + $0x30] sm:$0xff] %v6059
                  %v6061 = vld [vmem:[%s6051 + $0x20] sm:$0xff]
                  %6062 = vst [vmem:[%s6052 + $0x40] sm:$0xff] %v6061
                  %v6063 = vld [vmem:[%s6051 + $0x28] sm:$0xff]
                  %6064 = vst [vmem:[%s6052 + $0x50] sm:$0xff] %v6063
                  %v6065 = vld [vmem:[%s6051 + $0x30] sm:$0xff]
                  %6066 = vst [vmem:[%s6052 + $0x60] sm:$0xff] %v6065
                  %v6067 = vld [vmem:[%s6051 + $0x38] sm:$0xff]
                  %6068 = vst [vmem:[%s6052 + $0x70] sm:$0xff] %v6067
                  %v6069 = vld [vmem:[%s6051 + $0x40] sm:$0xff]
                  %6070 = vst [vmem:[%s6052 + $0x80] sm:$0xff] %v6069
                $region98: #{mcvae_forward.1} parent=92 // loop_footer
                  %s6050 = sadd.s32 1, %s6046
                $region99: #{mcvae_forward.1} parent=92 // loop_footer_branch
                  %6045 = sbr.rel target = $region95
                $region100: #{mcvae_forward.1} parent=92 // loop_exit
                  _
              $region93: #{mcvae_forward.1} parent=77 // pred_fallthru
                _
              // Predicated region
              $region101: #{mcvae_forward.1} parent=77 // pred_check
                _
              $region102: #{mcvae_forward.1} parent=77 // pred_check_branch
                %6072 = sbr.rel target = $region104
              $region103: #{mcvae_forward.1} parent=77 // pred_region
                _
              $region104: #{mcvae_forward.1} parent=77 // pred_fallthru
                _
            $region78: #{mcvae_forward.1} parent=73 // pred_fallthru
              _
            // Predicated region
            $region79: #{mcvae_forward.1} parent=73 // pred_check
              _
            $region80: #{mcvae_forward.1} parent=73 // pred_check_branch
              %6015 = sbr.rel target = $region82
            $region81: #{mcvae_forward.1} parent=73 // pred_region
              loop: start=0, step=1, limit=1
              $region83: #{mcvae_forward.1} parent=81 // loop_pre_header
                _
              $region84: #{mcvae_forward.1} parent=81 // loop_header
                %s6018 = sphi 0, %s6022
                %p6019 = scmp.ge.s32.totalorder %s6018, 1
                %s6023 = sphi %s6004, %s6004
                %s6024 = sphi %s6009, %s6009
              $region85: #{mcvae_forward.1} parent=81 // loop_header_branch
                %6021 = sbr.rel (%p6019) target = $region89
              $region86: #{mcvae_forward.1} parent=81 // loop_body
                %v6025 = vld [vmem:[%s6023] sm:$0xff]
                %6026 = vst [vmem:[%s6024] sm:$0xff] %v6025
                %v6027 = vld [vmem:[%s6023 + $0x8] sm:$0xff]
                %6028 = vst [vmem:[%s6024 + $0x10] sm:$0xff] %v6027
                %v6029 = vld [vmem:[%s6023 + $0x10] sm:$0xff]
                %6030 = vst [vmem:[%s6024 + $0x20] sm:$0xff] %v6029
                %v6031 = vld [vmem:[%s6023 + $0x18] sm:$0xff]
                %6032 = vst [vmem:[%s6024 + $0x30] sm:$0xff] %v6031
                %v6033 = vld [vmem:[%s6023 + $0x20] sm:$0xff]
                %6034 = vst [vmem:[%s6024 + $0x40] sm:$0xff] %v6033
                %v6035 = vld [vmem:[%s6023 + $0x28] sm:$0xff]
                %6036 = vst [vmem:[%s6024 + $0x50] sm:$0xff] %v6035
                %v6037 = vld [vmem:[%s6023 + $0x30] sm:$0xff]
                %6038 = vst [vmem:[%s6024 + $0x60] sm:$0xff] %v6037
                %v6039 = vld [vmem:[%s6023 + $0x38] sm:$0xff]
                %6040 = vst [vmem:[%s6024 + $0x70] sm:$0xff] %v6039
                %v6041 = vld [vmem:[%s6023 + $0x40] sm:$0xff]
                %6042 = vst [vmem:[%s6024 + $0x80] sm:$0xff] %v6041
              $region87: #{mcvae_forward.1} parent=81 // loop_footer
                %s6022 = sadd.s32 1, %s6018
              $region88: #{mcvae_forward.1} parent=81 // loop_footer_branch
                %6017 = sbr.rel target = $region84
              $region89: #{mcvae_forward.1} parent=81 // loop_exit
                _
            $region82: #{mcvae_forward.1} parent=73 // pred_fallthru
              _
          $region74: #{mcvae_forward.1} parent=69 // pred_fallthru
            _
          %6073 = vnop
        $region70: #{mcvae_forward.1} parent=61 // pred_fallthru
          _
      $region62: #{mcvae_forward.1} parent=5 // pred_fallthru
        _
      %p6074 = scmp.le.s32.totalorder 2, %s8
      // Predicated region
      $region105: #{mcvae_forward.1} parent=5 // pred_check
        %p6075 = pneg %p6074
      $region106: #{mcvae_forward.1} parent=5 // pred_check_branch
        %6077 = sbr.rel (%p6075) target = $region108
      $region107: #{mcvae_forward.1} parent=5 // pred_region
        %s6078 = ssub.s32 %s8, 2
        // Predicated region
        $region109: #{mcvae_forward.1} parent=107 // pred_check
          %p6079 = pneg %p84
        $region110: #{mcvae_forward.1} parent=107 // pred_check_branch
          %6081 = sbr.rel (%p6079) target = $region112
        $region111: #{mcvae_forward.1} parent=107 // pred_region
          %s6082 = sand.u32 %s69, 1
          %s6083 = sand.u32 %s69, 1
          %s6084 = smul.addr %s6083, 72
          %s6085 = scalar_lea.vmem [#allocation3], %s6084
        $region112: #{mcvae_forward.1} parent=107 // pred_fallthru
          _
      $region108: #{mcvae_forward.1} parent=5 // pred_fallthru
        _
    $region6: #{mcvae_forward.1} parent=1 // loop_footer
      %s12 = sadd.s32 1, %s8
    $region7: #{mcvae_forward.1} parent=1 // loop_footer_branch
      %7 = sbr.rel target = $region3
    $region8: #{mcvae_forward.1} parent=1 // loop_exit
      _

</llo_original>
